<compile_context>
chip_gen: v5e
topology: v5e:2x2
jax: 0.10.0
libtpu: 0.0.40
codegen_flags: <defaults>
</compile_context>

<pallas_src>
import functools

import jax
import jax.numpy as jnp
from jax.experimental import pallas as pl
from jax.experimental.pallas import tpu as pltpu

MATMUL_DTYPE = jnp.float32   # set to jnp.bfloat16 on v6e / v7x


def _mm(a, b):
    return jnp.dot(a.astype(MATMUL_DTYPE), b.astype(MATMUL_DTYPE),
                   preferred_element_type=jnp.float32)


def _bmm(eq, a, b):
    return jnp.einsum(eq, a.astype(MATMUL_DTYPE), b.astype(MATMUL_DTYPE),
                      preferred_element_type=jnp.float32)


def _ptum_kernel(num_layers, num_heads,
                 x_ref, maskbias_ref, maskf_ref, cand_ref,
                 wq_ref, bq_ref, wk_ref, bk_ref, wv_ref, bv_ref,
                 wo_ref, bo_ref, w1_ref, b1_ref, w2_ref, b2_ref,
                 ln1w_ref, ln1b_ref, ln2w_ref, ln2b_ref,
                 out_ref):
    """Full PTUM forward: L encoder layers + masked pooling + scoring."""
    B, S, E = x_ref.shape
    H = num_heads
    Dh = E // H
    HB = H * B

    h2 = x_ref[...].reshape(B * S, E)            # running hidden state (B*S, E)

    # Hoisted once (not per head / per layer): key-padding bias -> (H*B, S, S)
    mb = jnp.broadcast_to(maskbias_ref[...], (HB, S, S))

    def layer_norm(v, w, b):
        mu = jnp.mean(v, axis=-1, keepdims=True)
        var = jnp.mean((v - mu) * (v - mu), axis=-1, keepdims=True)
        return (v - mu) * jax.lax.rsqrt(var + 1e-5) * w + b

    # Layer loop unrolled at trace time (L is small; switch to fori_loop if it grows).
    for l in range(num_layers):
        # ---- per-head Q/K/V projections; weights indexed on leading dims,
        #      heads stacked onto the leading (batch) axis: layout-clean ----
        def project(w_ref, b_ref):
            parts = [_mm(h2, w_ref[l, hh]) + b_ref[l, hh] for hh in range(H)]
            return jnp.concatenate(parts, axis=0).reshape(HB, S, Dh)

        q = project(wq_ref, bq_ref)   # (H*B, S, Dh); 1/sqrt(Dh) folded in wrapper
        k = project(wk_ref, bk_ref)
        v = project(wv_ref, bv_ref)

        # ---- head-batched attention: ONE score einsum + ONE softmax + ONE
        #      context einsum over the merged (H*B) batch axis ----
        s = _bmm('nqd,nkd->nqk', q, k) + mb              # (H*B, S, S)
        m = jnp.max(s, axis=-1, keepdims=True)
        p = jnp.exp(s - m)
        denom = jnp.sum(p, axis=-1, keepdims=True)       # (H*B, S, 1)
        ctx = _bmm('nqk,nkd->nqd', p, v)                 # (H*B, S, Dh)
        ctx = ctx * pl.reciprocal(denom, approx=True)    # normalize small tensor (EUP)

        # ---- out-projection: accumulate H clean (B*S,Dh)@(Dh,E) matmuls ----
        attn2 = bo_ref[l]                                # (1, E), broadcasts
        for hh in range(H):
            ctx_h = ctx[hh * B:(hh + 1) * B].reshape(B * S, Dh)
            attn2 = attn2 + _mm(ctx_h, wo_ref[l, hh])
        h1 = layer_norm(h2 + attn2, ln1w_ref[l], ln1b_ref[l])

        # ---- feed-forward (ReLU), two batched matmuls ----
        z = jnp.maximum(_mm(h1, w1_ref[l]) + b1_ref[l], 0.0)
        f = _mm(z, w2_ref[l]) + b2_ref[l]
        h2 = layer_norm(h1 + f, ln2w_ref[l], ln2b_ref[l])

    # ---- masked mean pooling (exact divide for parity) ----
    h3 = h2.reshape(B, S, E)
    mf = maskf_ref[...]                                  # (B, S, 1)
    summ = jnp.sum(h3 * mf, axis=1)                      # (B, E)
    cnt = jnp.sum(mf, axis=1)                            # (B, 1)
    user = summ / jnp.maximum(cnt, 1e-30)                # guard all-padded rows

    # ---- candidate scoring: one batched matmul, no user replication, no
    #      lane reduce.  cand_ref row n of batch j pairs with user j (the
    #      wrapper rearranged candidates to reproduce torch's pairing). ----
    cand = cand_ref[...]                                 # (B, K*P1, E)
    out_ref[...] = _bmm('bue,bne->bun', user.reshape(B, 1, E), cand)  # (B,1,K*P1)


def init_params(key, num_animes, embed_dim, num_heads, hidden_dim, num_layers):
    """Deterministic synthetic parameters (linear weights stored transposed: (in, out))."""
    E, Hf, L = embed_dim, hidden_dim, num_layers
    ks = jax.random.split(key, 13)
    sc = 0.05

    def rnd(k, shape):
        return jax.random.normal(k, shape, jnp.float32) * sc

    return dict(
        embedding=rnd(ks[0], (num_animes + 1, E)),
        wq_t=rnd(ks[1], (L, E, E)), bq=rnd(ks[2], (L, E)),
        wk_t=rnd(ks[3], (L, E, E)), bk=rnd(ks[4], (L, E)),
        wv_t=rnd(ks[5], (L, E, E)), bv=rnd(ks[6], (L, E)),
        wo_t=rnd(ks[7], (L, E, E)), bo=rnd(ks[8], (L, E)),
        w1_t=rnd(ks[9], (L, E, Hf)), b1=rnd(ks[10], (L, Hf)),
        w2_t=rnd(ks[11], (L, Hf, E)), b2=rnd(ks[12], (L, E)),
        ln1w=jnp.ones((L, E), jnp.float32), ln1b=jnp.zeros((L, E), jnp.float32),
        ln2w=jnp.ones((L, E), jnp.float32), ln2b=jnp.zeros((L, E), jnp.float32),
    )


def ptum_forward(params, behavior_sequences, candidate_sets, padding_mask, *,
                 num_heads):
    B, S = behavior_sequences.shape
    emb = params["embedding"]
    E = emb.shape[1]
    L = params["wq_t"].shape[0]
    H = num_heads
    Dh = E // H
    scale = 1.0 / (Dh ** 0.5)

    # ---- wrapper glue: embedding gathers, masks, weight re-layouts (free) ----
    x = jnp.take(emb, behavior_sequences, axis=0).astype(jnp.float32)   # (B,S,E)
    mask_bias = jnp.where(padding_mask, 0.0, -1e30).astype(jnp.float32)  # (B,S)
    mask_bias_hb = jnp.tile(mask_bias[:, None, :], (H, 1, 1))            # (H*B,1,S)
    mask_f = padding_mask.astype(jnp.float32)[:, :, None]                # (B,S,1)

    if candidate_sets.ndim == 2:
        candidate_sets = candidate_sets[:, None, :]
    Bc, K, P1 = candidate_sets.shape
    cand_flat = jnp.take(emb, candidate_sets.reshape(Bc * K, P1),
                         axis=0).astype(jnp.float32)                     # (B*K,P1,E)
    # torch pairing: flat candidate row i is scored against user (i % B).
    # Rearrange so kernel-batch j holds exactly the rows paired with user j.
    cand_r = (cand_flat.reshape(K, Bc, P1, E)
              .transpose(1, 0, 2, 3)
              .reshape(Bc, K * P1, E))                                   # (B,K*P1,E)

    # Per-head weight layouts; 1/sqrt(Dh) folded into the Q projection.
    def heads_in(w):      # (L,E,E) -> (L,H,E,Dh)
        return w.reshape(L, E, H, Dh).transpose(0, 2, 1, 3)

    def heads_bias(b):    # (L,E)  -> (L,H,1,Dh)
        return b.reshape(L, H, 1, Dh)

    wq = heads_in(params["wq_t"]) * scale
    bq = heads_bias(params["bq"]) * scale
    wk = heads_in(params["wk_t"]);  bk = heads_bias(params["bk"])
    wv = heads_in(params["wv_t"]);  bv = heads_bias(params["bv"])
    wo = params["wo_t"].reshape(L, H, Dh, E)
    bo = params["bo"].reshape(L, 1, E)
    w1 = params["w1_t"];            b1 = params["b1"].reshape(L, 1, -1)
    w2 = params["w2_t"];            b2 = params["b2"].reshape(L, 1, E)
    ln1w = params["ln1w"].reshape(L, 1, E); ln1b = params["ln1b"].reshape(L, 1, E)
    ln2w = params["ln2w"].reshape(L, 1, E); ln2b = params["ln2b"].reshape(L, 1, E)

    def full(arr):
        nd = arr.ndim
        return pl.BlockSpec(arr.shape, lambda i, _nd=nd: (0,) * _nd)

    kern = functools.partial(_ptum_kernel, L, H)
    inputs = (x, mask_bias_hb, mask_f, cand_r,
              wq, bq, wk, bk, wv, bv, wo, bo,
              w1, b1, w2, b2, ln1w, ln1b, ln2w, ln2b)

    out = pl.pallas_call(
        kern,
        out_shape=jax.ShapeDtypeStruct((Bc, 1, K * P1), jnp.float32),
        grid=(1,),
        in_specs=[full(a) for a in inputs],
        out_specs=pl.BlockSpec((Bc, 1, K * P1), lambda i: (0, 0, 0)),
        compiler_params=pltpu.CompilerParams(dimension_semantics=("arbitrary",)),
    )(*inputs)

    # undo the wrapper-side rearrangement: out[j, 0, g*P1+p] -> scores_flat[g*B+j, p]
    scores_flat = jnp.transpose(out.reshape(Bc, K, P1), (1, 0, 2)).reshape(Bc * K, P1)
    return scores_flat.reshape(Bc, K, P1)


def ptum_reference(params, behavior_sequences, candidate_sets, padding_mask, *,
                   num_heads):
    """Pure-JAX reference of the same forward pass (for correctness check)."""
    emb = params["embedding"]
    x = jnp.take(emb, behavior_sequences, axis=0)
    B, S, E = x.shape
    H = num_heads
    Dh = E // H
    L = params["wq_t"].shape[0]
    bias = jnp.where(padding_mask, 0.0, -1e30)[:, None, :]

    def ln(v, w, b):
        mu = v.mean(-1, keepdims=True)
        var = ((v - mu) ** 2).mean(-1, keepdims=True)
        return (v - mu) * jax.lax.rsqrt(var + 1e-5) * w + b

    h = x
    for l in range(L):
        q = h @ params["wq_t"][l] + params["bq"][l]
        k = h @ params["wk_t"][l] + params["bk"][l]
        v = h @ params["wv_t"][l] + params["bv"][l]
        ctxs = []
        for hh in range(H):
            sl = slice(hh * Dh, (hh + 1) * Dh)
            s = jnp.einsum('bqd,bkd->bqk', q[..., sl], k[..., sl]) / (Dh ** 0.5)
            p = jax.nn.softmax(s + bias, axis=-1)
            ctxs.append(jnp.einsum('bqk,bkd->bqd', p, v[..., sl]))
        attn = jnp.concatenate(ctxs, -1) @ params["wo_t"][l] + params["bo"][l]
        h1 = ln(h + attn, params["ln1w"][l], params["ln1b"][l])
        z = jnp.maximum(h1 @ params["w1_t"][l] + params["b1"][l], 0.0)
        f = z @ params["w2_t"][l] + params["b2"][l]
        h = ln(h1 + f, params["ln2w"][l], params["ln2b"][l])

    mf = padding_mask.astype(jnp.float32)[..., None]
    user = (h * mf).sum(1) / mf.sum(1)
    if candidate_sets.ndim == 2:
        candidate_sets = candidate_sets[:, None, :]
    Bc, K, P1 = candidate_sets.shape
    cand = jnp.take(emb, candidate_sets.reshape(Bc * K, P1), axis=0)
    users_rep = jnp.tile(user, (K, 1))
    scores = jnp.einsum('ipe,ie->ip', cand, users_rep)
    return scores.reshape(Bc, K, P1)


if __name__ == "__main__":
    # Model hyper-parameters (mirror the torch __init__ arguments).
    num_animes, embed_dim, num_heads = 50, 32, 4
    hidden_dim, num_layers, dropout = 64, 2, 0.1  # dropout: identity in eval
    B, S, K, P1 = 2, 8, 2, 4

    key = jax.random.PRNGKey(0)
    k_beh, k_cand, k_param = jax.random.split(key, 3)

    behavior_sequences = jax.random.randint(k_beh, (B, S), 1, num_animes + 1)
    candidate_sets = jax.random.randint(k_cand, (B, K, P1), 1, num_animes + 1)
    # True == valid (non-padded) position, same convention as the torch module.
    lengths = jnp.array([6, 8])
    padding_mask = jnp.arange(S)[None, :] < lengths[:, None]

    params = init_params(k_param, num_animes, embed_dim, num_heads,
                         hidden_dim, num_layers)

    fwd = jax.jit(functools.partial(ptum_forward, num_heads=num_heads))
    scores = fwd(params, behavior_sequences, candidate_sets, padding_mask)
    jax.block_until_ready(scores)

    ref = ptum_reference(params, behavior_sequences, candidate_sets,
                         padding_mask, num_heads=num_heads)
    assert scores.shape == (B, K, P1)
    assert bool(jnp.all(jnp.isfinite(scores)))
    # loose tolerance: kernel uses EUP approx-reciprocal in the softmax
    assert bool(jnp.allclose(scores, ref, atol=1e-2, rtol=1e-2)), \
        float(jnp.max(jnp.abs(scores - ref)))
    print("KERNEL_OK")
</pallas_src>

<mosaic_0001>
module attributes {stable_mosaic.version = 11 : i64} {
  func.func @_ptum_kernel(%arg0: i32, %arg1: memref<2x8x32xf32, #tpu.memory_space<vmem>>, %arg2: memref<8x1x8xf32, #tpu.memory_space<vmem>>, %arg3: memref<2x8x1xf32, #tpu.memory_space<vmem>>, %arg4: memref<2x8x32xf32, #tpu.memory_space<vmem>>, %arg5: memref<2x4x32x8xf32, #tpu.memory_space<vmem>>, %arg6: memref<2x4x1x8xf32, #tpu.memory_space<vmem>>, %arg7: memref<2x4x32x8xf32, #tpu.memory_space<vmem>>, %arg8: memref<2x4x1x8xf32, #tpu.memory_space<vmem>>, %arg9: memref<2x4x32x8xf32, #tpu.memory_space<vmem>>, %arg10: memref<2x4x1x8xf32, #tpu.memory_space<vmem>>, %arg11: memref<2x4x8x32xf32, #tpu.memory_space<vmem>>, %arg12: memref<2x1x32xf32, #tpu.memory_space<vmem>>, %arg13: memref<2x32x64xf32, #tpu.memory_space<vmem>>, %arg14: memref<2x1x64xf32, #tpu.memory_space<vmem>>, %arg15: memref<2x64x32xf32, #tpu.memory_space<vmem>>, %arg16: memref<2x1x32xf32, #tpu.memory_space<vmem>>, %arg17: memref<2x1x32xf32, #tpu.memory_space<vmem>>, %arg18: memref<2x1x32xf32, #tpu.memory_space<vmem>>, %arg19: memref<2x1x32xf32, #tpu.memory_space<vmem>>, %arg20: memref<2x1x32xf32, #tpu.memory_space<vmem>>, %arg21: memref<2x1x8xf32, #tpu.memory_space<vmem>>) attributes {dimension_semantics = [#tpu.dimension_semantics<arbitrary>], iteration_bounds = array<i64: 1>, scalar_prefetch = 0 : i64, scratch_operands = 0 : i64, tpu.core_type = #tpu.core_type<tc>, window_params = [{pipeline_mode = #tpu.pipeline_mode<synchronous>, transform_indices = @transform_0, window_bounds = array<i64: 2, 8, 32>}, {pipeline_mode = #tpu.pipeline_mode<synchronous>, transform_indices = @transform_1, window_bounds = array<i64: 8, 1, 8>}, {pipeline_mode = #tpu.pipeline_mode<synchronous>, transform_indices = @transform_2, window_bounds = array<i64: 2, 8, 1>}, {pipeline_mode = #tpu.pipeline_mode<synchronous>, transform_indices = @transform_3, window_bounds = array<i64: 2, 8, 32>}, {pipeline_mode = #tpu.pipeline_mode<synchronous>, transform_indices = @transform_4, window_bounds = array<i64: 2, 4, 32, 8>}, {pipeline_mode = #tpu.pipeline_mode<synchronous>, transform_indices = @transform_5, window_bounds = array<i64: 2, 4, 1, 8>}, {pipeline_mode = #tpu.pipeline_mode<synchronous>, transform_indices = @transform_6, window_bounds = array<i64: 2, 4, 32, 8>}, {pipeline_mode = #tpu.pipeline_mode<synchronous>, transform_indices = @transform_7, window_bounds = array<i64: 2, 4, 1, 8>}, {pipeline_mode = #tpu.pipeline_mode<synchronous>, transform_indices = @transform_8, window_bounds = array<i64: 2, 4, 32, 8>}, {pipeline_mode = #tpu.pipeline_mode<synchronous>, transform_indices = @transform_9, window_bounds = array<i64: 2, 4, 1, 8>}, {pipeline_mode = #tpu.pipeline_mode<synchronous>, transform_indices = @transform_10, window_bounds = array<i64: 2, 4, 8, 32>}, {pipeline_mode = #tpu.pipeline_mode<synchronous>, transform_indices = @transform_11, window_bounds = array<i64: 2, 1, 32>}, {pipeline_mode = #tpu.pipeline_mode<synchronous>, transform_indices = @transform_12, window_bounds = array<i64: 2, 32, 64>}, {pipeline_mode = #tpu.pipeline_mode<synchronous>, transform_indices = @transform_13, window_bounds = array<i64: 2, 1, 64>}, {pipeline_mode = #tpu.pipeline_mode<synchronous>, transform_indices = @transform_14, window_bounds = array<i64: 2, 64, 32>}, {pipeline_mode = #tpu.pipeline_mode<synchronous>, transform_indices = @transform_15, window_bounds = array<i64: 2, 1, 32>}, {pipeline_mode = #tpu.pipeline_mode<synchronous>, transform_indices = @transform_16, window_bounds = array<i64: 2, 1, 32>}, {pipeline_mode = #tpu.pipeline_mode<synchronous>, transform_indices = @transform_17, window_bounds = array<i64: 2, 1, 32>}, {pipeline_mode = #tpu.pipeline_mode<synchronous>, transform_indices = @transform_18, window_bounds = array<i64: 2, 1, 32>}, {pipeline_mode = #tpu.pipeline_mode<synchronous>, transform_indices = @transform_19, window_bounds = array<i64: 2, 1, 32>}, {pipeline_mode = #tpu.pipeline_mode<synchronous>, transform_indices = @transform_20, window_bounds = array<i64: 2, 1, 8>}]} {
    %c0 = arith.constant 0 : index
    %c0_0 = arith.constant 0 : index
    %c0_1 = arith.constant 0 : index
    %0 = vector.load %arg1[%c0, %c0_0, %c0_1] : memref<2x8x32xf32, #tpu.memory_space<vmem>>, vector<2x8x32xf32>
    %1 = vector.shape_cast %0 : vector<2x8x32xf32> to vector<16x32xf32>
    %c0_2 = arith.constant 0 : index
    %c0_3 = arith.constant 0 : index
    %c0_4 = arith.constant 0 : index
    %2 = vector.load %arg2[%c0_2, %c0_3, %c0_4] : memref<8x1x8xf32, #tpu.memory_space<vmem>>, vector<8x1x8xf32>
    %3 = vector.shape_cast %2 : vector<8x1x8xf32> to vector<8x1x8xf32>
    %4 = vector.broadcast %3 : vector<8x1x8xf32> to vector<8x8x8xf32>
    %c0_5 = arith.constant 0 : index
    %c0_6 = arith.constant 0 : index
    %c0_7 = arith.constant 0 : index
    %c0_8 = arith.constant 0 : index
    %5 = vector.load %arg5[%c0_5, %c0_6, %c0_7, %c0_8] : memref<2x4x32x8xf32, #tpu.memory_space<vmem>>, vector<1x1x32x8xf32>
    %6 = vector.shape_cast %5 : vector<1x1x32x8xf32> to vector<32x8xf32>
    %cst = arith.constant dense<0.000000e+00> : vector<16x8xf32>
    %7 = tpu.matmul %1, %6, %cst {dimension_numbers = #tpu.dot_dimension_numbers<[1], [0], [0], [1], [0, 0, 1, 1], [], []>} : vector<16x32xf32>, vector<32x8xf32>, vector<16x8xf32> -> vector<16x8xf32>
    %c0_9 = arith.constant 0 : index
    %c0_10 = arith.constant 0 : index
    %c0_11 = arith.constant 0 : index
    %c0_12 = arith.constant 0 : index
    %8 = vector.load %arg6[%c0_9, %c0_10, %c0_11, %c0_12] : memref<2x4x1x8xf32, #tpu.memory_space<vmem>>, vector<1x1x1x8xf32>
    %9 = vector.shape_cast %8 : vector<1x1x1x8xf32> to vector<1x8xf32>
    %10 = vector.broadcast %9 : vector<1x8xf32> to vector<16x8xf32>
    %11 = arith.addf %7, %10 : vector<16x8xf32>
    %c0_13 = arith.constant 0 : index
    %c1 = arith.constant 1 : index
    %c0_14 = arith.constant 0 : index
    %c0_15 = arith.constant 0 : index
    %12 = vector.load %arg5[%c0_13, %c1, %c0_14, %c0_15] : memref<2x4x32x8xf32, #tpu.memory_space<vmem>>, vector<1x1x32x8xf32>
    %13 = vector.shape_cast %12 : vector<1x1x32x8xf32> to vector<32x8xf32>
    %cst_16 = arith.constant dense<0.000000e+00> : vector<16x8xf32>
    %14 = tpu.matmul %1, %13, %cst_16 {dimension_numbers = #tpu.dot_dimension_numbers<[1], [0], [0], [1], [0, 0, 1, 1], [], []>} : vector<16x32xf32>, vector<32x8xf32>, vector<16x8xf32> -> vector<16x8xf32>
    %c0_17 = arith.constant 0 : index
    %c1_18 = arith.constant 1 : index
    %c0_19 = arith.constant 0 : index
    %c0_20 = arith.constant 0 : index
    %15 = vector.load %arg6[%c0_17, %c1_18, %c0_19, %c0_20] : memref<2x4x1x8xf32, #tpu.memory_space<vmem>>, vector<1x1x1x8xf32>
    %16 = vector.shape_cast %15 : vector<1x1x1x8xf32> to vector<1x8xf32>
    %17 = vector.broadcast %16 : vector<1x8xf32> to vector<16x8xf32>
    %18 = arith.addf %14, %17 : vector<16x8xf32>
    %c0_21 = arith.constant 0 : index
    %c2 = arith.constant 2 : index
    %c0_22 = arith.constant 0 : index
    %c0_23 = arith.constant 0 : index
    %19 = vector.load %arg5[%c0_21, %c2, %c0_22, %c0_23] : memref<2x4x32x8xf32, #tpu.memory_space<vmem>>, vector<1x1x32x8xf32>
    %20 = vector.shape_cast %19 : vector<1x1x32x8xf32> to vector<32x8xf32>
    %cst_24 = arith.constant dense<0.000000e+00> : vector<16x8xf32>
    %21 = tpu.matmul %1, %20, %cst_24 {dimension_numbers = #tpu.dot_dimension_numbers<[1], [0], [0], [1], [0, 0, 1, 1], [], []>} : vector<16x32xf32>, vector<32x8xf32>, vector<16x8xf32> -> vector<16x8xf32>
    %c0_25 = arith.constant 0 : index
    %c2_26 = arith.constant 2 : index
    %c0_27 = arith.constant 0 : index
    %c0_28 = arith.constant 0 : index
    %22 = vector.load %arg6[%c0_25, %c2_26, %c0_27, %c0_28] : memref<2x4x1x8xf32, #tpu.memory_space<vmem>>, vector<1x1x1x8xf32>
    %23 = vector.shape_cast %22 : vector<1x1x1x8xf32> to vector<1x8xf32>
    %24 = vector.broadcast %23 : vector<1x8xf32> to vector<16x8xf32>
    %25 = arith.addf %21, %24 : vector<16x8xf32>
    %c0_29 = arith.constant 0 : index
    %c3 = arith.constant 3 : index
    %c0_30 = arith.constant 0 : index
    %c0_31 = arith.constant 0 : index
    %26 = vector.load %arg5[%c0_29, %c3, %c0_30, %c0_31] : memref<2x4x32x8xf32, #tpu.memory_space<vmem>>, vector<1x1x32x8xf32>
    %27 = vector.shape_cast %26 : vector<1x1x32x8xf32> to vector<32x8xf32>
    %cst_32 = arith.constant dense<0.000000e+00> : vector<16x8xf32>
    %28 = tpu.matmul %1, %27, %cst_32 {dimension_numbers = #tpu.dot_dimension_numbers<[1], [0], [0], [1], [0, 0, 1, 1], [], []>} : vector<16x32xf32>, vector<32x8xf32>, vector<16x8xf32> -> vector<16x8xf32>
    %c0_33 = arith.constant 0 : index
    %c3_34 = arith.constant 3 : index
    %c0_35 = arith.constant 0 : index
    %c0_36 = arith.constant 0 : index
    %29 = vector.load %arg6[%c0_33, %c3_34, %c0_35, %c0_36] : memref<2x4x1x8xf32, #tpu.memory_space<vmem>>, vector<1x1x1x8xf32>
    %30 = vector.shape_cast %29 : vector<1x1x1x8xf32> to vector<1x8xf32>
    %31 = vector.broadcast %30 : vector<1x8xf32> to vector<16x8xf32>
    %32 = arith.addf %28, %31 : vector<16x8xf32>
    %33 = tpu.concatenate %11, %18, %25, %32 in 0 : vector<16x8xf32>, vector<16x8xf32>, vector<16x8xf32>, vector<16x8xf32> -> vector<64x8xf32>
    %34 = vector.shape_cast %33 : vector<64x8xf32> to vector<8x8x8xf32>
    %c0_37 = arith.constant 0 : index
    %c0_38 = arith.constant 0 : index
    %c0_39 = arith.constant 0 : index
    %c0_40 = arith.constant 0 : index
    %35 = vector.load %arg7[%c0_37, %c0_38, %c0_39, %c0_40] : memref<2x4x32x8xf32, #tpu.memory_space<vmem>>, vector<1x1x32x8xf32>
    %36 = vector.shape_cast %35 : vector<1x1x32x8xf32> to vector<32x8xf32>
    %cst_41 = arith.constant dense<0.000000e+00> : vector<16x8xf32>
    %37 = tpu.matmul %1, %36, %cst_41 {dimension_numbers = #tpu.dot_dimension_numbers<[1], [0], [0], [1], [0, 0, 1, 1], [], []>} : vector<16x32xf32>, vector<32x8xf32>, vector<16x8xf32> -> vector<16x8xf32>
    %c0_42 = arith.constant 0 : index
    %c0_43 = arith.constant 0 : index
    %c0_44 = arith.constant 0 : index
    %c0_45 = arith.constant 0 : index
    %38 = vector.load %arg8[%c0_42, %c0_43, %c0_44, %c0_45] : memref<2x4x1x8xf32, #tpu.memory_space<vmem>>, vector<1x1x1x8xf32>
    %39 = vector.shape_cast %38 : vector<1x1x1x8xf32> to vector<1x8xf32>
    %40 = vector.broadcast %39 : vector<1x8xf32> to vector<16x8xf32>
    %41 = arith.addf %37, %40 : vector<16x8xf32>
    %c0_46 = arith.constant 0 : index
    %c1_47 = arith.constant 1 : index
    %c0_48 = arith.constant 0 : index
    %c0_49 = arith.constant 0 : index
    %42 = vector.load %arg7[%c0_46, %c1_47, %c0_48, %c0_49] : memref<2x4x32x8xf32, #tpu.memory_space<vmem>>, vector<1x1x32x8xf32>
    %43 = vector.shape_cast %42 : vector<1x1x32x8xf32> to vector<32x8xf32>
    %cst_50 = arith.constant dense<0.000000e+00> : vector<16x8xf32>
    %44 = tpu.matmul %1, %43, %cst_50 {dimension_numbers = #tpu.dot_dimension_numbers<[1], [0], [0], [1], [0, 0, 1, 1], [], []>} : vector<16x32xf32>, vector<32x8xf32>, vector<16x8xf32> -> vector<16x8xf32>
    %c0_51 = arith.constant 0 : index
    %c1_52 = arith.constant 1 : index
    %c0_53 = arith.constant 0 : index
    %c0_54 = arith.constant 0 : index
    %45 = vector.load %arg8[%c0_51, %c1_52, %c0_53, %c0_54] : memref<2x4x1x8xf32, #tpu.memory_space<vmem>>, vector<1x1x1x8xf32>
    %46 = vector.shape_cast %45 : vector<1x1x1x8xf32> to vector<1x8xf32>
    %47 = vector.broadcast %46 : vector<1x8xf32> to vector<16x8xf32>
    %48 = arith.addf %44, %47 : vector<16x8xf32>
    %c0_55 = arith.constant 0 : index
    %c2_56 = arith.constant 2 : index
    %c0_57 = arith.constant 0 : index
    %c0_58 = arith.constant 0 : index
    %49 = vector.load %arg7[%c0_55, %c2_56, %c0_57, %c0_58] : memref<2x4x32x8xf32, #tpu.memory_space<vmem>>, vector<1x1x32x8xf32>
    %50 = vector.shape_cast %49 : vector<1x1x32x8xf32> to vector<32x8xf32>
    %cst_59 = arith.constant dense<0.000000e+00> : vector<16x8xf32>
    %51 = tpu.matmul %1, %50, %cst_59 {dimension_numbers = #tpu.dot_dimension_numbers<[1], [0], [0], [1], [0, 0, 1, 1], [], []>} : vector<16x32xf32>, vector<32x8xf32>, vector<16x8xf32> -> vector<16x8xf32>
    %c0_60 = arith.constant 0 : index
    %c2_61 = arith.constant 2 : index
    %c0_62 = arith.constant 0 : index
    %c0_63 = arith.constant 0 : index
    %52 = vector.load %arg8[%c0_60, %c2_61, %c0_62, %c0_63] : memref<2x4x1x8xf32, #tpu.memory_space<vmem>>, vector<1x1x1x8xf32>
    %53 = vector.shape_cast %52 : vector<1x1x1x8xf32> to vector<1x8xf32>
    %54 = vector.broadcast %53 : vector<1x8xf32> to vector<16x8xf32>
    %55 = arith.addf %51, %54 : vector<16x8xf32>
    %c0_64 = arith.constant 0 : index
    %c3_65 = arith.constant 3 : index
    %c0_66 = arith.constant 0 : index
    %c0_67 = arith.constant 0 : index
    %56 = vector.load %arg7[%c0_64, %c3_65, %c0_66, %c0_67] : memref<2x4x32x8xf32, #tpu.memory_space<vmem>>, vector<1x1x32x8xf32>
    %57 = vector.shape_cast %56 : vector<1x1x32x8xf32> to vector<32x8xf32>
    %cst_68 = arith.constant dense<0.000000e+00> : vector<16x8xf32>
    %58 = tpu.matmul %1, %57, %cst_68 {dimension_numbers = #tpu.dot_dimension_numbers<[1], [0], [0], [1], [0, 0, 1, 1], [], []>} : vector<16x32xf32>, vector<32x8xf32>, vector<16x8xf32> -> vector<16x8xf32>
    %c0_69 = arith.constant 0 : index
    %c3_70 = arith.constant 3 : index
    %c0_71 = arith.constant 0 : index
    %c0_72 = arith.constant 0 : index
    %59 = vector.load %arg8[%c0_69, %c3_70, %c0_71, %c0_72] : memref<2x4x1x8xf32, #tpu.memory_space<vmem>>, vector<1x1x1x8xf32>
    %60 = vector.shape_cast %59 : vector<1x1x1x8xf32> to vector<1x8xf32>
    %61 = vector.broadcast %60 : vector<1x8xf32> to vector<16x8xf32>
    %62 = arith.addf %58, %61 : vector<16x8xf32>
    %63 = tpu.concatenate %41, %48, %55, %62 in 0 : vector<16x8xf32>, vector<16x8xf32>, vector<16x8xf32>, vector<16x8xf32> -> vector<64x8xf32>
    %64 = vector.shape_cast %63 : vector<64x8xf32> to vector<8x8x8xf32>
    %c0_73 = arith.constant 0 : index
    %c0_74 = arith.constant 0 : index
    %c0_75 = arith.constant 0 : index
    %c0_76 = arith.constant 0 : index
    %65 = vector.load %arg9[%c0_73, %c0_74, %c0_75, %c0_76] : memref<2x4x32x8xf32, #tpu.memory_space<vmem>>, vector<1x1x32x8xf32>
    %66 = vector.shape_cast %65 : vector<1x1x32x8xf32> to vector<32x8xf32>
    %cst_77 = arith.constant dense<0.000000e+00> : vector<16x8xf32>
    %67 = tpu.matmul %1, %66, %cst_77 {dimension_numbers = #tpu.dot_dimension_numbers<[1], [0], [0], [1], [0, 0, 1, 1], [], []>} : vector<16x32xf32>, vector<32x8xf32>, vector<16x8xf32> -> vector<16x8xf32>
    %c0_78 = arith.constant 0 : index
    %c0_79 = arith.constant 0 : index
    %c0_80 = arith.constant 0 : index
    %c0_81 = arith.constant 0 : index
    %68 = vector.load %arg10[%c0_78, %c0_79, %c0_80, %c0_81] : memref<2x4x1x8xf32, #tpu.memory_space<vmem>>, vector<1x1x1x8xf32>
    %69 = vector.shape_cast %68 : vector<1x1x1x8xf32> to vector<1x8xf32>
    %70 = vector.broadcast %69 : vector<1x8xf32> to vector<16x8xf32>
    %71 = arith.addf %67, %70 : vector<16x8xf32>
    %c0_82 = arith.constant 0 : index
    %c1_83 = arith.constant 1 : index
    %c0_84 = arith.constant 0 : index
    %c0_85 = arith.constant 0 : index
    %72 = vector.load %arg9[%c0_82, %c1_83, %c0_84, %c0_85] : memref<2x4x32x8xf32, #tpu.memory_space<vmem>>, vector<1x1x32x8xf32>
    %73 = vector.shape_cast %72 : vector<1x1x32x8xf32> to vector<32x8xf32>
    %cst_86 = arith.constant dense<0.000000e+00> : vector<16x8xf32>
    %74 = tpu.matmul %1, %73, %cst_86 {dimension_numbers = #tpu.dot_dimension_numbers<[1], [0], [0], [1], [0, 0, 1, 1], [], []>} : vector<16x32xf32>, vector<32x8xf32>, vector<16x8xf32> -> vector<16x8xf32>
    %c0_87 = arith.constant 0 : index
    %c1_88 = arith.constant 1 : index
    %c0_89 = arith.constant 0 : index
    %c0_90 = arith.constant 0 : index
    %75 = vector.load %arg10[%c0_87, %c1_88, %c0_89, %c0_90] : memref<2x4x1x8xf32, #tpu.memory_space<vmem>>, vector<1x1x1x8xf32>
    %76 = vector.shape_cast %75 : vector<1x1x1x8xf32> to vector<1x8xf32>
    %77 = vector.broadcast %76 : vector<1x8xf32> to vector<16x8xf32>
    %78 = arith.addf %74, %77 : vector<16x8xf32>
    %c0_91 = arith.constant 0 : index
    %c2_92 = arith.constant 2 : index
    %c0_93 = arith.constant 0 : index
    %c0_94 = arith.constant 0 : index
    %79 = vector.load %arg9[%c0_91, %c2_92, %c0_93, %c0_94] : memref<2x4x32x8xf32, #tpu.memory_space<vmem>>, vector<1x1x32x8xf32>
    %80 = vector.shape_cast %79 : vector<1x1x32x8xf32> to vector<32x8xf32>
    %cst_95 = arith.constant dense<0.000000e+00> : vector<16x8xf32>
    %81 = tpu.matmul %1, %80, %cst_95 {dimension_numbers = #tpu.dot_dimension_numbers<[1], [0], [0], [1], [0, 0, 1, 1], [], []>} : vector<16x32xf32>, vector<32x8xf32>, vector<16x8xf32> -> vector<16x8xf32>
    %c0_96 = arith.constant 0 : index
    %c2_97 = arith.constant 2 : index
    %c0_98 = arith.constant 0 : index
    %c0_99 = arith.constant 0 : index
    %82 = vector.load %arg10[%c0_96, %c2_97, %c0_98, %c0_99] : memref<2x4x1x8xf32, #tpu.memory_space<vmem>>, vector<1x1x1x8xf32>
    %83 = vector.shape_cast %82 : vector<1x1x1x8xf32> to vector<1x8xf32>
    %84 = vector.broadcast %83 : vector<1x8xf32> to vector<16x8xf32>
    %85 = arith.addf %81, %84 : vector<16x8xf32>
    %c0_100 = arith.constant 0 : index
    %c3_101 = arith.constant 3 : index
    %c0_102 = arith.constant 0 : index
    %c0_103 = arith.constant 0 : index
    %86 = vector.load %arg9[%c0_100, %c3_101, %c0_102, %c0_103] : memref<2x4x32x8xf32, #tpu.memory_space<vmem>>, vector<1x1x32x8xf32>
    %87 = vector.shape_cast %86 : vector<1x1x32x8xf32> to vector<32x8xf32>
    %cst_104 = arith.constant dense<0.000000e+00> : vector<16x8xf32>
    %88 = tpu.matmul %1, %87, %cst_104 {dimension_numbers = #tpu.dot_dimension_numbers<[1], [0], [0], [1], [0, 0, 1, 1], [], []>} : vector<16x32xf32>, vector<32x8xf32>, vector<16x8xf32> -> vector<16x8xf32>
    %c0_105 = arith.constant 0 : index
    %c3_106 = arith.constant 3 : index
    %c0_107 = arith.constant 0 : index
    %c0_108 = arith.constant 0 : index
    %89 = vector.load %arg10[%c0_105, %c3_106, %c0_107, %c0_108] : memref<2x4x1x8xf32, #tpu.memory_space<vmem>>, vector<1x1x1x8xf32>
    %90 = vector.shape_cast %89 : vector<1x1x1x8xf32> to vector<1x8xf32>
    %91 = vector.broadcast %90 : vector<1x8xf32> to vector<16x8xf32>
    %92 = arith.addf %88, %91 : vector<16x8xf32>
    %93 = tpu.concatenate %71, %78, %85, %92 in 0 : vector<16x8xf32>, vector<16x8xf32>, vector<16x8xf32>, vector<16x8xf32> -> vector<64x8xf32>
    %94 = vector.shape_cast %93 : vector<64x8xf32> to vector<8x8x8xf32>
    "tpu.trace_start"() <{level = 10 : i32, message = "nqd,nkd->nqk"}> : () -> ()
    %cst_109 = arith.constant dense<0.000000e+00> : vector<8x8x8xf32>
    %95 = tpu.matmul %34, %64, %cst_109 {dimension_numbers = #tpu.dot_dimension_numbers<[2], [2], [1], [1], [0, 0, 0, 1, 1, 1], [0], [0]>} : vector<8x8x8xf32>, vector<8x8x8xf32>, vector<8x8x8xf32> -> vector<8x8x8xf32>
    "tpu.trace_stop"() : () -> ()
    %96 = arith.addf %95, %4 : vector<8x8x8xf32>
    %cst_110 = arith.constant dense<0xFF800000> : vector<8x8xf32>
    %97 = vector.multi_reduction <maximumf>, %96, %cst_110 [2] : vector<8x8x8xf32> to vector<8x8xf32>
    %98 = vector.shape_cast %97 : vector<8x8xf32> to vector<8x8x1xf32>
    %99 = vector.broadcast %98 : vector<8x8x1xf32> to vector<8x8x8xf32>
    %100 = arith.subf %96, %99 : vector<8x8x8xf32>
    %101 = math.exp %100 : vector<8x8x8xf32>
    %cst_111 = arith.constant dense<0.000000e+00> : vector<8x8xf32>
    %102 = vector.multi_reduction <add>, %101, %cst_111 [2] : vector<8x8x8xf32> to vector<8x8xf32>
    %103 = vector.shape_cast %102 : vector<8x8xf32> to vector<8x8x1xf32>
    "tpu.trace_start"() <{level = 10 : i32, message = "nqk,nkd->nqd"}> : () -> ()
    %cst_112 = arith.constant dense<0.000000e+00> : vector<8x8x8xf32>
    %104 = tpu.matmul %101, %94, %cst_112 {dimension_numbers = #tpu.dot_dimension_numbers<[2], [1], [1], [2], [0, 0, 0, 1, 1, 2], [0], [0]>} : vector<8x8x8xf32>, vector<8x8x8xf32>, vector<8x8x8xf32> -> vector<8x8x8xf32>
    "tpu.trace_stop"() : () -> ()
    %105 = tpu.reciprocal %103 {approx = true} : vector<8x8x1xf32> -> vector<8x8x1xf32>
    %106 = vector.broadcast %105 : vector<8x8x1xf32> to vector<8x8x8xf32>
    %107 = arith.mulf %104, %106 : vector<8x8x8xf32>
    %c0_113 = arith.constant 0 : index
    %c0_114 = arith.constant 0 : index
    %c0_115 = arith.constant 0 : index
    %108 = vector.load %arg12[%c0_113, %c0_114, %c0_115] : memref<2x1x32xf32, #tpu.memory_space<vmem>>, vector<1x1x32xf32>
    %109 = vector.shape_cast %108 : vector<1x1x32xf32> to vector<1x32xf32>
    %110 = vector.extract_strided_slice %107 {offsets = [0, 0, 0], sizes = [2, 8, 8], strides = [1, 1, 1]} : vector<8x8x8xf32> to vector<2x8x8xf32>
    %111 = vector.shape_cast %110 : vector<2x8x8xf32> to vector<16x8xf32>
    %c0_116 = arith.constant 0 : index
    %c0_117 = arith.constant 0 : index
    %c0_118 = arith.constant 0 : index
    %c0_119 = arith.constant 0 : index
    %112 = vector.load %arg11[%c0_116, %c0_117, %c0_118, %c0_119] : memref<2x4x8x32xf32, #tpu.memory_space<vmem>>, vector<1x1x8x32xf32>
    %113 = vector.shape_cast %112 : vector<1x1x8x32xf32> to vector<8x32xf32>
    %cst_120 = arith.constant dense<0.000000e+00> : vector<16x32xf32>
    %114 = tpu.matmul %111, %113, %cst_120 {dimension_numbers = #tpu.dot_dimension_numbers<[1], [0], [0], [1], [0, 0, 1, 1], [], []>} : vector<16x8xf32>, vector<8x32xf32>, vector<16x32xf32> -> vector<16x32xf32>
    %115 = vector.broadcast %109 : vector<1x32xf32> to vector<16x32xf32>
    %116 = arith.addf %115, %114 : vector<16x32xf32>
    %117 = vector.extract_strided_slice %107 {offsets = [2, 0, 0], sizes = [2, 8, 8], strides = [1, 1, 1]} : vector<8x8x8xf32> to vector<2x8x8xf32>
    %118 = vector.shape_cast %117 : vector<2x8x8xf32> to vector<16x8xf32>
    %c0_121 = arith.constant 0 : index
    %c1_122 = arith.constant 1 : index
    %c0_123 = arith.constant 0 : index
    %c0_124 = arith.constant 0 : index
    %119 = vector.load %arg11[%c0_121, %c1_122, %c0_123, %c0_124] : memref<2x4x8x32xf32, #tpu.memory_space<vmem>>, vector<1x1x8x32xf32>
    %120 = vector.shape_cast %119 : vector<1x1x8x32xf32> to vector<8x32xf32>
    %cst_125 = arith.constant dense<0.000000e+00> : vector<16x32xf32>
    %121 = tpu.matmul %118, %120, %cst_125 {dimension_numbers = #tpu.dot_dimension_numbers<[1], [0], [0], [1], [0, 0, 1, 1], [], []>} : vector<16x8xf32>, vector<8x32xf32>, vector<16x32xf32> -> vector<16x32xf32>
    %122 = arith.addf %116, %121 : vector<16x32xf32>
    %123 = vector.extract_strided_slice %107 {offsets = [4, 0, 0], sizes = [2, 8, 8], strides = [1, 1, 1]} : vector<8x8x8xf32> to vector<2x8x8xf32>
    %124 = vector.shape_cast %123 : vector<2x8x8xf32> to vector<16x8xf32>
    %c0_126 = arith.constant 0 : index
    %c2_127 = arith.constant 2 : index
    %c0_128 = arith.constant 0 : index
    %c0_129 = arith.constant 0 : index
    %125 = vector.load %arg11[%c0_126, %c2_127, %c0_128, %c0_129] : memref<2x4x8x32xf32, #tpu.memory_space<vmem>>, vector<1x1x8x32xf32>
    %126 = vector.shape_cast %125 : vector<1x1x8x32xf32> to vector<8x32xf32>
    %cst_130 = arith.constant dense<0.000000e+00> : vector<16x32xf32>
    %127 = tpu.matmul %124, %126, %cst_130 {dimension_numbers = #tpu.dot_dimension_numbers<[1], [0], [0], [1], [0, 0, 1, 1], [], []>} : vector<16x8xf32>, vector<8x32xf32>, vector<16x32xf32> -> vector<16x32xf32>
    %128 = arith.addf %122, %127 : vector<16x32xf32>
    %129 = vector.extract_strided_slice %107 {offsets = [6, 0, 0], sizes = [2, 8, 8], strides = [1, 1, 1]} : vector<8x8x8xf32> to vector<2x8x8xf32>
    %130 = vector.shape_cast %129 : vector<2x8x8xf32> to vector<16x8xf32>
    %c0_131 = arith.constant 0 : index
    %c3_132 = arith.constant 3 : index
    %c0_133 = arith.constant 0 : index
    %c0_134 = arith.constant 0 : index
    %131 = vector.load %arg11[%c0_131, %c3_132, %c0_133, %c0_134] : memref<2x4x8x32xf32, #tpu.memory_space<vmem>>, vector<1x1x8x32xf32>
    %132 = vector.shape_cast %131 : vector<1x1x8x32xf32> to vector<8x32xf32>
    %cst_135 = arith.constant dense<0.000000e+00> : vector<16x32xf32>
    %133 = tpu.matmul %130, %132, %cst_135 {dimension_numbers = #tpu.dot_dimension_numbers<[1], [0], [0], [1], [0, 0, 1, 1], [], []>} : vector<16x8xf32>, vector<8x32xf32>, vector<16x32xf32> -> vector<16x32xf32>
    %134 = arith.addf %128, %133 : vector<16x32xf32>
    %135 = arith.addf %1, %134 : vector<16x32xf32>
    %c0_136 = arith.constant 0 : index
    %c0_137 = arith.constant 0 : index
    %c0_138 = arith.constant 0 : index
    %136 = vector.load %arg17[%c0_136, %c0_137, %c0_138] : memref<2x1x32xf32, #tpu.memory_space<vmem>>, vector<1x1x32xf32>
    %137 = vector.shape_cast %136 : vector<1x1x32xf32> to vector<1x32xf32>
    %c0_139 = arith.constant 0 : index
    %c0_140 = arith.constant 0 : index
    %c0_141 = arith.constant 0 : index
    %138 = vector.load %arg18[%c0_139, %c0_140, %c0_141] : memref<2x1x32xf32, #tpu.memory_space<vmem>>, vector<1x1x32xf32>
    %139 = vector.shape_cast %138 : vector<1x1x32xf32> to vector<1x32xf32>
    %cst_142 = arith.constant dense<0.000000e+00> : vector<16xf32>
    %140 = vector.multi_reduction <add>, %135, %cst_142 [1] : vector<16x32xf32> to vector<16xf32>
    %141 = vector.shape_cast %140 : vector<16xf32> to vector<16x1xf32>
    %cst_143 = arith.constant 3.200000e+01 : f32
    %142 = vector.broadcast %cst_143 : f32 to vector<16x1xf32>
    %143 = arith.divf %141, %142 : vector<16x1xf32>
    %144 = vector.broadcast %143 : vector<16x1xf32> to vector<16x32xf32>
    %145 = arith.subf %135, %144 : vector<16x32xf32>
    %146 = vector.broadcast %143 : vector<16x1xf32> to vector<16x32xf32>
    %147 = arith.subf %135, %146 : vector<16x32xf32>
    %148 = arith.mulf %145, %147 : vector<16x32xf32>
    %cst_144 = arith.constant dense<0.000000e+00> : vector<16xf32>
    %149 = vector.multi_reduction <add>, %148, %cst_144 [1] : vector<16x32xf32> to vector<16xf32>
    %150 = vector.shape_cast %149 : vector<16xf32> to vector<16x1xf32>
    %cst_145 = arith.constant 3.200000e+01 : f32
    %151 = vector.broadcast %cst_145 : f32 to vector<16x1xf32>
    %152 = arith.divf %150, %151 : vector<16x1xf32>
    %153 = vector.broadcast %143 : vector<16x1xf32> to vector<16x32xf32>
    %154 = arith.subf %135, %153 : vector<16x32xf32>
    %cst_146 = arith.constant 9.99999974E-6 : f32
    %155 = vector.broadcast %cst_146 : f32 to vector<16x1xf32>
    %156 = arith.addf %152, %155 : vector<16x1xf32>
    %157 = math.rsqrt %156 : vector<16x1xf32>
    %158 = vector.broadcast %157 : vector<16x1xf32> to vector<16x32xf32>
    %159 = arith.mulf %154, %158 : vector<16x32xf32>
    %160 = vector.broadcast %137 : vector<1x32xf32> to vector<16x32xf32>
    %161 = arith.mulf %159, %160 : vector<16x32xf32>
    %162 = vector.broadcast %139 : vector<1x32xf32> to vector<16x32xf32>
    %163 = arith.addf %161, %162 : vector<16x32xf32>
    %c0_147 = arith.constant 0 : index
    %c0_148 = arith.constant 0 : index
    %c0_149 = arith.constant 0 : index
    %164 = vector.load %arg13[%c0_147, %c0_148, %c0_149] : memref<2x32x64xf32, #tpu.memory_space<vmem>>, vector<1x32x64xf32>
    %165 = vector.shape_cast %164 : vector<1x32x64xf32> to vector<32x64xf32>
    %cst_150 = arith.constant dense<0.000000e+00> : vector<16x64xf32>
    %166 = tpu.matmul %163, %165, %cst_150 {dimension_numbers = #tpu.dot_dimension_numbers<[1], [0], [0], [1], [0, 0, 1, 1], [], []>} : vector<16x32xf32>, vector<32x64xf32>, vector<16x64xf32> -> vector<16x64xf32>
    %c0_151 = arith.constant 0 : index
    %c0_152 = arith.constant 0 : index
    %c0_153 = arith.constant 0 : index
    %167 = vector.load %arg14[%c0_151, %c0_152, %c0_153] : memref<2x1x64xf32, #tpu.memory_space<vmem>>, vector<1x1x64xf32>
    %168 = vector.shape_cast %167 : vector<1x1x64xf32> to vector<1x64xf32>
    %169 = vector.broadcast %168 : vector<1x64xf32> to vector<16x64xf32>
    %170 = arith.addf %166, %169 : vector<16x64xf32>
    %cst_154 = arith.constant 0.000000e+00 : f32
    %171 = vector.broadcast %cst_154 : f32 to vector<16x64xf32>
    %172 = arith.maximumf %170, %171 : vector<16x64xf32>
    %c0_155 = arith.constant 0 : index
    %c0_156 = arith.constant 0 : index
    %c0_157 = arith.constant 0 : index
    %173 = vector.load %arg15[%c0_155, %c0_156, %c0_157] : memref<2x64x32xf32, #tpu.memory_space<vmem>>, vector<1x64x32xf32>
    %174 = vector.shape_cast %173 : vector<1x64x32xf32> to vector<64x32xf32>
    %cst_158 = arith.constant dense<0.000000e+00> : vector<16x32xf32>
    %175 = tpu.matmul %172, %174, %cst_158 {dimension_numbers = #tpu.dot_dimension_numbers<[1], [0], [0], [1], [0, 0, 1, 1], [], []>} : vector<16x64xf32>, vector<64x32xf32>, vector<16x32xf32> -> vector<16x32xf32>
    %c0_159 = arith.constant 0 : index
    %c0_160 = arith.constant 0 : index
    %c0_161 = arith.constant 0 : index
    %176 = vector.load %arg16[%c0_159, %c0_160, %c0_161] : memref<2x1x32xf32, #tpu.memory_space<vmem>>, vector<1x1x32xf32>
    %177 = vector.shape_cast %176 : vector<1x1x32xf32> to vector<1x32xf32>
    %178 = vector.broadcast %177 : vector<1x32xf32> to vector<16x32xf32>
    %179 = arith.addf %175, %178 : vector<16x32xf32>
    %180 = arith.addf %163, %179 : vector<16x32xf32>
    %c0_162 = arith.constant 0 : index
    %c0_163 = arith.constant 0 : index
    %c0_164 = arith.constant 0 : index
    %181 = vector.load %arg19[%c0_162, %c0_163, %c0_164] : memref<2x1x32xf32, #tpu.memory_space<vmem>>, vector<1x1x32xf32>
    %182 = vector.shape_cast %181 : vector<1x1x32xf32> to vector<1x32xf32>
    %c0_165 = arith.constant 0 : index
    %c0_166 = arith.constant 0 : index
    %c0_167 = arith.constant 0 : index
    %183 = vector.load %arg20[%c0_165, %c0_166, %c0_167] : memref<2x1x32xf32, #tpu.memory_space<vmem>>, vector<1x1x32xf32>
    %184 = vector.shape_cast %183 : vector<1x1x32xf32> to vector<1x32xf32>
    %cst_168 = arith.constant dense<0.000000e+00> : vector<16xf32>
    %185 = vector.multi_reduction <add>, %180, %cst_168 [1] : vector<16x32xf32> to vector<16xf32>
    %186 = vector.shape_cast %185 : vector<16xf32> to vector<16x1xf32>
    %cst_169 = arith.constant 3.200000e+01 : f32
    %187 = vector.broadcast %cst_169 : f32 to vector<16x1xf32>
    %188 = arith.divf %186, %187 : vector<16x1xf32>
    %189 = vector.broadcast %188 : vector<16x1xf32> to vector<16x32xf32>
    %190 = arith.subf %180, %189 : vector<16x32xf32>
    %191 = vector.broadcast %188 : vector<16x1xf32> to vector<16x32xf32>
    %192 = arith.subf %180, %191 : vector<16x32xf32>
    %193 = arith.mulf %190, %192 : vector<16x32xf32>
    %cst_170 = arith.constant dense<0.000000e+00> : vector<16xf32>
    %194 = vector.multi_reduction <add>, %193, %cst_170 [1] : vector<16x32xf32> to vector<16xf32>
    %195 = vector.shape_cast %194 : vector<16xf32> to vector<16x1xf32>
    %cst_171 = arith.constant 3.200000e+01 : f32
    %196 = vector.broadcast %cst_171 : f32 to vector<16x1xf32>
    %197 = arith.divf %195, %196 : vector<16x1xf32>
    %198 = vector.broadcast %188 : vector<16x1xf32> to vector<16x32xf32>
    %199 = arith.subf %180, %198 : vector<16x32xf32>
    %cst_172 = arith.constant 9.99999974E-6 : f32
    %200 = vector.broadcast %cst_172 : f32 to vector<16x1xf32>
    %201 = arith.addf %197, %200 : vector<16x1xf32>
    %202 = math.rsqrt %201 : vector<16x1xf32>
    %203 = vector.broadcast %202 : vector<16x1xf32> to vector<16x32xf32>
    %204 = arith.mulf %199, %203 : vector<16x32xf32>
    %205 = vector.broadcast %182 : vector<1x32xf32> to vector<16x32xf32>
    %206 = arith.mulf %204, %205 : vector<16x32xf32>
    %207 = vector.broadcast %184 : vector<1x32xf32> to vector<16x32xf32>
    %208 = arith.addf %206, %207 : vector<16x32xf32>
    %c1_173 = arith.constant 1 : index
    %c0_174 = arith.constant 0 : index
    %c0_175 = arith.constant 0 : index
    %c0_176 = arith.constant 0 : index
    %209 = vector.load %arg5[%c1_173, %c0_174, %c0_175, %c0_176] : memref<2x4x32x8xf32, #tpu.memory_space<vmem>>, vector<1x1x32x8xf32>
    %210 = vector.shape_cast %209 : vector<1x1x32x8xf32> to vector<32x8xf32>
    %cst_177 = arith.constant dense<0.000000e+00> : vector<16x8xf32>
    %211 = tpu.matmul %208, %210, %cst_177 {dimension_numbers = #tpu.dot_dimension_numbers<[1], [0], [0], [1], [0, 0, 1, 1], [], []>} : vector<16x32xf32>, vector<32x8xf32>, vector<16x8xf32> -> vector<16x8xf32>
    %c1_178 = arith.constant 1 : index
    %c0_179 = arith.constant 0 : index
    %c0_180 = arith.constant 0 : index
    %c0_181 = arith.constant 0 : index
    %212 = vector.load %arg6[%c1_178, %c0_179, %c0_180, %c0_181] : memref<2x4x1x8xf32, #tpu.memory_space<vmem>>, vector<1x1x1x8xf32>
    %213 = vector.shape_cast %212 : vector<1x1x1x8xf32> to vector<1x8xf32>
    %214 = vector.broadcast %213 : vector<1x8xf32> to vector<16x8xf32>
    %215 = arith.addf %211, %214 : vector<16x8xf32>
    %c1_182 = arith.constant 1 : index
    %c1_183 = arith.constant 1 : index
    %c0_184 = arith.constant 0 : index
    %c0_185 = arith.constant 0 : index
    %216 = vector.load %arg5[%c1_182, %c1_183, %c0_184, %c0_185] : memref<2x4x32x8xf32, #tpu.memory_space<vmem>>, vector<1x1x32x8xf32>
    %217 = vector.shape_cast %216 : vector<1x1x32x8xf32> to vector<32x8xf32>
    %cst_186 = arith.constant dense<0.000000e+00> : vector<16x8xf32>
    %218 = tpu.matmul %208, %217, %cst_186 {dimension_numbers = #tpu.dot_dimension_numbers<[1], [0], [0], [1], [0, 0, 1, 1], [], []>} : vector<16x32xf32>, vector<32x8xf32>, vector<16x8xf32> -> vector<16x8xf32>
    %c1_187 = arith.constant 1 : index
    %c1_188 = arith.constant 1 : index
    %c0_189 = arith.constant 0 : index
    %c0_190 = arith.constant 0 : index
    %219 = vector.load %arg6[%c1_187, %c1_188, %c0_189, %c0_190] : memref<2x4x1x8xf32, #tpu.memory_space<vmem>>, vector<1x1x1x8xf32>
    %220 = vector.shape_cast %219 : vector<1x1x1x8xf32> to vector<1x8xf32>
    %221 = vector.broadcast %220 : vector<1x8xf32> to vector<16x8xf32>
    %222 = arith.addf %218, %221 : vector<16x8xf32>
    %c1_191 = arith.constant 1 : index
    %c2_192 = arith.constant 2 : index
    %c0_193 = arith.constant 0 : index
    %c0_194 = arith.constant 0 : index
    %223 = vector.load %arg5[%c1_191, %c2_192, %c0_193, %c0_194] : memref<2x4x32x8xf32, #tpu.memory_space<vmem>>, vector<1x1x32x8xf32>
    %224 = vector.shape_cast %223 : vector<1x1x32x8xf32> to vector<32x8xf32>
    %cst_195 = arith.constant dense<0.000000e+00> : vector<16x8xf32>
    %225 = tpu.matmul %208, %224, %cst_195 {dimension_numbers = #tpu.dot_dimension_numbers<[1], [0], [0], [1], [0, 0, 1, 1], [], []>} : vector<16x32xf32>, vector<32x8xf32>, vector<16x8xf32> -> vector<16x8xf32>
    %c1_196 = arith.constant 1 : index
    %c2_197 = arith.constant 2 : index
    %c0_198 = arith.constant 0 : index
    %c0_199 = arith.constant 0 : index
    %226 = vector.load %arg6[%c1_196, %c2_197, %c0_198, %c0_199] : memref<2x4x1x8xf32, #tpu.memory_space<vmem>>, vector<1x1x1x8xf32>
    %227 = vector.shape_cast %226 : vector<1x1x1x8xf32> to vector<1x8xf32>
    %228 = vector.broadcast %227 : vector<1x8xf32> to vector<16x8xf32>
    %229 = arith.addf %225, %228 : vector<16x8xf32>
    %c1_200 = arith.constant 1 : index
    %c3_201 = arith.constant 3 : index
    %c0_202 = arith.constant 0 : index
    %c0_203 = arith.constant 0 : index
    %230 = vector.load %arg5[%c1_200, %c3_201, %c0_202, %c0_203] : memref<2x4x32x8xf32, #tpu.memory_space<vmem>>, vector<1x1x32x8xf32>
    %231 = vector.shape_cast %230 : vector<1x1x32x8xf32> to vector<32x8xf32>
    %cst_204 = arith.constant dense<0.000000e+00> : vector<16x8xf32>
    %232 = tpu.matmul %208, %231, %cst_204 {dimension_numbers = #tpu.dot_dimension_numbers<[1], [0], [0], [1], [0, 0, 1, 1], [], []>} : vector<16x32xf32>, vector<32x8xf32>, vector<16x8xf32> -> vector<16x8xf32>
    %c1_205 = arith.constant 1 : index
    %c3_206 = arith.constant 3 : index
    %c0_207 = arith.constant 0 : index
    %c0_208 = arith.constant 0 : index
    %233 = vector.load %arg6[%c1_205, %c3_206, %c0_207, %c0_208] : memref<2x4x1x8xf32, #tpu.memory_space<vmem>>, vector<1x1x1x8xf32>
    %234 = vector.shape_cast %233 : vector<1x1x1x8xf32> to vector<1x8xf32>
    %235 = vector.broadcast %234 : vector<1x8xf32> to vector<16x8xf32>
    %236 = arith.addf %232, %235 : vector<16x8xf32>
    %237 = tpu.concatenate %215, %222, %229, %236 in 0 : vector<16x8xf32>, vector<16x8xf32>, vector<16x8xf32>, vector<16x8xf32> -> vector<64x8xf32>
    %238 = vector.shape_cast %237 : vector<64x8xf32> to vector<8x8x8xf32>
    %c1_209 = arith.constant 1 : index
    %c0_210 = arith.constant 0 : index
    %c0_211 = arith.constant 0 : index
    %c0_212 = arith.constant 0 : index
    %239 = vector.load %arg7[%c1_209, %c0_210, %c0_211, %c0_212] : memref<2x4x32x8xf32, #tpu.memory_space<vmem>>, vector<1x1x32x8xf32>
    %240 = vector.shape_cast %239 : vector<1x1x32x8xf32> to vector<32x8xf32>
    %cst_213 = arith.constant dense<0.000000e+00> : vector<16x8xf32>
    %241 = tpu.matmul %208, %240, %cst_213 {dimension_numbers = #tpu.dot_dimension_numbers<[1], [0], [0], [1], [0, 0, 1, 1], [], []>} : vector<16x32xf32>, vector<32x8xf32>, vector<16x8xf32> -> vector<16x8xf32>
    %c1_214 = arith.constant 1 : index
    %c0_215 = arith.constant 0 : index
    %c0_216 = arith.constant 0 : index
    %c0_217 = arith.constant 0 : index
    %242 = vector.load %arg8[%c1_214, %c0_215, %c0_216, %c0_217] : memref<2x4x1x8xf32, #tpu.memory_space<vmem>>, vector<1x1x1x8xf32>
    %243 = vector.shape_cast %242 : vector<1x1x1x8xf32> to vector<1x8xf32>
    %244 = vector.broadcast %243 : vector<1x8xf32> to vector<16x8xf32>
    %245 = arith.addf %241, %244 : vector<16x8xf32>
    %c1_218 = arith.constant 1 : index
    %c1_219 = arith.constant 1 : index
    %c0_220 = arith.constant 0 : index
    %c0_221 = arith.constant 0 : index
    %246 = vector.load %arg7[%c1_218, %c1_219, %c0_220, %c0_221] : memref<2x4x32x8xf32, #tpu.memory_space<vmem>>, vector<1x1x32x8xf32>
    %247 = vector.shape_cast %246 : vector<1x1x32x8xf32> to vector<32x8xf32>
    %cst_222 = arith.constant dense<0.000000e+00> : vector<16x8xf32>
    %248 = tpu.matmul %208, %247, %cst_222 {dimension_numbers = #tpu.dot_dimension_numbers<[1], [0], [0], [1], [0, 0, 1, 1], [], []>} : vector<16x32xf32>, vector<32x8xf32>, vector<16x8xf32> -> vector<16x8xf32>
    %c1_223 = arith.constant 1 : index
    %c1_224 = arith.constant 1 : index
    %c0_225 = arith.constant 0 : index
    %c0_226 = arith.constant 0 : index
    %249 = vector.load %arg8[%c1_223, %c1_224, %c0_225, %c0_226] : memref<2x4x1x8xf32, #tpu.memory_space<vmem>>, vector<1x1x1x8xf32>
    %250 = vector.shape_cast %249 : vector<1x1x1x8xf32> to vector<1x8xf32>
    %251 = vector.broadcast %250 : vector<1x8xf32> to vector<16x8xf32>
    %252 = arith.addf %248, %251 : vector<16x8xf32>
    %c1_227 = arith.constant 1 : index
    %c2_228 = arith.constant 2 : index
    %c0_229 = arith.constant 0 : index
    %c0_230 = arith.constant 0 : index
    %253 = vector.load %arg7[%c1_227, %c2_228, %c0_229, %c0_230] : memref<2x4x32x8xf32, #tpu.memory_space<vmem>>, vector<1x1x32x8xf32>
    %254 = vector.shape_cast %253 : vector<1x1x32x8xf32> to vector<32x8xf32>
    %cst_231 = arith.constant dense<0.000000e+00> : vector<16x8xf32>
    %255 = tpu.matmul %208, %254, %cst_231 {dimension_numbers = #tpu.dot_dimension_numbers<[1], [0], [0], [1], [0, 0, 1, 1], [], []>} : vector<16x32xf32>, vector<32x8xf32>, vector<16x8xf32> -> vector<16x8xf32>
    %c1_232 = arith.constant 1 : index
    %c2_233 = arith.constant 2 : index
    %c0_234 = arith.constant 0 : index
    %c0_235 = arith.constant 0 : index
    %256 = vector.load %arg8[%c1_232, %c2_233, %c0_234, %c0_235] : memref<2x4x1x8xf32, #tpu.memory_space<vmem>>, vector<1x1x1x8xf32>
    %257 = vector.shape_cast %256 : vector<1x1x1x8xf32> to vector<1x8xf32>
    %258 = vector.broadcast %257 : vector<1x8xf32> to vector<16x8xf32>
    %259 = arith.addf %255, %258 : vector<16x8xf32>
    %c1_236 = arith.constant 1 : index
    %c3_237 = arith.constant 3 : index
    %c0_238 = arith.constant 0 : index
    %c0_239 = arith.constant 0 : index
    %260 = vector.load %arg7[%c1_236, %c3_237, %c0_238, %c0_239] : memref<2x4x32x8xf32, #tpu.memory_space<vmem>>, vector<1x1x32x8xf32>
    %261 = vector.shape_cast %260 : vector<1x1x32x8xf32> to vector<32x8xf32>
    %cst_240 = arith.constant dense<0.000000e+00> : vector<16x8xf32>
    %262 = tpu.matmul %208, %261, %cst_240 {dimension_numbers = #tpu.dot_dimension_numbers<[1], [0], [0], [1], [0, 0, 1, 1], [], []>} : vector<16x32xf32>, vector<32x8xf32>, vector<16x8xf32> -> vector<16x8xf32>
    %c1_241 = arith.constant 1 : index
    %c3_242 = arith.constant 3 : index
    %c0_243 = arith.constant 0 : index
    %c0_244 = arith.constant 0 : index
    %263 = vector.load %arg8[%c1_241, %c3_242, %c0_243, %c0_244] : memref<2x4x1x8xf32, #tpu.memory_space<vmem>>, vector<1x1x1x8xf32>
    %264 = vector.shape_cast %263 : vector<1x1x1x8xf32> to vector<1x8xf32>
    %265 = vector.broadcast %264 : vector<1x8xf32> to vector<16x8xf32>
    %266 = arith.addf %262, %265 : vector<16x8xf32>
    %267 = tpu.concatenate %245, %252, %259, %266 in 0 : vector<16x8xf32>, vector<16x8xf32>, vector<16x8xf32>, vector<16x8xf32> -> vector<64x8xf32>
    %268 = vector.shape_cast %267 : vector<64x8xf32> to vector<8x8x8xf32>
    %c1_245 = arith.constant 1 : index
    %c0_246 = arith.constant 0 : index
    %c0_247 = arith.constant 0 : index
    %c0_248 = arith.constant 0 : index
    %269 = vector.load %arg9[%c1_245, %c0_246, %c0_247, %c0_248] : memref<2x4x32x8xf32, #tpu.memory_space<vmem>>, vector<1x1x32x8xf32>
    %270 = vector.shape_cast %269 : vector<1x1x32x8xf32> to vector<32x8xf32>
    %cst_249 = arith.constant dense<0.000000e+00> : vector<16x8xf32>
    %271 = tpu.matmul %208, %270, %cst_249 {dimension_numbers = #tpu.dot_dimension_numbers<[1], [0], [0], [1], [0, 0, 1, 1], [], []>} : vector<16x32xf32>, vector<32x8xf32>, vector<16x8xf32> -> vector<16x8xf32>
    %c1_250 = arith.constant 1 : index
    %c0_251 = arith.constant 0 : index
    %c0_252 = arith.constant 0 : index
    %c0_253 = arith.constant 0 : index
    %272 = vector.load %arg10[%c1_250, %c0_251, %c0_252, %c0_253] : memref<2x4x1x8xf32, #tpu.memory_space<vmem>>, vector<1x1x1x8xf32>
    %273 = vector.shape_cast %272 : vector<1x1x1x8xf32> to vector<1x8xf32>
    %274 = vector.broadcast %273 : vector<1x8xf32> to vector<16x8xf32>
    %275 = arith.addf %271, %274 : vector<16x8xf32>
    %c1_254 = arith.constant 1 : index
    %c1_255 = arith.constant 1 : index
    %c0_256 = arith.constant 0 : index
    %c0_257 = arith.constant 0 : index
    %276 = vector.load %arg9[%c1_254, %c1_255, %c0_256, %c0_257] : memref<2x4x32x8xf32, #tpu.memory_space<vmem>>, vector<1x1x32x8xf32>
    %277 = vector.shape_cast %276 : vector<1x1x32x8xf32> to vector<32x8xf32>
    %cst_258 = arith.constant dense<0.000000e+00> : vector<16x8xf32>
    %278 = tpu.matmul %208, %277, %cst_258 {dimension_numbers = #tpu.dot_dimension_numbers<[1], [0], [0], [1], [0, 0, 1, 1], [], []>} : vector<16x32xf32>, vector<32x8xf32>, vector<16x8xf32> -> vector<16x8xf32>
    %c1_259 = arith.constant 1 : index
    %c1_260 = arith.constant 1 : index
    %c0_261 = arith.constant 0 : index
    %c0_262 = arith.constant 0 : index
    %279 = vector.load %arg10[%c1_259, %c1_260, %c0_261, %c0_262] : memref<2x4x1x8xf32, #tpu.memory_space<vmem>>, vector<1x1x1x8xf32>
    %280 = vector.shape_cast %279 : vector<1x1x1x8xf32> to vector<1x8xf32>
    %281 = vector.broadcast %280 : vector<1x8xf32> to vector<16x8xf32>
    %282 = arith.addf %278, %281 : vector<16x8xf32>
    %c1_263 = arith.constant 1 : index
    %c2_264 = arith.constant 2 : index
    %c0_265 = arith.constant 0 : index
    %c0_266 = arith.constant 0 : index
    %283 = vector.load %arg9[%c1_263, %c2_264, %c0_265, %c0_266] : memref<2x4x32x8xf32, #tpu.memory_space<vmem>>, vector<1x1x32x8xf32>
    %284 = vector.shape_cast %283 : vector<1x1x32x8xf32> to vector<32x8xf32>
    %cst_267 = arith.constant dense<0.000000e+00> : vector<16x8xf32>
    %285 = tpu.matmul %208, %284, %cst_267 {dimension_numbers = #tpu.dot_dimension_numbers<[1], [0], [0], [1], [0, 0, 1, 1], [], []>} : vector<16x32xf32>, vector<32x8xf32>, vector<16x8xf32> -> vector<16x8xf32>
    %c1_268 = arith.constant 1 : index
    %c2_269 = arith.constant 2 : index
    %c0_270 = arith.constant 0 : index
    %c0_271 = arith.constant 0 : index
    %286 = vector.load %arg10[%c1_268, %c2_269, %c0_270, %c0_271] : memref<2x4x1x8xf32, #tpu.memory_space<vmem>>, vector<1x1x1x8xf32>
    %287 = vector.shape_cast %286 : vector<1x1x1x8xf32> to vector<1x8xf32>
    %288 = vector.broadcast %287 : vector<1x8xf32> to vector<16x8xf32>
    %289 = arith.addf %285, %288 : vector<16x8xf32>
    %c1_272 = arith.constant 1 : index
    %c3_273 = arith.constant 3 : index
    %c0_274 = arith.constant 0 : index
    %c0_275 = arith.constant 0 : index
    %290 = vector.load %arg9[%c1_272, %c3_273, %c0_274, %c0_275] : memref<2x4x32x8xf32, #tpu.memory_space<vmem>>, vector<1x1x32x8xf32>
    %291 = vector.shape_cast %290 : vector<1x1x32x8xf32> to vector<32x8xf32>
    %cst_276 = arith.constant dense<0.000000e+00> : vector<16x8xf32>
    %292 = tpu.matmul %208, %291, %cst_276 {dimension_numbers = #tpu.dot_dimension_numbers<[1], [0], [0], [1], [0, 0, 1, 1], [], []>} : vector<16x32xf32>, vector<32x8xf32>, vector<16x8xf32> -> vector<16x8xf32>
    %c1_277 = arith.constant 1 : index
    %c3_278 = arith.constant 3 : index
    %c0_279 = arith.constant 0 : index
    %c0_280 = arith.constant 0 : index
    %293 = vector.load %arg10[%c1_277, %c3_278, %c0_279, %c0_280] : memref<2x4x1x8xf32, #tpu.memory_space<vmem>>, vector<1x1x1x8xf32>
    %294 = vector.shape_cast %293 : vector<1x1x1x8xf32> to vector<1x8xf32>
    %295 = vector.broadcast %294 : vector<1x8xf32> to vector<16x8xf32>
    %296 = arith.addf %292, %295 : vector<16x8xf32>
    %297 = tpu.concatenate %275, %282, %289, %296 in 0 : vector<16x8xf32>, vector<16x8xf32>, vector<16x8xf32>, vector<16x8xf32> -> vector<64x8xf32>
    %298 = vector.shape_cast %297 : vector<64x8xf32> to vector<8x8x8xf32>
    "tpu.trace_start"() <{level = 10 : i32, message = "nqd,nkd->nqk"}> : () -> ()
    %cst_281 = arith.constant dense<0.000000e+00> : vector<8x8x8xf32>
    %299 = tpu.matmul %238, %268, %cst_281 {dimension_numbers = #tpu.dot_dimension_numbers<[2], [2], [1], [1], [0, 0, 0, 1, 1, 1], [0], [0]>} : vector<8x8x8xf32>, vector<8x8x8xf32>, vector<8x8x8xf32> -> vector<8x8x8xf32>
    "tpu.trace_stop"() : () -> ()
    %300 = arith.addf %299, %4 : vector<8x8x8xf32>
    %cst_282 = arith.constant dense<0xFF800000> : vector<8x8xf32>
    %301 = vector.multi_reduction <maximumf>, %300, %cst_282 [2] : vector<8x8x8xf32> to vector<8x8xf32>
    %302 = vector.shape_cast %301 : vector<8x8xf32> to vector<8x8x1xf32>
    %303 = vector.broadcast %302 : vector<8x8x1xf32> to vector<8x8x8xf32>
    %304 = arith.subf %300, %303 : vector<8x8x8xf32>
    %305 = math.exp %304 : vector<8x8x8xf32>
    %cst_283 = arith.constant dense<0.000000e+00> : vector<8x8xf32>
    %306 = vector.multi_reduction <add>, %305, %cst_283 [2] : vector<8x8x8xf32> to vector<8x8xf32>
    %307 = vector.shape_cast %306 : vector<8x8xf32> to vector<8x8x1xf32>
    "tpu.trace_start"() <{level = 10 : i32, message = "nqk,nkd->nqd"}> : () -> ()
    %cst_284 = arith.constant dense<0.000000e+00> : vector<8x8x8xf32>
    %308 = tpu.matmul %305, %298, %cst_284 {dimension_numbers = #tpu.dot_dimension_numbers<[2], [1], [1], [2], [0, 0, 0, 1, 1, 2], [0], [0]>} : vector<8x8x8xf32>, vector<8x8x8xf32>, vector<8x8x8xf32> -> vector<8x8x8xf32>
    "tpu.trace_stop"() : () -> ()
    %309 = tpu.reciprocal %307 {approx = true} : vector<8x8x1xf32> -> vector<8x8x1xf32>
    %310 = vector.broadcast %309 : vector<8x8x1xf32> to vector<8x8x8xf32>
    %311 = arith.mulf %308, %310 : vector<8x8x8xf32>
    %c1_285 = arith.constant 1 : index
    %c0_286 = arith.constant 0 : index
    %c0_287 = arith.constant 0 : index
    %312 = vector.load %arg12[%c1_285, %c0_286, %c0_287] : memref<2x1x32xf32, #tpu.memory_space<vmem>>, vector<1x1x32xf32>
    %313 = vector.shape_cast %312 : vector<1x1x32xf32> to vector<1x32xf32>
    %314 = vector.extract_strided_slice %311 {offsets = [0, 0, 0], sizes = [2, 8, 8], strides = [1, 1, 1]} : vector<8x8x8xf32> to vector<2x8x8xf32>
    %315 = vector.shape_cast %314 : vector<2x8x8xf32> to vector<16x8xf32>
    %c1_288 = arith.constant 1 : index
    %c0_289 = arith.constant 0 : index
    %c0_290 = arith.constant 0 : index
    %c0_291 = arith.constant 0 : index
    %316 = vector.load %arg11[%c1_288, %c0_289, %c0_290, %c0_291] : memref<2x4x8x32xf32, #tpu.memory_space<vmem>>, vector<1x1x8x32xf32>
    %317 = vector.shape_cast %316 : vector<1x1x8x32xf32> to vector<8x32xf32>
    %cst_292 = arith.constant dense<0.000000e+00> : vector<16x32xf32>
    %318 = tpu.matmul %315, %317, %cst_292 {dimension_numbers = #tpu.dot_dimension_numbers<[1], [0], [0], [1], [0, 0, 1, 1], [], []>} : vector<16x8xf32>, vector<8x32xf32>, vector<16x32xf32> -> vector<16x32xf32>
    %319 = vector.broadcast %313 : vector<1x32xf32> to vector<16x32xf32>
    %320 = arith.addf %319, %318 : vector<16x32xf32>
    %321 = vector.extract_strided_slice %311 {offsets = [2, 0, 0], sizes = [2, 8, 8], strides = [1, 1, 1]} : vector<8x8x8xf32> to vector<2x8x8xf32>
    %322 = vector.shape_cast %321 : vector<2x8x8xf32> to vector<16x8xf32>
    %c1_293 = arith.constant 1 : index
    %c1_294 = arith.constant 1 : index
    %c0_295 = arith.constant 0 : index
    %c0_296 = arith.constant 0 : index
    %323 = vector.load %arg11[%c1_293, %c1_294, %c0_295, %c0_296] : memref<2x4x8x32xf32, #tpu.memory_space<vmem>>, vector<1x1x8x32xf32>
    %324 = vector.shape_cast %323 : vector<1x1x8x32xf32> to vector<8x32xf32>
    %cst_297 = arith.constant dense<0.000000e+00> : vector<16x32xf32>
    %325 = tpu.matmul %322, %324, %cst_297 {dimension_numbers = #tpu.dot_dimension_numbers<[1], [0], [0], [1], [0, 0, 1, 1], [], []>} : vector<16x8xf32>, vector<8x32xf32>, vector<16x32xf32> -> vector<16x32xf32>
    %326 = arith.addf %320, %325 : vector<16x32xf32>
    %327 = vector.extract_strided_slice %311 {offsets = [4, 0, 0], sizes = [2, 8, 8], strides = [1, 1, 1]} : vector<8x8x8xf32> to vector<2x8x8xf32>
    %328 = vector.shape_cast %327 : vector<2x8x8xf32> to vector<16x8xf32>
    %c1_298 = arith.constant 1 : index
    %c2_299 = arith.constant 2 : index
    %c0_300 = arith.constant 0 : index
    %c0_301 = arith.constant 0 : index
    %329 = vector.load %arg11[%c1_298, %c2_299, %c0_300, %c0_301] : memref<2x4x8x32xf32, #tpu.memory_space<vmem>>, vector<1x1x8x32xf32>
    %330 = vector.shape_cast %329 : vector<1x1x8x32xf32> to vector<8x32xf32>
    %cst_302 = arith.constant dense<0.000000e+00> : vector<16x32xf32>
    %331 = tpu.matmul %328, %330, %cst_302 {dimension_numbers = #tpu.dot_dimension_numbers<[1], [0], [0], [1], [0, 0, 1, 1], [], []>} : vector<16x8xf32>, vector<8x32xf32>, vector<16x32xf32> -> vector<16x32xf32>
    %332 = arith.addf %326, %331 : vector<16x32xf32>
    %333 = vector.extract_strided_slice %311 {offsets = [6, 0, 0], sizes = [2, 8, 8], strides = [1, 1, 1]} : vector<8x8x8xf32> to vector<2x8x8xf32>
    %334 = vector.shape_cast %333 : vector<2x8x8xf32> to vector<16x8xf32>
    %c1_303 = arith.constant 1 : index
    %c3_304 = arith.constant 3 : index
    %c0_305 = arith.constant 0 : index
    %c0_306 = arith.constant 0 : index
    %335 = vector.load %arg11[%c1_303, %c3_304, %c0_305, %c0_306] : memref<2x4x8x32xf32, #tpu.memory_space<vmem>>, vector<1x1x8x32xf32>
    %336 = vector.shape_cast %335 : vector<1x1x8x32xf32> to vector<8x32xf32>
    %cst_307 = arith.constant dense<0.000000e+00> : vector<16x32xf32>
    %337 = tpu.matmul %334, %336, %cst_307 {dimension_numbers = #tpu.dot_dimension_numbers<[1], [0], [0], [1], [0, 0, 1, 1], [], []>} : vector<16x8xf32>, vector<8x32xf32>, vector<16x32xf32> -> vector<16x32xf32>
    %338 = arith.addf %332, %337 : vector<16x32xf32>
    %339 = arith.addf %208, %338 : vector<16x32xf32>
    %c1_308 = arith.constant 1 : index
    %c0_309 = arith.constant 0 : index
    %c0_310 = arith.constant 0 : index
    %340 = vector.load %arg17[%c1_308, %c0_309, %c0_310] : memref<2x1x32xf32, #tpu.memory_space<vmem>>, vector<1x1x32xf32>
    %341 = vector.shape_cast %340 : vector<1x1x32xf32> to vector<1x32xf32>
    %c1_311 = arith.constant 1 : index
    %c0_312 = arith.constant 0 : index
    %c0_313 = arith.constant 0 : index
    %342 = vector.load %arg18[%c1_311, %c0_312, %c0_313] : memref<2x1x32xf32, #tpu.memory_space<vmem>>, vector<1x1x32xf32>
    %343 = vector.shape_cast %342 : vector<1x1x32xf32> to vector<1x32xf32>
    %cst_314 = arith.constant dense<0.000000e+00> : vector<16xf32>
    %344 = vector.multi_reduction <add>, %339, %cst_314 [1] : vector<16x32xf32> to vector<16xf32>
    %345 = vector.shape_cast %344 : vector<16xf32> to vector<16x1xf32>
    %cst_315 = arith.constant 3.200000e+01 : f32
    %346 = vector.broadcast %cst_315 : f32 to vector<16x1xf32>
    %347 = arith.divf %345, %346 : vector<16x1xf32>
    %348 = vector.broadcast %347 : vector<16x1xf32> to vector<16x32xf32>
    %349 = arith.subf %339, %348 : vector<16x32xf32>
    %350 = vector.broadcast %347 : vector<16x1xf32> to vector<16x32xf32>
    %351 = arith.subf %339, %350 : vector<16x32xf32>
    %352 = arith.mulf %349, %351 : vector<16x32xf32>
    %cst_316 = arith.constant dense<0.000000e+00> : vector<16xf32>
    %353 = vector.multi_reduction <add>, %352, %cst_316 [1] : vector<16x32xf32> to vector<16xf32>
    %354 = vector.shape_cast %353 : vector<16xf32> to vector<16x1xf32>
    %cst_317 = arith.constant 3.200000e+01 : f32
    %355 = vector.broadcast %cst_317 : f32 to vector<16x1xf32>
    %356 = arith.divf %354, %355 : vector<16x1xf32>
    %357 = vector.broadcast %347 : vector<16x1xf32> to vector<16x32xf32>
    %358 = arith.subf %339, %357 : vector<16x32xf32>
    %cst_318 = arith.constant 9.99999974E-6 : f32
    %359 = vector.broadcast %cst_318 : f32 to vector<16x1xf32>
    %360 = arith.addf %356, %359 : vector<16x1xf32>
    %361 = math.rsqrt %360 : vector<16x1xf32>
    %362 = vector.broadcast %361 : vector<16x1xf32> to vector<16x32xf32>
    %363 = arith.mulf %358, %362 : vector<16x32xf32>
    %364 = vector.broadcast %341 : vector<1x32xf32> to vector<16x32xf32>
    %365 = arith.mulf %363, %364 : vector<16x32xf32>
    %366 = vector.broadcast %343 : vector<1x32xf32> to vector<16x32xf32>
    %367 = arith.addf %365, %366 : vector<16x32xf32>
    %c1_319 = arith.constant 1 : index
    %c0_320 = arith.constant 0 : index
    %c0_321 = arith.constant 0 : index
    %368 = vector.load %arg13[%c1_319, %c0_320, %c0_321] : memref<2x32x64xf32, #tpu.memory_space<vmem>>, vector<1x32x64xf32>
    %369 = vector.shape_cast %368 : vector<1x32x64xf32> to vector<32x64xf32>
    %cst_322 = arith.constant dense<0.000000e+00> : vector<16x64xf32>
    %370 = tpu.matmul %367, %369, %cst_322 {dimension_numbers = #tpu.dot_dimension_numbers<[1], [0], [0], [1], [0, 0, 1, 1], [], []>} : vector<16x32xf32>, vector<32x64xf32>, vector<16x64xf32> -> vector<16x64xf32>
    %c1_323 = arith.constant 1 : index
    %c0_324 = arith.constant 0 : index
    %c0_325 = arith.constant 0 : index
    %371 = vector.load %arg14[%c1_323, %c0_324, %c0_325] : memref<2x1x64xf32, #tpu.memory_space<vmem>>, vector<1x1x64xf32>
    %372 = vector.shape_cast %371 : vector<1x1x64xf32> to vector<1x64xf32>
    %373 = vector.broadcast %372 : vector<1x64xf32> to vector<16x64xf32>
    %374 = arith.addf %370, %373 : vector<16x64xf32>
    %cst_326 = arith.constant 0.000000e+00 : f32
    %375 = vector.broadcast %cst_326 : f32 to vector<16x64xf32>
    %376 = arith.maximumf %374, %375 : vector<16x64xf32>
    %c1_327 = arith.constant 1 : index
    %c0_328 = arith.constant 0 : index
    %c0_329 = arith.constant 0 : index
    %377 = vector.load %arg15[%c1_327, %c0_328, %c0_329] : memref<2x64x32xf32, #tpu.memory_space<vmem>>, vector<1x64x32xf32>
    %378 = vector.shape_cast %377 : vector<1x64x32xf32> to vector<64x32xf32>
    %cst_330 = arith.constant dense<0.000000e+00> : vector<16x32xf32>
    %379 = tpu.matmul %376, %378, %cst_330 {dimension_numbers = #tpu.dot_dimension_numbers<[1], [0], [0], [1], [0, 0, 1, 1], [], []>} : vector<16x64xf32>, vector<64x32xf32>, vector<16x32xf32> -> vector<16x32xf32>
    %c1_331 = arith.constant 1 : index
    %c0_332 = arith.constant 0 : index
    %c0_333 = arith.constant 0 : index
    %380 = vector.load %arg16[%c1_331, %c0_332, %c0_333] : memref<2x1x32xf32, #tpu.memory_space<vmem>>, vector<1x1x32xf32>
    %381 = vector.shape_cast %380 : vector<1x1x32xf32> to vector<1x32xf32>
    %382 = vector.broadcast %381 : vector<1x32xf32> to vector<16x32xf32>
    %383 = arith.addf %379, %382 : vector<16x32xf32>
    %384 = arith.addf %367, %383 : vector<16x32xf32>
    %c1_334 = arith.constant 1 : index
    %c0_335 = arith.constant 0 : index
    %c0_336 = arith.constant 0 : index
    %385 = vector.load %arg19[%c1_334, %c0_335, %c0_336] : memref<2x1x32xf32, #tpu.memory_space<vmem>>, vector<1x1x32xf32>
    %386 = vector.shape_cast %385 : vector<1x1x32xf32> to vector<1x32xf32>
    %c1_337 = arith.constant 1 : index
    %c0_338 = arith.constant 0 : index
    %c0_339 = arith.constant 0 : index
    %387 = vector.load %arg20[%c1_337, %c0_338, %c0_339] : memref<2x1x32xf32, #tpu.memory_space<vmem>>, vector<1x1x32xf32>
    %388 = vector.shape_cast %387 : vector<1x1x32xf32> to vector<1x32xf32>
    %cst_340 = arith.constant dense<0.000000e+00> : vector<16xf32>
    %389 = vector.multi_reduction <add>, %384, %cst_340 [1] : vector<16x32xf32> to vector<16xf32>
    %390 = vector.shape_cast %389 : vector<16xf32> to vector<16x1xf32>
    %cst_341 = arith.constant 3.200000e+01 : f32
    %391 = vector.broadcast %cst_341 : f32 to vector<16x1xf32>
    %392 = arith.divf %390, %391 : vector<16x1xf32>
    %393 = vector.broadcast %392 : vector<16x1xf32> to vector<16x32xf32>
    %394 = arith.subf %384, %393 : vector<16x32xf32>
    %395 = vector.broadcast %392 : vector<16x1xf32> to vector<16x32xf32>
    %396 = arith.subf %384, %395 : vector<16x32xf32>
    %397 = arith.mulf %394, %396 : vector<16x32xf32>
    %cst_342 = arith.constant dense<0.000000e+00> : vector<16xf32>
    %398 = vector.multi_reduction <add>, %397, %cst_342 [1] : vector<16x32xf32> to vector<16xf32>
    %399 = vector.shape_cast %398 : vector<16xf32> to vector<16x1xf32>
    %cst_343 = arith.constant 3.200000e+01 : f32
    %400 = vector.broadcast %cst_343 : f32 to vector<16x1xf32>
    %401 = arith.divf %399, %400 : vector<16x1xf32>
    %402 = vector.broadcast %392 : vector<16x1xf32> to vector<16x32xf32>
    %403 = arith.subf %384, %402 : vector<16x32xf32>
    %cst_344 = arith.constant 9.99999974E-6 : f32
    %404 = vector.broadcast %cst_344 : f32 to vector<16x1xf32>
    %405 = arith.addf %401, %404 : vector<16x1xf32>
    %406 = math.rsqrt %405 : vector<16x1xf32>
    %407 = vector.broadcast %406 : vector<16x1xf32> to vector<16x32xf32>
    %408 = arith.mulf %403, %407 : vector<16x32xf32>
    %409 = vector.broadcast %386 : vector<1x32xf32> to vector<16x32xf32>
    %410 = arith.mulf %408, %409 : vector<16x32xf32>
    %411 = vector.broadcast %388 : vector<1x32xf32> to vector<16x32xf32>
    %412 = arith.addf %410, %411 : vector<16x32xf32>
    %413 = vector.shape_cast %412 : vector<16x32xf32> to vector<2x8x32xf32>
    %c0_345 = arith.constant 0 : index
    %c0_346 = arith.constant 0 : index
    %c0_347 = arith.constant 0 : index
    %414 = vector.load %arg3[%c0_345, %c0_346, %c0_347] : memref<2x8x1xf32, #tpu.memory_space<vmem>>, vector<2x8x1xf32>
    %415 = vector.broadcast %414 : vector<2x8x1xf32> to vector<2x8x32xf32>
    %416 = arith.mulf %413, %415 : vector<2x8x32xf32>
    %cst_348 = arith.constant dense<0.000000e+00> : vector<2x32xf32>
    %417 = vector.multi_reduction <add>, %416, %cst_348 [1] : vector<2x8x32xf32> to vector<2x32xf32>
    %cst_349 = arith.constant dense<0.000000e+00> : vector<2x1xf32>
    %418 = vector.multi_reduction <add>, %414, %cst_349 [1] : vector<2x8x1xf32> to vector<2x1xf32>
    %cst_350 = arith.constant 1.000000e-30 : f32
    %419 = vector.broadcast %cst_350 : f32 to vector<2x1xf32>
    %420 = arith.maximumf %418, %419 : vector<2x1xf32>
    %421 = vector.broadcast %420 : vector<2x1xf32> to vector<2x32xf32>
    %422 = arith.divf %417, %421 : vector<2x32xf32>
    %c0_351 = arith.constant 0 : index
    %c0_352 = arith.constant 0 : index
    %c0_353 = arith.constant 0 : index
    %423 = vector.load %arg4[%c0_351, %c0_352, %c0_353] : memref<2x8x32xf32, #tpu.memory_space<vmem>>, vector<2x8x32xf32>
    %424 = vector.shape_cast %422 : vector<2x32xf32> to vector<2x1x32xf32>
    "tpu.trace_start"() <{level = 10 : i32, message = "bue,bne->bun"}> : () -> ()
    %cst_354 = arith.constant dense<0.000000e+00> : vector<2x1x8xf32>
    %425 = tpu.matmul %424, %423, %cst_354 {dimension_numbers = #tpu.dot_dimension_numbers<[2], [2], [1], [1], [0, 0, 0, 1, 1, 1], [0], [0]>} : vector<2x1x32xf32>, vector<2x8x32xf32>, vector<2x1x8xf32> -> vector<2x1x8xf32>
    "tpu.trace_stop"() : () -> ()
    %c0_355 = arith.constant 0 : index
    %c0_356 = arith.constant 0 : index
    %c0_357 = arith.constant 0 : index
    %426 = vector.load %arg21[%c0_355, %c0_356, %c0_357] : memref<2x1x8xf32, #tpu.memory_space<vmem>>, vector<2x1x8xf32>
    tpu.vector_store %arg21[%c0_355, %c0_356, %c0_357], %425 {strides = array<i32>} : memref<2x1x8xf32, #tpu.memory_space<vmem>>, vector<2x1x8xf32>,
    return
  }
  func.func @transform_0(%arg0: i32) -> (i32, i32, i32) {
    %c0_i32 = arith.constant 0 : i32
    %c0_i32_0 = arith.constant 0 : i32
    %c0_i32_1 = arith.constant 0 : i32
    %c0_i32_2 = arith.constant 0 : i32
    return %c0_i32, %c0_i32_0, %c0_i32_1 : i32, i32, i32
  }
  func.func @transform_1(%arg0: i32) -> (i32, i32, i32) {
    %c0_i32 = arith.constant 0 : i32
    %c0_i32_0 = arith.constant 0 : i32
    %c0_i32_1 = arith.constant 0 : i32
    %c0_i32_2 = arith.constant 0 : i32
    return %c0_i32, %c0_i32_0, %c0_i32_1 : i32, i32, i32
  }
  func.func @transform_2(%arg0: i32) -> (i32, i32, i32) {
    %c0_i32 = arith.constant 0 : i32
    %c0_i32_0 = arith.constant 0 : i32
    %c0_i32_1 = arith.constant 0 : i32
    %c0_i32_2 = arith.constant 0 : i32
    return %c0_i32, %c0_i32_0, %c0_i32_1 : i32, i32, i32
  }
  func.func @transform_3(%arg0: i32) -> (i32, i32, i32) {
    %c0_i32 = arith.constant 0 : i32
    %c0_i32_0 = arith.constant 0 : i32
    %c0_i32_1 = arith.constant 0 : i32
    %c0_i32_2 = arith.constant 0 : i32
    return %c0_i32, %c0_i32_0, %c0_i32_1 : i32, i32, i32
  }
  func.func @transform_4(%arg0: i32) -> (i32, i32, i32, i32) {
    %c0_i32 = arith.constant 0 : i32
    %c0_i32_0 = arith.constant 0 : i32
    %c0_i32_1 = arith.constant 0 : i32
    %c0_i32_2 = arith.constant 0 : i32
    %c0_i32_3 = arith.constant 0 : i32
    return %c0_i32, %c0_i32_0, %c0_i32_1, %c0_i32_2 : i32, i32, i32, i32
  }
  func.func @transform_5(%arg0: i32) -> (i32, i32, i32, i32) {
    %c0_i32 = arith.constant 0 : i32
    %c0_i32_0 = arith.constant 0 : i32
    %c0_i32_1 = arith.constant 0 : i32
    %c0_i32_2 = arith.constant 0 : i32
    %c0_i32_3 = arith.constant 0 : i32
    return %c0_i32, %c0_i32_0, %c0_i32_1, %c0_i32_2 : i32, i32, i32, i32
  }
  func.func @transform_6(%arg0: i32) -> (i32, i32, i32, i32) {
    %c0_i32 = arith.constant 0 : i32
    %c0_i32_0 = arith.constant 0 : i32
    %c0_i32_1 = arith.constant 0 : i32
    %c0_i32_2 = arith.constant 0 : i32
    %c0_i32_3 = arith.constant 0 : i32
    return %c0_i32, %c0_i32_0, %c0_i32_1, %c0_i32_2 : i32, i32, i32, i32
  }
  func.func @transform_7(%arg0: i32) -> (i32, i32, i32, i32) {
    %c0_i32 = arith.constant 0 : i32
    %c0_i32_0 = arith.constant 0 : i32
    %c0_i32_1 = arith.constant 0 : i32
    %c0_i32_2 = arith.constant 0 : i32
    %c0_i32_3 = arith.constant 0 : i32
    return %c0_i32, %c0_i32_0, %c0_i32_1, %c0_i32_2 : i32, i32, i32, i32
  }
  func.func @transform_8(%arg0: i32) -> (i32, i32, i32, i32) {
    %c0_i32 = arith.constant 0 : i32
    %c0_i32_0 = arith.constant 0 : i32
    %c0_i32_1 = arith.constant 0 : i32
    %c0_i32_2 = arith.constant 0 : i32
    %c0_i32_3 = arith.constant 0 : i32
    return %c0_i32, %c0_i32_0, %c0_i32_1, %c0_i32_2 : i32, i32, i32, i32
  }
  func.func @transform_9(%arg0: i32) -> (i32, i32, i32, i32) {
    %c0_i32 = arith.constant 0 : i32
    %c0_i32_0 = arith.constant 0 : i32
    %c0_i32_1 = arith.constant 0 : i32
    %c0_i32_2 = arith.constant 0 : i32
    %c0_i32_3 = arith.constant 0 : i32
    return %c0_i32, %c0_i32_0, %c0_i32_1, %c0_i32_2 : i32, i32, i32, i32
  }
  func.func @transform_10(%arg0: i32) -> (i32, i32, i32, i32) {
    %c0_i32 = arith.constant 0 : i32
    %c0_i32_0 = arith.constant 0 : i32
    %c0_i32_1 = arith.constant 0 : i32
    %c0_i32_2 = arith.constant 0 : i32
    %c0_i32_3 = arith.constant 0 : i32
    return %c0_i32, %c0_i32_0, %c0_i32_1, %c0_i32_2 : i32, i32, i32, i32
  }
  func.func @transform_11(%arg0: i32) -> (i32, i32, i32) {
    %c0_i32 = arith.constant 0 : i32
    %c0_i32_0 = arith.constant 0 : i32
    %c0_i32_1 = arith.constant 0 : i32
    %c0_i32_2 = arith.constant 0 : i32
    return %c0_i32, %c0_i32_0, %c0_i32_1 : i32, i32, i32
  }
  func.func @transform_12(%arg0: i32) -> (i32, i32, i32) {
    %c0_i32 = arith.constant 0 : i32
    %c0_i32_0 = arith.constant 0 : i32
    %c0_i32_1 = arith.constant 0 : i32
    %c0_i32_2 = arith.constant 0 : i32
    return %c0_i32, %c0_i32_0, %c0_i32_1 : i32, i32, i32
  }
  func.func @transform_13(%arg0: i32) -> (i32, i32, i32) {
    %c0_i32 = arith.constant 0 : i32
    %c0_i32_0 = arith.constant 0 : i32
    %c0_i32_1 = arith.constant 0 : i32
    %c0_i32_2 = arith.constant 0 : i32
    return %c0_i32, %c0_i32_0, %c0_i32_1 : i32, i32, i32
  }
  func.func @transform_14(%arg0: i32) -> (i32, i32, i32) {
    %c0_i32 = arith.constant 0 : i32
    %c0_i32_0 = arith.constant 0 : i32
    %c0_i32_1 = arith.constant 0 : i32
    %c0_i32_2 = arith.constant 0 : i32
    return %c0_i32, %c0_i32_0, %c0_i32_1 : i32, i32, i32
  }
  func.func @transform_15(%arg0: i32) -> (i32, i32, i32) {
    %c0_i32 = arith.constant 0 : i32
    %c0_i32_0 = arith.constant 0 : i32
    %c0_i32_1 = arith.constant 0 : i32
    %c0_i32_2 = arith.constant 0 : i32
    return %c0_i32, %c0_i32_0, %c0_i32_1 : i32, i32, i32
  }
  func.func @transform_16(%arg0: i32) -> (i32, i32, i32) {
    %c0_i32 = arith.constant 0 : i32
    %c0_i32_0 = arith.constant 0 : i32
    %c0_i32_1 = arith.constant 0 : i32
    %c0_i32_2 = arith.constant 0 : i32
    return %c0_i32, %c0_i32_0, %c0_i32_1 : i32, i32, i32
  }
  func.func @transform_17(%arg0: i32) -> (i32, i32, i32) {
    %c0_i32 = arith.constant 0 : i32
    %c0_i32_0 = arith.constant 0 : i32
    %c0_i32_1 = arith.constant 0 : i32
    %c0_i32_2 = arith.constant 0 : i32
    return %c0_i32, %c0_i32_0, %c0_i32_1 : i32, i32, i32
  }
  func.func @transform_18(%arg0: i32) -> (i32, i32, i32) {
    %c0_i32 = arith.constant 0 : i32
    %c0_i32_0 = arith.constant 0 : i32
    %c0_i32_1 = arith.constant 0 : i32
    %c0_i32_2 = arith.constant 0 : i32
    return %c0_i32, %c0_i32_0, %c0_i32_1 : i32, i32, i32
  }
  func.func @transform_19(%arg0: i32) -> (i32, i32, i32) {
    %c0_i32 = arith.constant 0 : i32
    %c0_i32_0 = arith.constant 0 : i32
    %c0_i32_1 = arith.constant 0 : i32
    %c0_i32_2 = arith.constant 0 : i32
    return %c0_i32, %c0_i32_0, %c0_i32_1 : i32, i32, i32
  }
  func.func @transform_20(%arg0: i32) -> (i32, i32, i32) {
    %c0_i32 = arith.constant 0 : i32
    %c0_i32_0 = arith.constant 0 : i32
    %c0_i32_1 = arith.constant 0 : i32
    %c0_i32_2 = arith.constant 0 : i32
    return %c0_i32, %c0_i32_0, %c0_i32_1 : i32, i32, i32
  }
}

</mosaic_0001>

<llo_original>
// kernel: ptum_forward.1
$region0: #{ptum_forward.1}
  #allocation0 [shape = 'u32[]', space=smem, size = 0x4, offset = 0x4, fixed_abs, tag = 'smem constant byte address 0x4 - core index']
  #allocation1 [shape = 'u32[72,128]{1,0:T(1,128)}', space=vmem, size = 0x9000, scoped, tag = 'internal scratch']
  %s0 = inlined_call_operand.vmem [shape: f32[2,8,32], index: 0, kind: input, shape index: {}]
  %s1 = inlined_call_operand.vmem [shape: f32[8,1,8], index: 1, kind: input, shape index: {}]
  %s2 = inlined_call_operand.vmem [shape: f32[2,8,1], index: 2, kind: input, shape index: {}]
  %s3 = inlined_call_operand.vmem [shape: f32[2,8,32], index: 3, kind: input, shape index: {}]
  %s4 = inlined_call_operand.vmem [shape: f32[2,4,32,8], index: 4, kind: input, shape index: {}]
  %s5 = inlined_call_operand.vmem [shape: f32[2,4,1,8], index: 5, kind: input, shape index: {}]
  %s6 = inlined_call_operand.vmem [shape: f32[2,4,32,8], index: 6, kind: input, shape index: {}]
  %s7 = inlined_call_operand.vmem [shape: f32[2,4,1,8], index: 7, kind: input, shape index: {}]
  %s8 = inlined_call_operand.vmem [shape: f32[2,4,32,8], index: 8, kind: input, shape index: {}]
  %s9 = inlined_call_operand.vmem [shape: f32[2,4,1,8], index: 9, kind: input, shape index: {}]
  %s10 = inlined_call_operand.vmem [shape: f32[2,4,8,32], index: 10, kind: input, shape index: {}]
  %s11 = inlined_call_operand.vmem [shape: f32[2,1,32], index: 11, kind: input, shape index: {}]
  %s12 = inlined_call_operand.vmem [shape: f32[2,32,64], index: 12, kind: input, shape index: {}]
  %s13 = inlined_call_operand.vmem [shape: f32[2,1,64], index: 13, kind: input, shape index: {}]
  %s14 = inlined_call_operand.vmem [shape: f32[2,64,32], index: 14, kind: input, shape index: {}]
  %s15 = inlined_call_operand.vmem [shape: f32[2,1,32], index: 15, kind: input, shape index: {}]
  %s16 = inlined_call_operand.vmem [shape: f32[2,1,32], index: 16, kind: input, shape index: {}]
  %s17 = inlined_call_operand.vmem [shape: f32[2,1,32], index: 17, kind: input, shape index: {}]
  %s18 = inlined_call_operand.vmem [shape: f32[2,1,32], index: 18, kind: input, shape index: {}]
  %s19 = inlined_call_operand.vmem [shape: f32[2,1,32], index: 19, kind: input, shape index: {}]
  %s20 = inlined_call_operand.vmem [shape: f32[2,1,8], index: 20, kind: output, shape index: {}]
  %s21 = sld [smem:[#allocation0]]
  $region90: #{ptum_forward.1} parent=0
    _
  %s23 = ssub.s32 1, %s21
  %s24 = scalar_select 0, %s23, %s21
  // Predicated region
  $region2: #{ptum_forward.1} parent=0 // pred_check
    _
  $region3: #{ptum_forward.1} parent=0 // pred_check_branch
    %26 = sbr.rel (0) target = $region5
  $region4: #{ptum_forward.1} parent=0 // pred_region
    _
  $region5: #{ptum_forward.1} parent=0 // pred_fallthru
    _
  // Predicated region
  $region6: #{ptum_forward.1} parent=0 // pred_check
    _
  $region7: #{ptum_forward.1} parent=0 // pred_check_branch
    %28 = sbr.rel (0) target = $region9
  $region8: #{ptum_forward.1} parent=0 // pred_region
    _
  $region9: #{ptum_forward.1} parent=0 // pred_fallthru
    _
  // Predicated region
  $region10: #{ptum_forward.1} parent=0 // pred_check
    _
  $region11: #{ptum_forward.1} parent=0 // pred_check_branch
    %30 = sbr.rel (0) target = $region13
  $region12: #{ptum_forward.1} parent=0 // pred_region
    _
  $region13: #{ptum_forward.1} parent=0 // pred_fallthru
    _
  // Predicated region
  $region14: #{ptum_forward.1} parent=0 // pred_check
    _
  $region15: #{ptum_forward.1} parent=0 // pred_check_branch
    %32 = sbr.rel (0) target = $region17
  $region16: #{ptum_forward.1} parent=0 // pred_region
    _
  $region17: #{ptum_forward.1} parent=0 // pred_fallthru
    _
  // Predicated region
  $region18: #{ptum_forward.1} parent=0 // pred_check
    _
  $region19: #{ptum_forward.1} parent=0 // pred_check_branch
    %34 = sbr.rel (0) target = $region21
  $region20: #{ptum_forward.1} parent=0 // pred_region
    _
  $region21: #{ptum_forward.1} parent=0 // pred_fallthru
    _
  // Predicated region
  $region22: #{ptum_forward.1} parent=0 // pred_check
    _
  $region23: #{ptum_forward.1} parent=0 // pred_check_branch
    %36 = sbr.rel (0) target = $region25
  $region24: #{ptum_forward.1} parent=0 // pred_region
    _
  $region25: #{ptum_forward.1} parent=0 // pred_fallthru
    _
  // Predicated region
  $region26: #{ptum_forward.1} parent=0 // pred_check
    _
  $region27: #{ptum_forward.1} parent=0 // pred_check_branch
    %38 = sbr.rel (0) target = $region29
  $region28: #{ptum_forward.1} parent=0 // pred_region
    _
  $region29: #{ptum_forward.1} parent=0 // pred_fallthru
    _
  // Predicated region
  $region30: #{ptum_forward.1} parent=0 // pred_check
    _
  $region31: #{ptum_forward.1} parent=0 // pred_check_branch
    %40 = sbr.rel (0) target = $region33
  $region32: #{ptum_forward.1} parent=0 // pred_region
    _
  $region33: #{ptum_forward.1} parent=0 // pred_fallthru
    _
  // Predicated region
  $region34: #{ptum_forward.1} parent=0 // pred_check
    _
  $region35: #{ptum_forward.1} parent=0 // pred_check_branch
    %42 = sbr.rel (0) target = $region37
  $region36: #{ptum_forward.1} parent=0 // pred_region
    _
  $region37: #{ptum_forward.1} parent=0 // pred_fallthru
    _
  // Predicated region
  $region38: #{ptum_forward.1} parent=0 // pred_check
    _
  $region39: #{ptum_forward.1} parent=0 // pred_check_branch
    %44 = sbr.rel (0) target = $region41
  $region40: #{ptum_forward.1} parent=0 // pred_region
    _
  $region41: #{ptum_forward.1} parent=0 // pred_fallthru
    _
  // Predicated region
  $region42: #{ptum_forward.1} parent=0 // pred_check
    _
  $region43: #{ptum_forward.1} parent=0 // pred_check_branch
    %46 = sbr.rel (0) target = $region45
  $region44: #{ptum_forward.1} parent=0 // pred_region
    _
  $region45: #{ptum_forward.1} parent=0 // pred_fallthru
    _
  // Predicated region
  $region46: #{ptum_forward.1} parent=0 // pred_check
    _
  $region47: #{ptum_forward.1} parent=0 // pred_check_branch
    %48 = sbr.rel (0) target = $region49
  $region48: #{ptum_forward.1} parent=0 // pred_region
    _
  $region49: #{ptum_forward.1} parent=0 // pred_fallthru
    _
  // Predicated region
  $region50: #{ptum_forward.1} parent=0 // pred_check
    _
  $region51: #{ptum_forward.1} parent=0 // pred_check_branch
    %50 = sbr.rel (0) target = $region53
  $region52: #{ptum_forward.1} parent=0 // pred_region
    _
  $region53: #{ptum_forward.1} parent=0 // pred_fallthru
    _
  // Predicated region
  $region54: #{ptum_forward.1} parent=0 // pred_check
    _
  $region55: #{ptum_forward.1} parent=0 // pred_check_branch
    %52 = sbr.rel (0) target = $region57
  $region56: #{ptum_forward.1} parent=0 // pred_region
    _
  $region57: #{ptum_forward.1} parent=0 // pred_fallthru
    _
  // Predicated region
  $region58: #{ptum_forward.1} parent=0 // pred_check
    _
  $region59: #{ptum_forward.1} parent=0 // pred_check_branch
    %54 = sbr.rel (0) target = $region61
  $region60: #{ptum_forward.1} parent=0 // pred_region
    _
  $region61: #{ptum_forward.1} parent=0 // pred_fallthru
    _
  // Predicated region
  $region62: #{ptum_forward.1} parent=0 // pred_check
    _
  $region63: #{ptum_forward.1} parent=0 // pred_check_branch
    %56 = sbr.rel (0) target = $region65
  $region64: #{ptum_forward.1} parent=0 // pred_region
    _
  $region65: #{ptum_forward.1} parent=0 // pred_fallthru
    _
  // Predicated region
  $region66: #{ptum_forward.1} parent=0 // pred_check
    _
  $region67: #{ptum_forward.1} parent=0 // pred_check_branch
    %58 = sbr.rel (0) target = $region69
  $region68: #{ptum_forward.1} parent=0 // pred_region
    _
  $region69: #{ptum_forward.1} parent=0 // pred_fallthru
    _
  // Predicated region
  $region70: #{ptum_forward.1} parent=0 // pred_check
    _
  $region71: #{ptum_forward.1} parent=0 // pred_check_branch
    %60 = sbr.rel (0) target = $region73
  $region72: #{ptum_forward.1} parent=0 // pred_region
    _
  $region73: #{ptum_forward.1} parent=0 // pred_fallthru
    _
  // Predicated region
  $region74: #{ptum_forward.1} parent=0 // pred_check
    _
  $region75: #{ptum_forward.1} parent=0 // pred_check_branch
    %62 = sbr.rel (0) target = $region77
  $region76: #{ptum_forward.1} parent=0 // pred_region
    _
  $region77: #{ptum_forward.1} parent=0 // pred_fallthru
    _
  // Predicated region
  $region78: #{ptum_forward.1} parent=0 // pred_check
    _
  $region79: #{ptum_forward.1} parent=0 // pred_check_branch
    %64 = sbr.rel (0) target = $region81
  $region80: #{ptum_forward.1} parent=0 // pred_region
    _
  $region81: #{ptum_forward.1} parent=0 // pred_fallthru
    _
  %v65 = vld [vmem:[%s0] sm:$0xff]
  %v66 = vld [vmem:[%s0 + $0x8] sm:$0xff]
  %v67 = vld [vmem:[%s1] sm:$0x1]
  %v68 = vld [vmem:[%s1 + $0x1] sm:$0x1]
  %v69 = vld [vmem:[%s1 + $0x2] sm:$0x1]
  %v70 = vld [vmem:[%s1 + $0x3] sm:$0x1]
  %v71 = vld [vmem:[%s1 + $0x4] sm:$0x1]
  %v72 = vld [vmem:[%s1 + $0x5] sm:$0x1]
  %v73 = vld [vmem:[%s1 + $0x6] sm:$0x1]
  %v74 = vld [vmem:[%s1 + $0x7] sm:$0x1]
  %v83 = vperm.slane %v67, 0
  %v84 = vperm.slane %v68, 0
  %v85 = vperm.slane %v69, 0
  %v86 = vperm.slane %v70, 0
  %v87 = vperm.slane %v71, 0
  %v88 = vperm.slane %v72, 0
  %v89 = vperm.slane %v73, 0
  %v90 = vperm.slane %v74, 0
  %v99 = vld [vmem:[%s4] sm:$0xff]
  %v100 = vld [vmem:[%s4 + $0x8] sm:$0xff]
  %v101 = vld [vmem:[%s4 + $0x10] sm:$0xff]
  %v102 = vld [vmem:[%s4 + $0x18] sm:$0xff]
  %v103 = vld [vmem:[%s5] sm:$0x1]
  %v105 = vperm.slane %v103, 0
  %vm107 = vcmask 261120
  %v109 = vsel %vm107, %v65, 0
  %v112 = vsel %vm107, %v66, 0
  %114 = vmatpush.msra.mxu0 0.0
  %115 = vmatpush.msra.mxu0 0.0
  %116 = vmatpush.msra.mxu0 0.0
  %117 = vmatpush.msra.mxu0 0.0
  %118 = vmatpush.msra.mxu0 0.0
  %119 = vmatpush.msra.mxu0 0.0
  %120 = vmatpush.msra.mxu0 0.0
  %121 = vmatpush.msra.mxu0 0.0
  %122 = vmatpush.msra.mxu0 0.0
  %123 = vmatpush.msra.mxu0 0.0
  %124 = vmatpush.msra.mxu0 0.0
  %125 = vmatpush.msra.mxu0 0.0
  %126 = vmatpush.msra.mxu0 %v102
  %127 = vmatpush.msra.mxu0 %v101
  %128 = vmatpush.msra.mxu0 %v100
  %129 = vmatpush.msra.mxu0 %v99
  %130 = vmatmul.f32.gmra.mxu0 %v109
  %v131 = vpop.f32.mrf.mxu0
  %v132 = vadd.f32 %v105, %v131
  %133 = vmatmul.f32.gmra.mxu0 %v112
  %v134 = vpop.f32.mrf.mxu0
  %v135 = vadd.f32 %v105, %v134
  %136 = vdwg.mxu0
  %s137 = scalar_lea.vmem %s4, 32
  %v138 = vld [vmem:[%s137] sm:$0xff]
  %v139 = vld [vmem:[%s137 + $0x8] sm:$0xff]
  %v140 = vld [vmem:[%s137 + $0x10] sm:$0xff]
  %v141 = vld [vmem:[%s137 + $0x18] sm:$0xff]
  %s142 = scalar_lea.vmem %s5, 1
  %v143 = vld [vmem:[%s142] sm:$0x1]
  %v145 = vperm.slane %v143, 0
  %147 = vmatpush.msra.mxu0 0.0
  %148 = vmatpush.msra.mxu0 0.0
  %149 = vmatpush.msra.mxu0 0.0
  %150 = vmatpush.msra.mxu0 0.0
  %151 = vmatpush.msra.mxu0 0.0
  %152 = vmatpush.msra.mxu0 0.0
  %153 = vmatpush.msra.mxu0 0.0
  %154 = vmatpush.msra.mxu0 0.0
  %155 = vmatpush.msra.mxu0 0.0
  %156 = vmatpush.msra.mxu0 0.0
  %157 = vmatpush.msra.mxu0 0.0
  %158 = vmatpush.msra.mxu0 0.0
  %159 = vmatpush.msra.mxu0 %v141
  %160 = vmatpush.msra.mxu0 %v140
  %161 = vmatpush.msra.mxu0 %v139
  %162 = vmatpush.msra.mxu0 %v138
  %163 = vmatmul.f32.gmra.mxu0 %v109
  %v164 = vpop.f32.mrf.mxu0
  %v165 = vadd.f32 %v145, %v164
  %166 = vmatmul.f32.gmra.mxu0 %v112
  %v167 = vpop.f32.mrf.mxu0
  %v168 = vadd.f32 %v145, %v167
  %169 = vdwg.mxu0
  %s170 = scalar_lea.vmem %s4, 64
  %v171 = vld [vmem:[%s170] sm:$0xff]
  %v172 = vld [vmem:[%s170 + $0x8] sm:$0xff]
  %v173 = vld [vmem:[%s170 + $0x10] sm:$0xff]
  %v174 = vld [vmem:[%s170 + $0x18] sm:$0xff]
  %s175 = scalar_lea.vmem %s5, 2
  %v176 = vld [vmem:[%s175] sm:$0x1]
  %v178 = vperm.slane %v176, 0
  %180 = vmatpush.msra.mxu0 0.0
  %181 = vmatpush.msra.mxu0 0.0
  %182 = vmatpush.msra.mxu0 0.0
  %183 = vmatpush.msra.mxu0 0.0
  %184 = vmatpush.msra.mxu0 0.0
  %185 = vmatpush.msra.mxu0 0.0
  %186 = vmatpush.msra.mxu0 0.0
  %187 = vmatpush.msra.mxu0 0.0
  %188 = vmatpush.msra.mxu0 0.0
  %189 = vmatpush.msra.mxu0 0.0
  %190 = vmatpush.msra.mxu0 0.0
  %191 = vmatpush.msra.mxu0 0.0
  %192 = vmatpush.msra.mxu0 %v174
  %193 = vmatpush.msra.mxu0 %v173
  %194 = vmatpush.msra.mxu0 %v172
  %195 = vmatpush.msra.mxu0 %v171
  %196 = vmatmul.f32.gmra.mxu0 %v109
  %v197 = vpop.f32.mrf.mxu0
  %v198 = vadd.f32 %v178, %v197
  %199 = vmatmul.f32.gmra.mxu0 %v112
  %v200 = vpop.f32.mrf.mxu0
  %v201 = vadd.f32 %v178, %v200
  %202 = vdwg.mxu0
  %s203 = scalar_lea.vmem %s4, 96
  %v204 = vld [vmem:[%s203] sm:$0xff]
  %v205 = vld [vmem:[%s203 + $0x8] sm:$0xff]
  %v206 = vld [vmem:[%s203 + $0x10] sm:$0xff]
  %v207 = vld [vmem:[%s203 + $0x18] sm:$0xff]
  %s208 = scalar_lea.vmem %s5, 3
  %v209 = vld [vmem:[%s208] sm:$0x1]
  %v211 = vperm.slane %v209, 0
  %213 = vmatpush.msra.mxu0 0.0
  %214 = vmatpush.msra.mxu0 0.0
  %215 = vmatpush.msra.mxu0 0.0
  %216 = vmatpush.msra.mxu0 0.0
  %217 = vmatpush.msra.mxu0 0.0
  %218 = vmatpush.msra.mxu0 0.0
  %219 = vmatpush.msra.mxu0 0.0
  %220 = vmatpush.msra.mxu0 0.0
  %221 = vmatpush.msra.mxu0 0.0
  %222 = vmatpush.msra.mxu0 0.0
  %223 = vmatpush.msra.mxu0 0.0
  %224 = vmatpush.msra.mxu0 0.0
  %225 = vmatpush.msra.mxu0 %v207
  %226 = vmatpush.msra.mxu0 %v206
  %227 = vmatpush.msra.mxu0 %v205
  %228 = vmatpush.msra.mxu0 %v204
  %229 = vmatmul.f32.gmra.mxu0 %v109
  %v230 = vpop.f32.mrf.mxu0
  %v231 = vadd.f32 %v211, %v230
  %232 = vmatmul.f32.gmra.mxu0 %v112
  %v233 = vpop.f32.mrf.mxu0
  %v234 = vadd.f32 %v211, %v233
  %235 = vdwg.mxu0
  %v236 = vld [vmem:[%s6] sm:$0xff]
  %v237 = vld [vmem:[%s6 + $0x8] sm:$0xff]
  %v238 = vld [vmem:[%s6 + $0x10] sm:$0xff]
  %v239 = vld [vmem:[%s6 + $0x18] sm:$0xff]
  %v240 = vld [vmem:[%s7] sm:$0x1]
  %v242 = vperm.slane %v240, 0
  %244 = vmatpush.msra.mxu0 0.0
  %245 = vmatpush.msra.mxu0 0.0
  %246 = vmatpush.msra.mxu0 0.0
  %247 = vmatpush.msra.mxu0 0.0
  %248 = vmatpush.msra.mxu0 0.0
  %249 = vmatpush.msra.mxu0 0.0
  %250 = vmatpush.msra.mxu0 0.0
  %251 = vmatpush.msra.mxu0 0.0
  %252 = vmatpush.msra.mxu0 0.0
  %253 = vmatpush.msra.mxu0 0.0
  %254 = vmatpush.msra.mxu0 0.0
  %255 = vmatpush.msra.mxu0 0.0
  %256 = vmatpush.msra.mxu0 %v239
  %257 = vmatpush.msra.mxu0 %v238
  %258 = vmatpush.msra.mxu0 %v237
  %259 = vmatpush.msra.mxu0 %v236
  %260 = vmatmul.f32.gmra.mxu0 %v109
  %v261 = vpop.f32.mrf.mxu0
  %v262 = vadd.f32 %v242, %v261
  %263 = vmatmul.f32.gmra.mxu0 %v112
  %v264 = vpop.f32.mrf.mxu0
  %v265 = vadd.f32 %v242, %v264
  %266 = vdwg.mxu0
  %s267 = scalar_lea.vmem %s6, 32
  %v268 = vld [vmem:[%s267] sm:$0xff]
  %v269 = vld [vmem:[%s267 + $0x8] sm:$0xff]
  %v270 = vld [vmem:[%s267 + $0x10] sm:$0xff]
  %v271 = vld [vmem:[%s267 + $0x18] sm:$0xff]
  %s272 = scalar_lea.vmem %s7, 1
  %v273 = vld [vmem:[%s272] sm:$0x1]
  %v275 = vperm.slane %v273, 0
  %277 = vmatpush.msra.mxu0 0.0
  %278 = vmatpush.msra.mxu0 0.0
  %279 = vmatpush.msra.mxu0 0.0
  %280 = vmatpush.msra.mxu0 0.0
  %281 = vmatpush.msra.mxu0 0.0
  %282 = vmatpush.msra.mxu0 0.0
  %283 = vmatpush.msra.mxu0 0.0
  %284 = vmatpush.msra.mxu0 0.0
  %285 = vmatpush.msra.mxu0 0.0
  %286 = vmatpush.msra.mxu0 0.0
  %287 = vmatpush.msra.mxu0 0.0
  %288 = vmatpush.msra.mxu0 0.0
  %289 = vmatpush.msra.mxu0 %v271
  %290 = vmatpush.msra.mxu0 %v270
  %291 = vmatpush.msra.mxu0 %v269
  %292 = vmatpush.msra.mxu0 %v268
  %293 = vmatmul.f32.gmra.mxu0 %v109
  %v294 = vpop.f32.mrf.mxu0
  %v295 = vadd.f32 %v275, %v294
  %296 = vmatmul.f32.gmra.mxu0 %v112
  %v297 = vpop.f32.mrf.mxu0
  %v298 = vadd.f32 %v275, %v297
  %299 = vdwg.mxu0
  %s300 = scalar_lea.vmem %s6, 64
  %v301 = vld [vmem:[%s300] sm:$0xff]
  %v302 = vld [vmem:[%s300 + $0x8] sm:$0xff]
  %v303 = vld [vmem:[%s300 + $0x10] sm:$0xff]
  %v304 = vld [vmem:[%s300 + $0x18] sm:$0xff]
  %s305 = scalar_lea.vmem %s7, 2
  %v306 = vld [vmem:[%s305] sm:$0x1]
  %v308 = vperm.slane %v306, 0
  %310 = vmatpush.msra.mxu0 0.0
  %311 = vmatpush.msra.mxu0 0.0
  %312 = vmatpush.msra.mxu0 0.0
  %313 = vmatpush.msra.mxu0 0.0
  %314 = vmatpush.msra.mxu0 0.0
  %315 = vmatpush.msra.mxu0 0.0
  %316 = vmatpush.msra.mxu0 0.0
  %317 = vmatpush.msra.mxu0 0.0
  %318 = vmatpush.msra.mxu0 0.0
  %319 = vmatpush.msra.mxu0 0.0
  %320 = vmatpush.msra.mxu0 0.0
  %321 = vmatpush.msra.mxu0 0.0
  %322 = vmatpush.msra.mxu0 %v304
  %323 = vmatpush.msra.mxu0 %v303
  %324 = vmatpush.msra.mxu0 %v302
  %325 = vmatpush.msra.mxu0 %v301
  %326 = vmatmul.f32.gmra.mxu0 %v109
  %v327 = vpop.f32.mrf.mxu0
  %v328 = vadd.f32 %v308, %v327
  %329 = vmatmul.f32.gmra.mxu0 %v112
  %v330 = vpop.f32.mrf.mxu0
  %v331 = vadd.f32 %v308, %v330
  %332 = vdwg.mxu0
  %s333 = scalar_lea.vmem %s6, 96
  %v334 = vld [vmem:[%s333] sm:$0xff]
  %v335 = vld [vmem:[%s333 + $0x8] sm:$0xff]
  %v336 = vld [vmem:[%s333 + $0x10] sm:$0xff]
  %v337 = vld [vmem:[%s333 + $0x18] sm:$0xff]
  %s338 = scalar_lea.vmem %s7, 3
  %v339 = vld [vmem:[%s338] sm:$0x1]
  %v341 = vperm.slane %v339, 0
  %343 = vmatpush.msra.mxu0 0.0
  %344 = vmatpush.msra.mxu0 0.0
  %345 = vmatpush.msra.mxu0 0.0
  %346 = vmatpush.msra.mxu0 0.0
  %347 = vmatpush.msra.mxu0 0.0
  %348 = vmatpush.msra.mxu0 0.0
  %349 = vmatpush.msra.mxu0 0.0
  %350 = vmatpush.msra.mxu0 0.0
  %351 = vmatpush.msra.mxu0 0.0
  %352 = vmatpush.msra.mxu0 0.0
  %353 = vmatpush.msra.mxu0 0.0
  %354 = vmatpush.msra.mxu0 0.0
  %355 = vmatpush.msra.mxu0 %v337
  %356 = vmatpush.msra.mxu0 %v336
  %357 = vmatpush.msra.mxu0 %v335
  %358 = vmatpush.msra.mxu0 %v334
  %359 = vmatmul.f32.gmra.mxu0 %v109
  %v360 = vpop.f32.mrf.mxu0
  %v361 = vadd.f32 %v341, %v360
  %362 = vmatmul.f32.gmra.mxu0 %v112
  %v363 = vpop.f32.mrf.mxu0
  %v364 = vadd.f32 %v341, %v363
  %365 = vdwg.mxu0
  %v366 = vld [vmem:[%s8] sm:$0xff]
  %v367 = vld [vmem:[%s8 + $0x8] sm:$0xff]
  %v368 = vld [vmem:[%s8 + $0x10] sm:$0xff]
  %v369 = vld [vmem:[%s8 + $0x18] sm:$0xff]
  %v370 = vld [vmem:[%s9] sm:$0x1]
  %v372 = vperm.slane %v370, 0
  %374 = vmatpush.msra.mxu0 0.0
  %375 = vmatpush.msra.mxu0 0.0
  %376 = vmatpush.msra.mxu0 0.0
  %377 = vmatpush.msra.mxu0 0.0
  %378 = vmatpush.msra.mxu0 0.0
  %379 = vmatpush.msra.mxu0 0.0
  %380 = vmatpush.msra.mxu0 0.0
  %381 = vmatpush.msra.mxu0 0.0
  %382 = vmatpush.msra.mxu0 0.0
  %383 = vmatpush.msra.mxu0 0.0
  %384 = vmatpush.msra.mxu0 0.0
  %385 = vmatpush.msra.mxu0 0.0
  %386 = vmatpush.msra.mxu0 %v369
  %387 = vmatpush.msra.mxu0 %v368
  %388 = vmatpush.msra.mxu0 %v367
  %389 = vmatpush.msra.mxu0 %v366
  %390 = vmatmul.f32.gmra.mxu0 %v109
  %v391 = vpop.f32.mrf.mxu0
  %v392 = vadd.f32 %v372, %v391
  %393 = vmatmul.f32.gmra.mxu0 %v112
  %v394 = vpop.f32.mrf.mxu0
  %v395 = vadd.f32 %v372, %v394
  %396 = vdwg.mxu0
  %s397 = scalar_lea.vmem %s8, 32
  %v398 = vld [vmem:[%s397] sm:$0xff]
  %v399 = vld [vmem:[%s397 + $0x8] sm:$0xff]
  %v400 = vld [vmem:[%s397 + $0x10] sm:$0xff]
  %v401 = vld [vmem:[%s397 + $0x18] sm:$0xff]
  %s402 = scalar_lea.vmem %s9, 1
  %v403 = vld [vmem:[%s402] sm:$0x1]
  %v405 = vperm.slane %v403, 0
  %407 = vmatpush.msra.mxu0 0.0
  %408 = vmatpush.msra.mxu0 0.0
  %409 = vmatpush.msra.mxu0 0.0
  %410 = vmatpush.msra.mxu0 0.0
  %411 = vmatpush.msra.mxu0 0.0
  %412 = vmatpush.msra.mxu0 0.0
  %413 = vmatpush.msra.mxu0 0.0
  %414 = vmatpush.msra.mxu0 0.0
  %415 = vmatpush.msra.mxu0 0.0
  %416 = vmatpush.msra.mxu0 0.0
  %417 = vmatpush.msra.mxu0 0.0
  %418 = vmatpush.msra.mxu0 0.0
  %419 = vmatpush.msra.mxu0 %v401
  %420 = vmatpush.msra.mxu0 %v400
  %421 = vmatpush.msra.mxu0 %v399
  %422 = vmatpush.msra.mxu0 %v398
  %423 = vmatmul.f32.gmra.mxu0 %v109
  %v424 = vpop.f32.mrf.mxu0
  %v425 = vadd.f32 %v405, %v424
  %426 = vmatmul.f32.gmra.mxu0 %v112
  %v427 = vpop.f32.mrf.mxu0
  %v428 = vadd.f32 %v405, %v427
  %429 = vdwg.mxu0
  %s430 = scalar_lea.vmem %s8, 64
  %v431 = vld [vmem:[%s430] sm:$0xff]
  %v432 = vld [vmem:[%s430 + $0x8] sm:$0xff]
  %v433 = vld [vmem:[%s430 + $0x10] sm:$0xff]
  %v434 = vld [vmem:[%s430 + $0x18] sm:$0xff]
  %s435 = scalar_lea.vmem %s9, 2
  %v436 = vld [vmem:[%s435] sm:$0x1]
  %v438 = vperm.slane %v436, 0
  %440 = vmatpush.msra.mxu0 0.0
  %441 = vmatpush.msra.mxu0 0.0
  %442 = vmatpush.msra.mxu0 0.0
  %443 = vmatpush.msra.mxu0 0.0
  %444 = vmatpush.msra.mxu0 0.0
  %445 = vmatpush.msra.mxu0 0.0
  %446 = vmatpush.msra.mxu0 0.0
  %447 = vmatpush.msra.mxu0 0.0
  %448 = vmatpush.msra.mxu0 0.0
  %449 = vmatpush.msra.mxu0 0.0
  %450 = vmatpush.msra.mxu0 0.0
  %451 = vmatpush.msra.mxu0 0.0
  %452 = vmatpush.msra.mxu0 %v434
  %453 = vmatpush.msra.mxu0 %v433
  %454 = vmatpush.msra.mxu0 %v432
  %455 = vmatpush.msra.mxu0 %v431
  %456 = vmatmul.f32.gmra.mxu0 %v109
  %v457 = vpop.f32.mrf.mxu0
  %v458 = vadd.f32 %v438, %v457
  %459 = vmatmul.f32.gmra.mxu0 %v112
  %v460 = vpop.f32.mrf.mxu0
  %v461 = vadd.f32 %v438, %v460
  %462 = vdwg.mxu0
  %s463 = scalar_lea.vmem %s8, 96
  %v464 = vld [vmem:[%s463] sm:$0xff]
  %v465 = vld [vmem:[%s463 + $0x8] sm:$0xff]
  %v466 = vld [vmem:[%s463 + $0x10] sm:$0xff]
  %v467 = vld [vmem:[%s463 + $0x18] sm:$0xff]
  %s468 = scalar_lea.vmem %s9, 3
  %v469 = vld [vmem:[%s468] sm:$0x1]
  %v471 = vperm.slane %v469, 0
  %473 = vmatpush.msra.mxu0 0.0
  %474 = vmatpush.msra.mxu0 0.0
  %475 = vmatpush.msra.mxu0 0.0
  %476 = vmatpush.msra.mxu0 0.0
  %477 = vmatpush.msra.mxu0 0.0
  %478 = vmatpush.msra.mxu0 0.0
  %479 = vmatpush.msra.mxu0 0.0
  %480 = vmatpush.msra.mxu0 0.0
  %481 = vmatpush.msra.mxu0 0.0
  %482 = vmatpush.msra.mxu0 0.0
  %483 = vmatpush.msra.mxu0 0.0
  %484 = vmatpush.msra.mxu0 0.0
  %485 = vmatpush.msra.mxu0 %v467
  %486 = vmatpush.msra.mxu0 %v466
  %487 = vmatpush.msra.mxu0 %v465
  %488 = vmatpush.msra.mxu0 %v464
  %489 = vmatmul.f32.gmra.mxu0 %v109
  %v490 = vpop.f32.mrf.mxu0
  %v491 = vadd.f32 %v471, %v490
  %492 = vmatmul.f32.gmra.mxu0 %v112
  %v493 = vpop.f32.mrf.mxu0
  %v494 = vadd.f32 %v471, %v493
  %495 = vdwg.mxu0
  %vm496 = vcmask 64512
  %v498 = vsel %vm496, %v132, 0
  %v501 = vsel %vm496, %v262, 0
  %503 = vmatpush.xpose.msra.mxu0 0.0
  %504 = vmatpush.xpose.msra.mxu0 0.0
  %505 = vmatpush.xpose.msra.mxu0 0.0
  %506 = vmatpush.xpose.msra.mxu0 0.0
  %507 = vmatpush.xpose.msra.mxu0 0.0
  %508 = vmatpush.xpose.msra.mxu0 0.0
  %509 = vmatpush.xpose.msra.mxu0 0.0
  %510 = vmatpush.xpose.msra.mxu0 0.0
  %511 = vmatpush.xpose.msra.mxu0 0.0
  %512 = vmatpush.xpose.msra.mxu0 0.0
  %513 = vmatpush.xpose.msra.mxu0 0.0
  %514 = vmatpush.xpose.msra.mxu0 0.0
  %515 = vmatpush.xpose.msra.mxu0 0.0
  %516 = vmatpush.xpose.msra.mxu0 0.0
  %517 = vmatpush.xpose.msra.mxu0 0.0
  %518 = vmatpush.xpose.msra.mxu0 %v501
  %519 = vmatmul.f32.gmra.mxu0 %v498
  %v520 = vpop.f32.mrf.mxu0
  %v521 = vadd.f32 %v83, %v520
  %522 = vdwg.mxu0
  %v524 = vsel %vm496, %v135, 0
  %v527 = vsel %vm496, %v265, 0
  %529 = vmatpush.xpose.msra.mxu0 0.0
  %530 = vmatpush.xpose.msra.mxu0 0.0
  %531 = vmatpush.xpose.msra.mxu0 0.0
  %532 = vmatpush.xpose.msra.mxu0 0.0
  %533 = vmatpush.xpose.msra.mxu0 0.0
  %534 = vmatpush.xpose.msra.mxu0 0.0
  %535 = vmatpush.xpose.msra.mxu0 0.0
  %536 = vmatpush.xpose.msra.mxu0 0.0
  %537 = vmatpush.xpose.msra.mxu0 0.0
  %538 = vmatpush.xpose.msra.mxu0 0.0
  %539 = vmatpush.xpose.msra.mxu0 0.0
  %540 = vmatpush.xpose.msra.mxu0 0.0
  %541 = vmatpush.xpose.msra.mxu0 0.0
  %542 = vmatpush.xpose.msra.mxu0 0.0
  %543 = vmatpush.xpose.msra.mxu0 0.0
  %544 = vmatpush.xpose.msra.mxu0 %v527
  %545 = vmatmul.f32.gmra.mxu0 %v524
  %v546 = vpop.f32.mrf.mxu0
  %v547 = vadd.f32 %v84, %v546
  %548 = vdwg.mxu0
  %v550 = vsel %vm496, %v165, 0
  %v553 = vsel %vm496, %v295, 0
  %555 = vmatpush.xpose.msra.mxu0 0.0
  %556 = vmatpush.xpose.msra.mxu0 0.0
  %557 = vmatpush.xpose.msra.mxu0 0.0
  %558 = vmatpush.xpose.msra.mxu0 0.0
  %559 = vmatpush.xpose.msra.mxu0 0.0
  %560 = vmatpush.xpose.msra.mxu0 0.0
  %561 = vmatpush.xpose.msra.mxu0 0.0
  %562 = vmatpush.xpose.msra.mxu0 0.0
  %563 = vmatpush.xpose.msra.mxu0 0.0
  %564 = vmatpush.xpose.msra.mxu0 0.0
  %565 = vmatpush.xpose.msra.mxu0 0.0
  %566 = vmatpush.xpose.msra.mxu0 0.0
  %567 = vmatpush.xpose.msra.mxu0 0.0
  %568 = vmatpush.xpose.msra.mxu0 0.0
  %569 = vmatpush.xpose.msra.mxu0 0.0
  %570 = vmatpush.xpose.msra.mxu0 %v553
  %571 = vmatmul.f32.gmra.mxu0 %v550
  %v572 = vpop.f32.mrf.mxu0
  %v573 = vadd.f32 %v85, %v572
  %574 = vdwg.mxu0
  %v576 = vsel %vm496, %v168, 0
  %v579 = vsel %vm496, %v298, 0
  %581 = vmatpush.xpose.msra.mxu0 0.0
  %582 = vmatpush.xpose.msra.mxu0 0.0
  %583 = vmatpush.xpose.msra.mxu0 0.0
  %584 = vmatpush.xpose.msra.mxu0 0.0
  %585 = vmatpush.xpose.msra.mxu0 0.0
  %586 = vmatpush.xpose.msra.mxu0 0.0
  %587 = vmatpush.xpose.msra.mxu0 0.0
  %588 = vmatpush.xpose.msra.mxu0 0.0
  %589 = vmatpush.xpose.msra.mxu0 0.0
  %590 = vmatpush.xpose.msra.mxu0 0.0
  %591 = vmatpush.xpose.msra.mxu0 0.0
  %592 = vmatpush.xpose.msra.mxu0 0.0
  %593 = vmatpush.xpose.msra.mxu0 0.0
  %594 = vmatpush.xpose.msra.mxu0 0.0
  %595 = vmatpush.xpose.msra.mxu0 0.0
  %596 = vmatpush.xpose.msra.mxu0 %v579
  %597 = vmatmul.f32.gmra.mxu0 %v576
  %v598 = vpop.f32.mrf.mxu0
  %v599 = vadd.f32 %v86, %v598
  %600 = vdwg.mxu0
  %v602 = vsel %vm496, %v198, 0
  %v605 = vsel %vm496, %v328, 0
  %607 = vmatpush.xpose.msra.mxu0 0.0
  %608 = vmatpush.xpose.msra.mxu0 0.0
  %609 = vmatpush.xpose.msra.mxu0 0.0
  %610 = vmatpush.xpose.msra.mxu0 0.0
  %611 = vmatpush.xpose.msra.mxu0 0.0
  %612 = vmatpush.xpose.msra.mxu0 0.0
  %613 = vmatpush.xpose.msra.mxu0 0.0
  %614 = vmatpush.xpose.msra.mxu0 0.0
  %615 = vmatpush.xpose.msra.mxu0 0.0
  %616 = vmatpush.xpose.msra.mxu0 0.0
  %617 = vmatpush.xpose.msra.mxu0 0.0
  %618 = vmatpush.xpose.msra.mxu0 0.0
  %619 = vmatpush.xpose.msra.mxu0 0.0
  %620 = vmatpush.xpose.msra.mxu0 0.0
  %621 = vmatpush.xpose.msra.mxu0 0.0
  %622 = vmatpush.xpose.msra.mxu0 %v605
  %623 = vmatmul.f32.gmra.mxu0 %v602
  %v624 = vpop.f32.mrf.mxu0
  %v625 = vadd.f32 %v87, %v624
  %626 = vdwg.mxu0
  %v628 = vsel %vm496, %v201, 0
  %v631 = vsel %vm496, %v331, 0
  %633 = vmatpush.xpose.msra.mxu0 0.0
  %634 = vmatpush.xpose.msra.mxu0 0.0
  %635 = vmatpush.xpose.msra.mxu0 0.0
  %636 = vmatpush.xpose.msra.mxu0 0.0
  %637 = vmatpush.xpose.msra.mxu0 0.0
  %638 = vmatpush.xpose.msra.mxu0 0.0
  %639 = vmatpush.xpose.msra.mxu0 0.0
  %640 = vmatpush.xpose.msra.mxu0 0.0
  %641 = vmatpush.xpose.msra.mxu0 0.0
  %642 = vmatpush.xpose.msra.mxu0 0.0
  %643 = vmatpush.xpose.msra.mxu0 0.0
  %644 = vmatpush.xpose.msra.mxu0 0.0
  %645 = vmatpush.xpose.msra.mxu0 0.0
  %646 = vmatpush.xpose.msra.mxu0 0.0
  %647 = vmatpush.xpose.msra.mxu0 0.0
  %648 = vmatpush.xpose.msra.mxu0 %v631
  %649 = vmatmul.f32.gmra.mxu0 %v628
  %v650 = vpop.f32.mrf.mxu0
  %v651 = vadd.f32 %v88, %v650
  %652 = vdwg.mxu0
  %v654 = vsel %vm496, %v231, 0
  %v657 = vsel %vm496, %v361, 0
  %659 = vmatpush.xpose.msra.mxu0 0.0
  %660 = vmatpush.xpose.msra.mxu0 0.0
  %661 = vmatpush.xpose.msra.mxu0 0.0
  %662 = vmatpush.xpose.msra.mxu0 0.0
  %663 = vmatpush.xpose.msra.mxu0 0.0
  %664 = vmatpush.xpose.msra.mxu0 0.0
  %665 = vmatpush.xpose.msra.mxu0 0.0
  %666 = vmatpush.xpose.msra.mxu0 0.0
  %667 = vmatpush.xpose.msra.mxu0 0.0
  %668 = vmatpush.xpose.msra.mxu0 0.0
  %669 = vmatpush.xpose.msra.mxu0 0.0
  %670 = vmatpush.xpose.msra.mxu0 0.0
  %671 = vmatpush.xpose.msra.mxu0 0.0
  %672 = vmatpush.xpose.msra.mxu0 0.0
  %673 = vmatpush.xpose.msra.mxu0 0.0
  %674 = vmatpush.xpose.msra.mxu0 %v657
  %675 = vmatmul.f32.gmra.mxu0 %v654
  %v676 = vpop.f32.mrf.mxu0
  %v677 = vadd.f32 %v89, %v676
  %678 = vdwg.mxu0
  %v680 = vsel %vm496, %v234, 0
  %v683 = vsel %vm496, %v364, 0
  %685 = vmatpush.xpose.msra.mxu0 0.0
  %686 = vmatpush.xpose.msra.mxu0 0.0
  %687 = vmatpush.xpose.msra.mxu0 0.0
  %688 = vmatpush.xpose.msra.mxu0 0.0
  %689 = vmatpush.xpose.msra.mxu0 0.0
  %690 = vmatpush.xpose.msra.mxu0 0.0
  %691 = vmatpush.xpose.msra.mxu0 0.0
  %692 = vmatpush.xpose.msra.mxu0 0.0
  %693 = vmatpush.xpose.msra.mxu0 0.0
  %694 = vmatpush.xpose.msra.mxu0 0.0
  %695 = vmatpush.xpose.msra.mxu0 0.0
  %696 = vmatpush.xpose.msra.mxu0 0.0
  %697 = vmatpush.xpose.msra.mxu0 0.0
  %698 = vmatpush.xpose.msra.mxu0 0.0
  %699 = vmatpush.xpose.msra.mxu0 0.0
  %700 = vmatpush.xpose.msra.mxu0 %v683
  %701 = vmatmul.f32.gmra.mxu0 %v680
  %v702 = vpop.f32.mrf.mxu0
  %v703 = vadd.f32 %v90, %v702
  %704 = vdwg.mxu0
  %v705 = vsel %vm496, %v521, -inf
  %706 = vmax.xlane.f32.xlu0 %v705
  %v707 = vpop.xlane.xlu0 %706
  %v708 = vsel %vm496, %v547, -inf
  %709 = vmax.xlane.f32.xlu0 %v708
  %v710 = vpop.xlane.xlu0 %709
  %v711 = vsel %vm496, %v573, -inf
  %712 = vmax.xlane.f32.xlu0 %v711
  %v713 = vpop.xlane.xlu0 %712
  %v714 = vsel %vm496, %v599, -inf
  %715 = vmax.xlane.f32.xlu0 %v714
  %v716 = vpop.xlane.xlu0 %715
  %v717 = vsel %vm496, %v625, -inf
  %718 = vmax.xlane.f32.xlu0 %v717
  %v719 = vpop.xlane.xlu0 %718
  %v720 = vsel %vm496, %v651, -inf
  %721 = vmax.xlane.f32.xlu0 %v720
  %v722 = vpop.xlane.xlu0 %721
  %v723 = vsel %vm496, %v677, -inf
  %724 = vmax.xlane.f32.xlu0 %v723
  %v725 = vpop.xlane.xlu0 %724
  %v726 = vsel %vm496, %v703, -inf
  %727 = vmax.xlane.f32.xlu0 %v726
  %v728 = vpop.xlane.xlu0 %727
  %v729 = vsub.f32 %v521, %v707
  %v730 = vsub.f32 %v547, %v710
  %v731 = vsub.f32 %v573, %v713
  %v732 = vsub.f32 %v599, %v716
  %v733 = vsub.f32 %v625, %v719
  %v734 = vsub.f32 %v651, %v722
  %v735 = vsub.f32 %v677, %v725
  %v736 = vsub.f32 %v703, %v728
  %v737 = vmul.f32 %v729, 1.442695
  %v738 = vpow.pop %v737
  %v739 = vmul.f32 %v730, 1.442695
  %v740 = vpow.pop %v739
  %v741 = vmul.f32 %v731, 1.442695
  %v742 = vpow.pop %v741
  %v743 = vmul.f32 %v732, 1.442695
  %v744 = vpow.pop %v743
  %v745 = vmul.f32 %v733, 1.442695
  %v746 = vpow.pop %v745
  %v747 = vmul.f32 %v734, 1.442695
  %v748 = vpow.pop %v747
  %v749 = vmul.f32 %v735, 1.442695
  %v750 = vpow.pop %v749
  %v751 = vmul.f32 %v736, 1.442695
  %v752 = vpow.pop %v751
  %v753 = vsel %vm496, %v738, 0.0
  %754 = vadd.xlane.f32.xlu0 %v753
  %v755 = vpop.xlane.xlu0 %754
  %v756 = vsel %vm496, %v740, 0.0
  %757 = vadd.xlane.f32.xlu0 %v756
  %v758 = vpop.xlane.xlu0 %757
  %v759 = vsel %vm496, %v742, 0.0
  %760 = vadd.xlane.f32.xlu0 %v759
  %v761 = vpop.xlane.xlu0 %760
  %v762 = vsel %vm496, %v744, 0.0
  %763 = vadd.xlane.f32.xlu0 %v762
  %v764 = vpop.xlane.xlu0 %763
  %v765 = vsel %vm496, %v746, 0.0
  %766 = vadd.xlane.f32.xlu0 %v765
  %v767 = vpop.xlane.xlu0 %766
  %v768 = vsel %vm496, %v748, 0.0
  %769 = vadd.xlane.f32.xlu0 %v768
  %v770 = vpop.xlane.xlu0 %769
  %v771 = vsel %vm496, %v750, 0.0
  %772 = vadd.xlane.f32.xlu0 %v771
  %v773 = vpop.xlane.xlu0 %772
  %v774 = vsel %vm496, %v752, 0.0
  %775 = vadd.xlane.f32.xlu0 %v774
  %v776 = vpop.xlane.xlu0 %775
  %v778 = vsel %vm496, %v738, 0
  %780 = vmatpush.msra.mxu0 0.0
  %781 = vmatpush.msra.mxu0 0.0
  %782 = vmatpush.msra.mxu0 0.0
  %783 = vmatpush.msra.mxu0 0.0
  %784 = vmatpush.msra.mxu0 0.0
  %785 = vmatpush.msra.mxu0 0.0
  %786 = vmatpush.msra.mxu0 0.0
  %787 = vmatpush.msra.mxu0 0.0
  %788 = vmatpush.msra.mxu0 0.0
  %789 = vmatpush.msra.mxu0 0.0
  %790 = vmatpush.msra.mxu0 0.0
  %791 = vmatpush.msra.mxu0 0.0
  %792 = vmatpush.msra.mxu0 0.0
  %793 = vmatpush.msra.mxu0 0.0
  %794 = vmatpush.msra.mxu0 0.0
  %795 = vmatpush.msra.mxu0 %v392
  %796 = vmatmul.f32.gmra.mxu0 %v778
  %v797 = vpop.f32.mrf.mxu0
  %v798 = vadd.f32 0.0, %v797
  %799 = vdwg.mxu0
  %v801 = vsel %vm496, %v740, 0
  %803 = vmatpush.msra.mxu0 0.0
  %804 = vmatpush.msra.mxu0 0.0
  %805 = vmatpush.msra.mxu0 0.0
  %806 = vmatpush.msra.mxu0 0.0
  %807 = vmatpush.msra.mxu0 0.0
  %808 = vmatpush.msra.mxu0 0.0
  %809 = vmatpush.msra.mxu0 0.0
  %810 = vmatpush.msra.mxu0 0.0
  %811 = vmatpush.msra.mxu0 0.0
  %812 = vmatpush.msra.mxu0 0.0
  %813 = vmatpush.msra.mxu0 0.0
  %814 = vmatpush.msra.mxu0 0.0
  %815 = vmatpush.msra.mxu0 0.0
  %816 = vmatpush.msra.mxu0 0.0
  %817 = vmatpush.msra.mxu0 0.0
  %818 = vmatpush.msra.mxu0 %v395
  %819 = vmatmul.f32.gmra.mxu0 %v801
  %v820 = vpop.f32.mrf.mxu0
  %v821 = vadd.f32 0.0, %v820
  %822 = vdwg.mxu0
  %v824 = vsel %vm496, %v742, 0
  %826 = vmatpush.msra.mxu0 0.0
  %827 = vmatpush.msra.mxu0 0.0
  %828 = vmatpush.msra.mxu0 0.0
  %829 = vmatpush.msra.mxu0 0.0
  %830 = vmatpush.msra.mxu0 0.0
  %831 = vmatpush.msra.mxu0 0.0
  %832 = vmatpush.msra.mxu0 0.0
  %833 = vmatpush.msra.mxu0 0.0
  %834 = vmatpush.msra.mxu0 0.0
  %835 = vmatpush.msra.mxu0 0.0
  %836 = vmatpush.msra.mxu0 0.0
  %837 = vmatpush.msra.mxu0 0.0
  %838 = vmatpush.msra.mxu0 0.0
  %839 = vmatpush.msra.mxu0 0.0
  %840 = vmatpush.msra.mxu0 0.0
  %841 = vmatpush.msra.mxu0 %v425
  %842 = vmatmul.f32.gmra.mxu0 %v824
  %v843 = vpop.f32.mrf.mxu0
  %v844 = vadd.f32 0.0, %v843
  %845 = vdwg.mxu0
  %v847 = vsel %vm496, %v744, 0
  %849 = vmatpush.msra.mxu0 0.0
  %850 = vmatpush.msra.mxu0 0.0
  %851 = vmatpush.msra.mxu0 0.0
  %852 = vmatpush.msra.mxu0 0.0
  %853 = vmatpush.msra.mxu0 0.0
  %854 = vmatpush.msra.mxu0 0.0
  %855 = vmatpush.msra.mxu0 0.0
  %856 = vmatpush.msra.mxu0 0.0
  %857 = vmatpush.msra.mxu0 0.0
  %858 = vmatpush.msra.mxu0 0.0
  %859 = vmatpush.msra.mxu0 0.0
  %860 = vmatpush.msra.mxu0 0.0
  %861 = vmatpush.msra.mxu0 0.0
  %862 = vmatpush.msra.mxu0 0.0
  %863 = vmatpush.msra.mxu0 0.0
  %864 = vmatpush.msra.mxu0 %v428
  %865 = vmatmul.f32.gmra.mxu0 %v847
  %v866 = vpop.f32.mrf.mxu0
  %v867 = vadd.f32 0.0, %v866
  %868 = vdwg.mxu0
  %v870 = vsel %vm496, %v746, 0
  %872 = vmatpush.msra.mxu0 0.0
  %873 = vmatpush.msra.mxu0 0.0
  %874 = vmatpush.msra.mxu0 0.0
  %875 = vmatpush.msra.mxu0 0.0
  %876 = vmatpush.msra.mxu0 0.0
  %877 = vmatpush.msra.mxu0 0.0
  %878 = vmatpush.msra.mxu0 0.0
  %879 = vmatpush.msra.mxu0 0.0
  %880 = vmatpush.msra.mxu0 0.0
  %881 = vmatpush.msra.mxu0 0.0
  %882 = vmatpush.msra.mxu0 0.0
  %883 = vmatpush.msra.mxu0 0.0
  %884 = vmatpush.msra.mxu0 0.0
  %885 = vmatpush.msra.mxu0 0.0
  %886 = vmatpush.msra.mxu0 0.0
  %887 = vmatpush.msra.mxu0 %v458
  %888 = vmatmul.f32.gmra.mxu0 %v870
  %v889 = vpop.f32.mrf.mxu0
  %v890 = vadd.f32 0.0, %v889
  %891 = vdwg.mxu0
  %v893 = vsel %vm496, %v748, 0
  %895 = vmatpush.msra.mxu0 0.0
  %896 = vmatpush.msra.mxu0 0.0
  %897 = vmatpush.msra.mxu0 0.0
  %898 = vmatpush.msra.mxu0 0.0
  %899 = vmatpush.msra.mxu0 0.0
  %900 = vmatpush.msra.mxu0 0.0
  %901 = vmatpush.msra.mxu0 0.0
  %902 = vmatpush.msra.mxu0 0.0
  %903 = vmatpush.msra.mxu0 0.0
  %904 = vmatpush.msra.mxu0 0.0
  %905 = vmatpush.msra.mxu0 0.0
  %906 = vmatpush.msra.mxu0 0.0
  %907 = vmatpush.msra.mxu0 0.0
  %908 = vmatpush.msra.mxu0 0.0
  %909 = vmatpush.msra.mxu0 0.0
  %910 = vmatpush.msra.mxu0 %v461
  %911 = vmatmul.f32.gmra.mxu0 %v893
  %v912 = vpop.f32.mrf.mxu0
  %v913 = vadd.f32 0.0, %v912
  %914 = vdwg.mxu0
  %v916 = vsel %vm496, %v750, 0
  %918 = vmatpush.msra.mxu0 0.0
  %919 = vmatpush.msra.mxu0 0.0
  %920 = vmatpush.msra.mxu0 0.0
  %921 = vmatpush.msra.mxu0 0.0
  %922 = vmatpush.msra.mxu0 0.0
  %923 = vmatpush.msra.mxu0 0.0
  %924 = vmatpush.msra.mxu0 0.0
  %925 = vmatpush.msra.mxu0 0.0
  %926 = vmatpush.msra.mxu0 0.0
  %927 = vmatpush.msra.mxu0 0.0
  %928 = vmatpush.msra.mxu0 0.0
  %929 = vmatpush.msra.mxu0 0.0
  %930 = vmatpush.msra.mxu0 0.0
  %931 = vmatpush.msra.mxu0 0.0
  %932 = vmatpush.msra.mxu0 0.0
  %933 = vmatpush.msra.mxu0 %v491
  %934 = vmatmul.f32.gmra.mxu0 %v916
  %v935 = vpop.f32.mrf.mxu0
  %v936 = vadd.f32 0.0, %v935
  %937 = vdwg.mxu0
  %v939 = vsel %vm496, %v752, 0
  %941 = vmatpush.msra.mxu0 0.0
  %942 = vmatpush.msra.mxu0 0.0
  %943 = vmatpush.msra.mxu0 0.0
  %944 = vmatpush.msra.mxu0 0.0
  %945 = vmatpush.msra.mxu0 0.0
  %946 = vmatpush.msra.mxu0 0.0
  %947 = vmatpush.msra.mxu0 0.0
  %948 = vmatpush.msra.mxu0 0.0
  %949 = vmatpush.msra.mxu0 0.0
  %950 = vmatpush.msra.mxu0 0.0
  %951 = vmatpush.msra.mxu0 0.0
  %952 = vmatpush.msra.mxu0 0.0
  %953 = vmatpush.msra.mxu0 0.0
  %954 = vmatpush.msra.mxu0 0.0
  %955 = vmatpush.msra.mxu0 0.0
  %956 = vmatpush.msra.mxu0 %v494
  %957 = vmatmul.f32.gmra.mxu0 %v939
  %v958 = vpop.f32.mrf.mxu0
  %v959 = vadd.f32 0.0, %v958
  %960 = vdwg.mxu0
  %v961 = vrcp.pop %v755
  %v962 = vrcp.pop %v758
  %v963 = vrcp.pop %v761
  %v964 = vrcp.pop %v764
  %v965 = vrcp.pop %v767
  %v966 = vrcp.pop %v770
  %v967 = vrcp.pop %v773
  %v968 = vrcp.pop %v776
  %v969 = vmul.f32 %v798, %v961
  %v970 = vmul.f32 %v821, %v962
  %v971 = vmul.f32 %v844, %v963
  %v972 = vmul.f32 %v867, %v964
  %v973 = vmul.f32 %v890, %v965
  %v974 = vmul.f32 %v913, %v966
  %v975 = vmul.f32 %v936, %v967
  %v976 = vmul.f32 %v959, %v968
  %v977 = vld [vmem:[%s11] sm:$0x1]
  %v978 = vld [vmem:[%s10] sm:$0xff]
  %v980 = vsel %vm496, %v969, 0
  %v983 = vsel %vm496, %v970, 0
  %985 = vmatpush.msra.mxu0 0.0
  %986 = vmatpush.msra.mxu0 0.0
  %987 = vmatpush.msra.mxu0 0.0
  %988 = vmatpush.msra.mxu0 0.0
  %989 = vmatpush.msra.mxu0 0.0
  %990 = vmatpush.msra.mxu0 0.0
  %991 = vmatpush.msra.mxu0 0.0
  %992 = vmatpush.msra.mxu0 0.0
  %993 = vmatpush.msra.mxu0 0.0
  %994 = vmatpush.msra.mxu0 0.0
  %995 = vmatpush.msra.mxu0 0.0
  %996 = vmatpush.msra.mxu0 0.0
  %997 = vmatpush.msra.mxu0 0.0
  %998 = vmatpush.msra.mxu0 0.0
  %999 = vmatpush.msra.mxu0 0.0
  %1000 = vmatpush.msra.mxu0 %v978
  %1001 = vmatmul.f32.gmra.mxu0 %v980
  %v1002 = vpop.f32.mrf.mxu0
  %v1003 = vadd.f32 0.0, %v1002
  %1004 = vmatmul.f32.gmra.mxu0 %v983
  %v1005 = vpop.f32.mrf.mxu0
  %v1006 = vadd.f32 0.0, %v1005
  %1007 = vdwg.mxu0
  %v1009 = vperm.slane %v977, 0
  %v1011 = vadd.f32 %v1009, %v1003
  %v1012 = vadd.f32 %v1009, %v1006
  %s1013 = scalar_lea.vmem %s10, 8
  %v1014 = vld [vmem:[%s1013] sm:$0xff]
  %v1016 = vsel %vm496, %v971, 0
  %v1019 = vsel %vm496, %v972, 0
  %1021 = vmatpush.msra.mxu0 0.0
  %1022 = vmatpush.msra.mxu0 0.0
  %1023 = vmatpush.msra.mxu0 0.0
  %1024 = vmatpush.msra.mxu0 0.0
  %1025 = vmatpush.msra.mxu0 0.0
  %1026 = vmatpush.msra.mxu0 0.0
  %1027 = vmatpush.msra.mxu0 0.0
  %1028 = vmatpush.msra.mxu0 0.0
  %1029 = vmatpush.msra.mxu0 0.0
  %1030 = vmatpush.msra.mxu0 0.0
  %1031 = vmatpush.msra.mxu0 0.0
  %1032 = vmatpush.msra.mxu0 0.0
  %1033 = vmatpush.msra.mxu0 0.0
  %1034 = vmatpush.msra.mxu0 0.0
  %1035 = vmatpush.msra.mxu0 0.0
  %1036 = vmatpush.msra.mxu0 %v1014
  %1037 = vmatmul.f32.gmra.mxu0 %v1016
  %v1038 = vpop.f32.mrf.mxu0
  %v1039 = vadd.f32 0.0, %v1038
  %1040 = vmatmul.f32.gmra.mxu0 %v1019
  %v1041 = vpop.f32.mrf.mxu0
  %v1042 = vadd.f32 0.0, %v1041
  %1043 = vdwg.mxu0
  %v1044 = vadd.f32 %v1011, %v1039
  %v1045 = vadd.f32 %v1012, %v1042
  %s1046 = scalar_lea.vmem %s10, 16
  %v1047 = vld [vmem:[%s1046] sm:$0xff]
  %v1049 = vsel %vm496, %v973, 0
  %v1052 = vsel %vm496, %v974, 0
  %1054 = vmatpush.msra.mxu0 0.0
  %1055 = vmatpush.msra.mxu0 0.0
  %1056 = vmatpush.msra.mxu0 0.0
  %1057 = vmatpush.msra.mxu0 0.0
  %1058 = vmatpush.msra.mxu0 0.0
  %1059 = vmatpush.msra.mxu0 0.0
  %1060 = vmatpush.msra.mxu0 0.0
  %1061 = vmatpush.msra.mxu0 0.0
  %1062 = vmatpush.msra.mxu0 0.0
  %1063 = vmatpush.msra.mxu0 0.0
  %1064 = vmatpush.msra.mxu0 0.0
  %1065 = vmatpush.msra.mxu0 0.0
  %1066 = vmatpush.msra.mxu0 0.0
  %1067 = vmatpush.msra.mxu0 0.0
  %1068 = vmatpush.msra.mxu0 0.0
  %1069 = vmatpush.msra.mxu0 %v1047
  %1070 = vmatmul.f32.gmra.mxu0 %v1049
  %v1071 = vpop.f32.mrf.mxu0
  %v1072 = vadd.f32 0.0, %v1071
  %1073 = vmatmul.f32.gmra.mxu0 %v1052
  %v1074 = vpop.f32.mrf.mxu0
  %v1075 = vadd.f32 0.0, %v1074
  %1076 = vdwg.mxu0
  %v1077 = vadd.f32 %v1044, %v1072
  %v1078 = vadd.f32 %v1045, %v1075
  %s1079 = scalar_lea.vmem %s10, 24
  %v1080 = vld [vmem:[%s1079] sm:$0xff]
  %v1082 = vsel %vm496, %v975, 0
  %v1085 = vsel %vm496, %v976, 0
  %1087 = vmatpush.msra.mxu0 0.0
  %1088 = vmatpush.msra.mxu0 0.0
  %1089 = vmatpush.msra.mxu0 0.0
  %1090 = vmatpush.msra.mxu0 0.0
  %1091 = vmatpush.msra.mxu0 0.0
  %1092 = vmatpush.msra.mxu0 0.0
  %1093 = vmatpush.msra.mxu0 0.0
  %1094 = vmatpush.msra.mxu0 0.0
  %1095 = vmatpush.msra.mxu0 0.0
  %1096 = vmatpush.msra.mxu0 0.0
  %1097 = vmatpush.msra.mxu0 0.0
  %1098 = vmatpush.msra.mxu0 0.0
  %1099 = vmatpush.msra.mxu0 0.0
  %1100 = vmatpush.msra.mxu0 0.0
  %1101 = vmatpush.msra.mxu0 0.0
  %1102 = vmatpush.msra.mxu0 %v1080
  %1103 = vmatmul.f32.gmra.mxu0 %v1082
  %v1104 = vpop.f32.mrf.mxu0
  %v1105 = vadd.f32 0.0, %v1104
  %1106 = vmatmul.f32.gmra.mxu0 %v1085
  %v1107 = vpop.f32.mrf.mxu0
  %v1108 = vadd.f32 0.0, %v1107
  %1109 = vdwg.mxu0
  %v1110 = vadd.f32 %v1077, %v1105
  %v1111 = vadd.f32 %v1078, %v1108
  %v1112 = vadd.f32 %v65, %v1110
  %v1113 = vadd.f32 %v66, %v1111
  %v1114 = vld [vmem:[%s16] sm:$0x1]
  %v1115 = vld [vmem:[%s17] sm:$0x1]
  %v1116 = vsel %vm107, %v1112, 0.0
  %1117 = vadd.xlane.f32.xlu0 %v1116
  %v1118 = vpop.xlane.xlu0 %1117
  %v1119 = vsel %vm107, %v1113, 0.0
  %1120 = vadd.xlane.f32.xlu0 %v1119
  %v1121 = vpop.xlane.xlu0 %1120
  %v1122 = vrcp.pop 32.0
  %v1123 = vmul.f32 32.0, %v1122
  %v1124 = vsub.f32 1.0, %v1123
  %v1125 = vmul.f32 %v1122, %v1124
  %v1126 = vadd.f32 %v1122, %v1125
  %vm1127 = vweird.f32 %v1122
  %v1128 = vsel %vm1127, %v1122, %v1126
  %v1129 = vmul.f32 %v1118, %v1128
  %v1130 = vmul.f32 %v1121, %v1128
  %v1131 = vsub.f32 %v1112, %v1129
  %v1132 = vsub.f32 %v1113, %v1130
  %v1133 = vmul.f32 %v1131, %v1131
  %v1134 = vmul.f32 %v1132, %v1132
  %v1135 = vsel %vm107, %v1133, 0.0
  %1136 = vadd.xlane.f32.xlu0 %v1135
  %v1137 = vpop.xlane.xlu0 %1136
  %v1138 = vsel %vm107, %v1134, 0.0
  %1139 = vadd.xlane.f32.xlu0 %v1138
  %v1140 = vpop.xlane.xlu0 %1139
  %v1141 = vmul.f32 %v1137, %v1128
  %v1142 = vmul.f32 %v1140, %v1128
  %v1143 = vadd.f32 %v1141, 1e-05
  %v1144 = vadd.f32 %v1142, 1e-05
  %v1145 = vrsqrt.pop %v1143
  %v1146 = vmul.f32 %v1145, %v1143
  %v1147 = vmul.f32 %v1146, %v1145
  %v1148 = vmul.f32 0.5, %v1147
  %v1149 = vsub.f32 1.5, %v1148
  %v1150 = vmul.f32 %v1145, %v1149
  %vm1151 = vweird.f32 %v1143
  %vm1152 = vweird.f32 %v1145
  %vm1153 = vmor %vm1151, %vm1152
  %v1154 = vsel %vm1153, %v1145, %v1150
  %v1155 = vrsqrt.pop %v1144
  %v1156 = vmul.f32 %v1155, %v1144
  %v1157 = vmul.f32 %v1156, %v1155
  %v1158 = vmul.f32 0.5, %v1157
  %v1159 = vsub.f32 1.5, %v1158
  %v1160 = vmul.f32 %v1155, %v1159
  %vm1161 = vweird.f32 %v1144
  %vm1162 = vweird.f32 %v1155
  %vm1163 = vmor %vm1161, %vm1162
  %v1164 = vsel %vm1163, %v1155, %v1160
  %v1165 = vmul.f32 %v1131, %v1154
  %v1166 = vmul.f32 %v1132, %v1164
  %v1168 = vperm.slane %v1114, 0
  %v1170 = vmul.f32 %v1165, %v1168
  %v1171 = vmul.f32 %v1166, %v1168
  %v1173 = vperm.slane %v1115, 0
  %v1175 = vadd.f32 %v1170, %v1173
  %v1176 = vadd.f32 %v1171, %v1173
  %v1177 = vld [vmem:[%s12] sm:$0xff]
  %v1178 = vld [vmem:[%s12 + $0x8] sm:$0xff]
  %v1179 = vld [vmem:[%s12 + $0x10] sm:$0xff]
  %v1180 = vld [vmem:[%s12 + $0x18] sm:$0xff]
  %v1181 = vld [vmem:[%s13] sm:$0x1]
  %v1183 = vperm.slane %v1181, 0
  %v1186 = vsel %vm107, %v1175, 0
  %v1189 = vsel %vm107, %v1176, 0
  %1191 = vmatpush.msra.mxu0 0.0
  %1192 = vmatpush.msra.mxu0 0.0
  %1193 = vmatpush.msra.mxu0 0.0
  %1194 = vmatpush.msra.mxu0 0.0
  %1195 = vmatpush.msra.mxu0 0.0
  %1196 = vmatpush.msra.mxu0 0.0
  %1197 = vmatpush.msra.mxu0 0.0
  %1198 = vmatpush.msra.mxu0 0.0
  %1199 = vmatpush.msra.mxu0 0.0
  %1200 = vmatpush.msra.mxu0 0.0
  %1201 = vmatpush.msra.mxu0 0.0
  %1202 = vmatpush.msra.mxu0 0.0
  %1203 = vmatpush.msra.mxu0 %v1180
  %1204 = vmatpush.msra.mxu0 %v1179
  %1205 = vmatpush.msra.mxu0 %v1178
  %1206 = vmatpush.msra.mxu0 %v1177
  %1207 = vmatmul.f32.gmra.mxu0 %v1186
  %v1208 = vpop.f32.mrf.mxu0
  %v1209 = vadd.f32 %v1183, %v1208
  %1210 = vmatmul.f32.gmra.mxu0 %v1189
  %v1211 = vpop.f32.mrf.mxu0
  %v1212 = vadd.f32 %v1183, %v1211
  %1213 = vdwg.mxu0
  %v1214 = vmax.f32 %v1209, 0.0
  %v1215 = vmax.f32 %v1212, 0.0
  %v1216 = vld [vmem:[%s14] sm:$0xff]
  %v1217 = vld [vmem:[%s14 + $0x8] sm:$0xff]
  %v1218 = vld [vmem:[%s14 + $0x10] sm:$0xff]
  %v1219 = vld [vmem:[%s14 + $0x18] sm:$0xff]
  %v1220 = vld [vmem:[%s14 + $0x20] sm:$0xff]
  %v1221 = vld [vmem:[%s14 + $0x28] sm:$0xff]
  %v1222 = vld [vmem:[%s14 + $0x30] sm:$0xff]
  %v1223 = vld [vmem:[%s14 + $0x38] sm:$0xff]
  %v1224 = vld [vmem:[%s15] sm:$0x1]
  %v1226 = vperm.slane %v1224, 0
  %vm1228 = vcmask 523264
  %v1230 = vsel %vm1228, %v1214, 0
  %v1233 = vsel %vm1228, %v1215, 0
  %1235 = vmatpush.msra.mxu0 0.0
  %1236 = vmatpush.msra.mxu0 0.0
  %1237 = vmatpush.msra.mxu0 0.0
  %1238 = vmatpush.msra.mxu0 0.0
  %1239 = vmatpush.msra.mxu0 0.0
  %1240 = vmatpush.msra.mxu0 0.0
  %1241 = vmatpush.msra.mxu0 0.0
  %1242 = vmatpush.msra.mxu0 0.0
  %1243 = vmatpush.msra.mxu0 %v1223
  %1244 = vmatpush.msra.mxu0 %v1222
  %1245 = vmatpush.msra.mxu0 %v1221
  %1246 = vmatpush.msra.mxu0 %v1220
  %1247 = vmatpush.msra.mxu0 %v1219
  %1248 = vmatpush.msra.mxu0 %v1218
  %1249 = vmatpush.msra.mxu0 %v1217
  %1250 = vmatpush.msra.mxu0 %v1216
  %1251 = vmatmul.f32.gmra.mxu0 %v1230
  %v1252 = vpop.f32.mrf.mxu0
  %v1253 = vadd.f32 %v1226, %v1252
  %1254 = vmatmul.f32.gmra.mxu0 %v1233
  %v1255 = vpop.f32.mrf.mxu0
  %v1256 = vadd.f32 %v1226, %v1255
  %1257 = vdwg.mxu0
  %v1258 = vadd.f32 %v1175, %v1253
  %v1259 = vadd.f32 %v1176, %v1256
  %v1260 = vld [vmem:[%s18] sm:$0x1]
  %v1261 = vld [vmem:[%s19] sm:$0x1]
  %v1262 = vsel %vm107, %v1258, 0.0
  %1263 = vadd.xlane.f32.xlu0 %v1262
  %v1264 = vpop.xlane.xlu0 %1263
  %v1265 = vsel %vm107, %v1259, 0.0
  %1266 = vadd.xlane.f32.xlu0 %v1265
  %v1267 = vpop.xlane.xlu0 %1266
  %v1268 = vmul.f32 %v1264, %v1128
  %v1269 = vmul.f32 %v1267, %v1128
  %v1270 = vsub.f32 %v1258, %v1268
  %v1271 = vsub.f32 %v1259, %v1269
  %v1272 = vmul.f32 %v1270, %v1270
  %v1273 = vmul.f32 %v1271, %v1271
  %v1274 = vsel %vm107, %v1272, 0.0
  %1275 = vadd.xlane.f32.xlu0 %v1274
  %v1276 = vpop.xlane.xlu0 %1275
  %v1277 = vsel %vm107, %v1273, 0.0
  %1278 = vadd.xlane.f32.xlu0 %v1277
  %v1279 = vpop.xlane.xlu0 %1278
  %v1280 = vmul.f32 %v1276, %v1128
  %v1281 = vmul.f32 %v1279, %v1128
  %v1282 = vadd.f32 %v1280, 1e-05
  %v1283 = vadd.f32 %v1281, 1e-05
  %v1284 = vrsqrt.pop %v1282
  %v1285 = vmul.f32 %v1284, %v1282
  %v1286 = vmul.f32 %v1285, %v1284
  %v1287 = vmul.f32 0.5, %v1286
  %v1288 = vsub.f32 1.5, %v1287
  %v1289 = vmul.f32 %v1284, %v1288
  %vm1290 = vweird.f32 %v1282
  %vm1291 = vweird.f32 %v1284
  %vm1292 = vmor %vm1290, %vm1291
  %v1293 = vsel %vm1292, %v1284, %v1289
  %v1294 = vrsqrt.pop %v1283
  %v1295 = vmul.f32 %v1294, %v1283
  %v1296 = vmul.f32 %v1295, %v1294
  %v1297 = vmul.f32 0.5, %v1296
  %v1298 = vsub.f32 1.5, %v1297
  %v1299 = vmul.f32 %v1294, %v1298
  %vm1300 = vweird.f32 %v1283
  %vm1301 = vweird.f32 %v1294
  %vm1302 = vmor %vm1300, %vm1301
  %v1303 = vsel %vm1302, %v1294, %v1299
  %v1304 = vmul.f32 %v1270, %v1293
  %v1305 = vmul.f32 %v1271, %v1303
  %v1307 = vperm.slane %v1260, 0
  %v1309 = vmul.f32 %v1304, %v1307
  %v1310 = vmul.f32 %v1305, %v1307
  %v1312 = vperm.slane %v1261, 0
  %v1314 = vadd.f32 %v1309, %v1312
  %v1315 = vadd.f32 %v1310, %v1312
  %s1316 = scalar_lea.vmem %s4, 128
  %v1317 = vld [vmem:[%s1316] sm:$0xff]
  %v1318 = vld [vmem:[%s1316 + $0x8] sm:$0xff]
  %v1319 = vld [vmem:[%s1316 + $0x10] sm:$0xff]
  %v1320 = vld [vmem:[%s1316 + $0x18] sm:$0xff]
  %s1321 = scalar_lea.vmem %s5, 4
  %v1322 = vld [vmem:[%s1321] sm:$0x1]
  %v1324 = vperm.slane %v1322, 0
  %v1327 = vsel %vm107, %v1314, 0
  %v1330 = vsel %vm107, %v1315, 0
  %1332 = vmatpush.msra.mxu0 0.0
  %1333 = vmatpush.msra.mxu0 0.0
  %1334 = vmatpush.msra.mxu0 0.0
  %1335 = vmatpush.msra.mxu0 0.0
  %1336 = vmatpush.msra.mxu0 0.0
  %1337 = vmatpush.msra.mxu0 0.0
  %1338 = vmatpush.msra.mxu0 0.0
  %1339 = vmatpush.msra.mxu0 0.0
  %1340 = vmatpush.msra.mxu0 0.0
  %1341 = vmatpush.msra.mxu0 0.0
  %1342 = vmatpush.msra.mxu0 0.0
  %1343 = vmatpush.msra.mxu0 0.0
  %1344 = vmatpush.msra.mxu0 %v1320
  %1345 = vmatpush.msra.mxu0 %v1319
  %1346 = vmatpush.msra.mxu0 %v1318
  %1347 = vmatpush.msra.mxu0 %v1317
  %1348 = vmatmul.f32.gmra.mxu0 %v1327
  %v1349 = vpop.f32.mrf.mxu0
  %v1350 = vadd.f32 %v1324, %v1349
  %1351 = vmatmul.f32.gmra.mxu0 %v1330
  %v1352 = vpop.f32.mrf.mxu0
  %v1353 = vadd.f32 %v1324, %v1352
  %1354 = vdwg.mxu0
  %s1355 = scalar_lea.vmem %s4, 160
  %v1356 = vld [vmem:[%s1355] sm:$0xff]
  %v1357 = vld [vmem:[%s1355 + $0x8] sm:$0xff]
  %v1358 = vld [vmem:[%s1355 + $0x10] sm:$0xff]
  %v1359 = vld [vmem:[%s1355 + $0x18] sm:$0xff]
  %s1360 = scalar_lea.vmem %s5, 5
  %v1361 = vld [vmem:[%s1360] sm:$0x1]
  %v1363 = vperm.slane %v1361, 0
  %1365 = vmatpush.msra.mxu0 0.0
  %1366 = vmatpush.msra.mxu0 0.0
  %1367 = vmatpush.msra.mxu0 0.0
  %1368 = vmatpush.msra.mxu0 0.0
  %1369 = vmatpush.msra.mxu0 0.0
  %1370 = vmatpush.msra.mxu0 0.0
  %1371 = vmatpush.msra.mxu0 0.0
  %1372 = vmatpush.msra.mxu0 0.0
  %1373 = vmatpush.msra.mxu0 0.0
  %1374 = vmatpush.msra.mxu0 0.0
  %1375 = vmatpush.msra.mxu0 0.0
  %1376 = vmatpush.msra.mxu0 0.0
  %1377 = vmatpush.msra.mxu0 %v1359
  %1378 = vmatpush.msra.mxu0 %v1358
  %1379 = vmatpush.msra.mxu0 %v1357
  %1380 = vmatpush.msra.mxu0 %v1356
  %1381 = vmatmul.f32.gmra.mxu0 %v1327
  %v1382 = vpop.f32.mrf.mxu0
  %v1383 = vadd.f32 %v1363, %v1382
  %1384 = vmatmul.f32.gmra.mxu0 %v1330
  %v1385 = vpop.f32.mrf.mxu0
  %v1386 = vadd.f32 %v1363, %v1385
  %1387 = vdwg.mxu0
  %s1388 = scalar_lea.vmem %s4, 192
  %v1389 = vld [vmem:[%s1388] sm:$0xff]
  %v1390 = vld [vmem:[%s1388 + $0x8] sm:$0xff]
  %v1391 = vld [vmem:[%s1388 + $0x10] sm:$0xff]
  %v1392 = vld [vmem:[%s1388 + $0x18] sm:$0xff]
  %s1393 = scalar_lea.vmem %s5, 6
  %v1394 = vld [vmem:[%s1393] sm:$0x1]
  %v1396 = vperm.slane %v1394, 0
  %1398 = vmatpush.msra.mxu0 0.0
  %1399 = vmatpush.msra.mxu0 0.0
  %1400 = vmatpush.msra.mxu0 0.0
  %1401 = vmatpush.msra.mxu0 0.0
  %1402 = vmatpush.msra.mxu0 0.0
  %1403 = vmatpush.msra.mxu0 0.0
  %1404 = vmatpush.msra.mxu0 0.0
  %1405 = vmatpush.msra.mxu0 0.0
  %1406 = vmatpush.msra.mxu0 0.0
  %1407 = vmatpush.msra.mxu0 0.0
  %1408 = vmatpush.msra.mxu0 0.0
  %1409 = vmatpush.msra.mxu0 0.0
  %1410 = vmatpush.msra.mxu0 %v1392
  %1411 = vmatpush.msra.mxu0 %v1391
  %1412 = vmatpush.msra.mxu0 %v1390
  %1413 = vmatpush.msra.mxu0 %v1389
  %1414 = vmatmul.f32.gmra.mxu0 %v1327
  %v1415 = vpop.f32.mrf.mxu0
  %v1416 = vadd.f32 %v1396, %v1415
  %1417 = vmatmul.f32.gmra.mxu0 %v1330
  %v1418 = vpop.f32.mrf.mxu0
  %v1419 = vadd.f32 %v1396, %v1418
  %1420 = vdwg.mxu0
  %s1421 = scalar_lea.vmem %s4, 224
  %v1422 = vld [vmem:[%s1421] sm:$0xff]
  %v1423 = vld [vmem:[%s1421 + $0x8] sm:$0xff]
  %v1424 = vld [vmem:[%s1421 + $0x10] sm:$0xff]
  %v1425 = vld [vmem:[%s1421 + $0x18] sm:$0xff]
  %s1426 = scalar_lea.vmem %s5, 7
  %v1427 = vld [vmem:[%s1426] sm:$0x1]
  %v1429 = vperm.slane %v1427, 0
  %1431 = vmatpush.msra.mxu0 0.0
  %1432 = vmatpush.msra.mxu0 0.0
  %1433 = vmatpush.msra.mxu0 0.0
  %1434 = vmatpush.msra.mxu0 0.0
  %1435 = vmatpush.msra.mxu0 0.0
  %1436 = vmatpush.msra.mxu0 0.0
  %1437 = vmatpush.msra.mxu0 0.0
  %1438 = vmatpush.msra.mxu0 0.0
  %1439 = vmatpush.msra.mxu0 0.0
  %1440 = vmatpush.msra.mxu0 0.0
  %1441 = vmatpush.msra.mxu0 0.0
  %1442 = vmatpush.msra.mxu0 0.0
  %1443 = vmatpush.msra.mxu0 %v1425
  %1444 = vmatpush.msra.mxu0 %v1424
  %1445 = vmatpush.msra.mxu0 %v1423
  %1446 = vmatpush.msra.mxu0 %v1422
  %1447 = vmatmul.f32.gmra.mxu0 %v1327
  %v1448 = vpop.f32.mrf.mxu0
  %v1449 = vadd.f32 %v1429, %v1448
  %1450 = vmatmul.f32.gmra.mxu0 %v1330
  %v1451 = vpop.f32.mrf.mxu0
  %v1452 = vadd.f32 %v1429, %v1451
  %1453 = vdwg.mxu0
  %s1454 = scalar_lea.vmem %s6, 128
  %v1455 = vld [vmem:[%s1454] sm:$0xff]
  %v1456 = vld [vmem:[%s1454 + $0x8] sm:$0xff]
  %v1457 = vld [vmem:[%s1454 + $0x10] sm:$0xff]
  %v1458 = vld [vmem:[%s1454 + $0x18] sm:$0xff]
  %s1459 = scalar_lea.vmem %s7, 4
  %v1460 = vld [vmem:[%s1459] sm:$0x1]
  %v1462 = vperm.slane %v1460, 0
  %1464 = vmatpush.msra.mxu0 0.0
  %1465 = vmatpush.msra.mxu0 0.0
  %1466 = vmatpush.msra.mxu0 0.0
  %1467 = vmatpush.msra.mxu0 0.0
  %1468 = vmatpush.msra.mxu0 0.0
  %1469 = vmatpush.msra.mxu0 0.0
  %1470 = vmatpush.msra.mxu0 0.0
  %1471 = vmatpush.msra.mxu0 0.0
  %1472 = vmatpush.msra.mxu0 0.0
  %1473 = vmatpush.msra.mxu0 0.0
  %1474 = vmatpush.msra.mxu0 0.0
  %1475 = vmatpush.msra.mxu0 0.0
  %1476 = vmatpush.msra.mxu0 %v1458
  %1477 = vmatpush.msra.mxu0 %v1457
  %1478 = vmatpush.msra.mxu0 %v1456
  %1479 = vmatpush.msra.mxu0 %v1455
  %1480 = vmatmul.f32.gmra.mxu0 %v1327
  %v1481 = vpop.f32.mrf.mxu0
  %v1482 = vadd.f32 %v1462, %v1481
  %1483 = vmatmul.f32.gmra.mxu0 %v1330
  %v1484 = vpop.f32.mrf.mxu0
  %v1485 = vadd.f32 %v1462, %v1484
  %1486 = vdwg.mxu0
  %s1487 = scalar_lea.vmem %s6, 160
  %v1488 = vld [vmem:[%s1487] sm:$0xff]
  %v1489 = vld [vmem:[%s1487 + $0x8] sm:$0xff]
  %v1490 = vld [vmem:[%s1487 + $0x10] sm:$0xff]
  %v1491 = vld [vmem:[%s1487 + $0x18] sm:$0xff]
  %s1492 = scalar_lea.vmem %s7, 5
  %v1493 = vld [vmem:[%s1492] sm:$0x1]
  %v1495 = vperm.slane %v1493, 0
  %1497 = vmatpush.msra.mxu0 0.0
  %1498 = vmatpush.msra.mxu0 0.0
  %1499 = vmatpush.msra.mxu0 0.0
  %1500 = vmatpush.msra.mxu0 0.0
  %1501 = vmatpush.msra.mxu0 0.0
  %1502 = vmatpush.msra.mxu0 0.0
  %1503 = vmatpush.msra.mxu0 0.0
  %1504 = vmatpush.msra.mxu0 0.0
  %1505 = vmatpush.msra.mxu0 0.0
  %1506 = vmatpush.msra.mxu0 0.0
  %1507 = vmatpush.msra.mxu0 0.0
  %1508 = vmatpush.msra.mxu0 0.0
  %1509 = vmatpush.msra.mxu0 %v1491
  %1510 = vmatpush.msra.mxu0 %v1490
  %1511 = vmatpush.msra.mxu0 %v1489
  %1512 = vmatpush.msra.mxu0 %v1488
  %1513 = vmatmul.f32.gmra.mxu0 %v1327
  %v1514 = vpop.f32.mrf.mxu0
  %v1515 = vadd.f32 %v1495, %v1514
  %1516 = vmatmul.f32.gmra.mxu0 %v1330
  %v1517 = vpop.f32.mrf.mxu0
  %v1518 = vadd.f32 %v1495, %v1517
  %1519 = vdwg.mxu0
  %s1520 = scalar_lea.vmem %s6, 192
  %v1521 = vld [vmem:[%s1520] sm:$0xff]
  %v1522 = vld [vmem:[%s1520 + $0x8] sm:$0xff]
  %v1523 = vld [vmem:[%s1520 + $0x10] sm:$0xff]
  %v1524 = vld [vmem:[%s1520 + $0x18] sm:$0xff]
  %s1525 = scalar_lea.vmem %s7, 6
  %v1526 = vld [vmem:[%s1525] sm:$0x1]
  %v1528 = vperm.slane %v1526, 0
  %1530 = vmatpush.msra.mxu0 0.0
  %1531 = vmatpush.msra.mxu0 0.0
  %1532 = vmatpush.msra.mxu0 0.0
  %1533 = vmatpush.msra.mxu0 0.0
  %1534 = vmatpush.msra.mxu0 0.0
  %1535 = vmatpush.msra.mxu0 0.0
  %1536 = vmatpush.msra.mxu0 0.0
  %1537 = vmatpush.msra.mxu0 0.0
  %1538 = vmatpush.msra.mxu0 0.0
  %1539 = vmatpush.msra.mxu0 0.0
  %1540 = vmatpush.msra.mxu0 0.0
  %1541 = vmatpush.msra.mxu0 0.0
  %1542 = vmatpush.msra.mxu0 %v1524
  %1543 = vmatpush.msra.mxu0 %v1523
  %1544 = vmatpush.msra.mxu0 %v1522
  %1545 = vmatpush.msra.mxu0 %v1521
  %1546 = vmatmul.f32.gmra.mxu0 %v1327
  %v1547 = vpop.f32.mrf.mxu0
  %v1548 = vadd.f32 %v1528, %v1547
  %1549 = vmatmul.f32.gmra.mxu0 %v1330
  %v1550 = vpop.f32.mrf.mxu0
  %v1551 = vadd.f32 %v1528, %v1550
  %1552 = vdwg.mxu0
  %s1553 = scalar_lea.vmem %s6, 224
  %v1554 = vld [vmem:[%s1553] sm:$0xff]
  %v1555 = vld [vmem:[%s1553 + $0x8] sm:$0xff]
  %v1556 = vld [vmem:[%s1553 + $0x10] sm:$0xff]
  %v1557 = vld [vmem:[%s1553 + $0x18] sm:$0xff]
  %s1558 = scalar_lea.vmem %s7, 7
  %v1559 = vld [vmem:[%s1558] sm:$0x1]
  %v1561 = vperm.slane %v1559, 0
  %1563 = vmatpush.msra.mxu0 0.0
  %1564 = vmatpush.msra.mxu0 0.0
  %1565 = vmatpush.msra.mxu0 0.0
  %1566 = vmatpush.msra.mxu0 0.0
  %1567 = vmatpush.msra.mxu0 0.0
  %1568 = vmatpush.msra.mxu0 0.0
  %1569 = vmatpush.msra.mxu0 0.0
  %1570 = vmatpush.msra.mxu0 0.0
  %1571 = vmatpush.msra.mxu0 0.0
  %1572 = vmatpush.msra.mxu0 0.0
  %1573 = vmatpush.msra.mxu0 0.0
  %1574 = vmatpush.msra.mxu0 0.0
  %1575 = vmatpush.msra.mxu0 %v1557
  %1576 = vmatpush.msra.mxu0 %v1556
  %1577 = vmatpush.msra.mxu0 %v1555
  %1578 = vmatpush.msra.mxu0 %v1554
  %1579 = vmatmul.f32.gmra.mxu0 %v1327
  %v1580 = vpop.f32.mrf.mxu0
  %v1581 = vadd.f32 %v1561, %v1580
  %1582 = vmatmul.f32.gmra.mxu0 %v1330
  %v1583 = vpop.f32.mrf.mxu0
  %v1584 = vadd.f32 %v1561, %v1583
  %1585 = vdwg.mxu0
  %s1586 = scalar_lea.vmem %s8, 128
  %v1587 = vld [vmem:[%s1586] sm:$0xff]
  %v1588 = vld [vmem:[%s1586 + $0x8] sm:$0xff]
  %v1589 = vld [vmem:[%s1586 + $0x10] sm:$0xff]
  %v1590 = vld [vmem:[%s1586 + $0x18] sm:$0xff]
  %s1591 = scalar_lea.vmem %s9, 4
  %v1592 = vld [vmem:[%s1591] sm:$0x1]
  %v1594 = vperm.slane %v1592, 0
  %1596 = vmatpush.msra.mxu0 0.0
  %1597 = vmatpush.msra.mxu0 0.0
  %1598 = vmatpush.msra.mxu0 0.0
  %1599 = vmatpush.msra.mxu0 0.0
  %1600 = vmatpush.msra.mxu0 0.0
  %1601 = vmatpush.msra.mxu0 0.0
  %1602 = vmatpush.msra.mxu0 0.0
  %1603 = vmatpush.msra.mxu0 0.0
  %1604 = vmatpush.msra.mxu0 0.0
  %1605 = vmatpush.msra.mxu0 0.0
  %1606 = vmatpush.msra.mxu0 0.0
  %1607 = vmatpush.msra.mxu0 0.0
  %1608 = vmatpush.msra.mxu0 %v1590
  %1609 = vmatpush.msra.mxu0 %v1589
  %1610 = vmatpush.msra.mxu0 %v1588
  %1611 = vmatpush.msra.mxu0 %v1587
  %1612 = vmatmul.f32.gmra.mxu0 %v1327
  %v1613 = vpop.f32.mrf.mxu0
  %v1614 = vadd.f32 %v1594, %v1613
  %1615 = vmatmul.f32.gmra.mxu0 %v1330
  %v1616 = vpop.f32.mrf.mxu0
  %v1617 = vadd.f32 %v1594, %v1616
  %1618 = vdwg.mxu0
  %s1619 = scalar_lea.vmem %s8, 160
  %v1620 = vld [vmem:[%s1619] sm:$0xff]
  %v1621 = vld [vmem:[%s1619 + $0x8] sm:$0xff]
  %v1622 = vld [vmem:[%s1619 + $0x10] sm:$0xff]
  %v1623 = vld [vmem:[%s1619 + $0x18] sm:$0xff]
  %s1624 = scalar_lea.vmem %s9, 5
  %v1625 = vld [vmem:[%s1624] sm:$0x1]
  %v1627 = vperm.slane %v1625, 0
  %1629 = vmatpush.msra.mxu0 0.0
  %1630 = vmatpush.msra.mxu0 0.0
  %1631 = vmatpush.msra.mxu0 0.0
  %1632 = vmatpush.msra.mxu0 0.0
  %1633 = vmatpush.msra.mxu0 0.0
  %1634 = vmatpush.msra.mxu0 0.0
  %1635 = vmatpush.msra.mxu0 0.0
  %1636 = vmatpush.msra.mxu0 0.0
  %1637 = vmatpush.msra.mxu0 0.0
  %1638 = vmatpush.msra.mxu0 0.0
  %1639 = vmatpush.msra.mxu0 0.0
  %1640 = vmatpush.msra.mxu0 0.0
  %1641 = vmatpush.msra.mxu0 %v1623
  %1642 = vmatpush.msra.mxu0 %v1622
  %1643 = vmatpush.msra.mxu0 %v1621
  %1644 = vmatpush.msra.mxu0 %v1620
  %1645 = vmatmul.f32.gmra.mxu0 %v1327
  %v1646 = vpop.f32.mrf.mxu0
  %v1647 = vadd.f32 %v1627, %v1646
  %1648 = vmatmul.f32.gmra.mxu0 %v1330
  %v1649 = vpop.f32.mrf.mxu0
  %v1650 = vadd.f32 %v1627, %v1649
  %1651 = vdwg.mxu0
  %s1652 = scalar_lea.vmem %s8, 192
  %v1653 = vld [vmem:[%s1652] sm:$0xff]
  %v1654 = vld [vmem:[%s1652 + $0x8] sm:$0xff]
  %v1655 = vld [vmem:[%s1652 + $0x10] sm:$0xff]
  %v1656 = vld [vmem:[%s1652 + $0x18] sm:$0xff]
  %s1657 = scalar_lea.vmem %s9, 6
  %v1658 = vld [vmem:[%s1657] sm:$0x1]
  %v1660 = vperm.slane %v1658, 0
  %1662 = vmatpush.msra.mxu0 0.0
  %1663 = vmatpush.msra.mxu0 0.0
  %1664 = vmatpush.msra.mxu0 0.0
  %1665 = vmatpush.msra.mxu0 0.0
  %1666 = vmatpush.msra.mxu0 0.0
  %1667 = vmatpush.msra.mxu0 0.0
  %1668 = vmatpush.msra.mxu0 0.0
  %1669 = vmatpush.msra.mxu0 0.0
  %1670 = vmatpush.msra.mxu0 0.0
  %1671 = vmatpush.msra.mxu0 0.0
  %1672 = vmatpush.msra.mxu0 0.0
  %1673 = vmatpush.msra.mxu0 0.0
  %1674 = vmatpush.msra.mxu0 %v1656
  %1675 = vmatpush.msra.mxu0 %v1655
  %1676 = vmatpush.msra.mxu0 %v1654
  %1677 = vmatpush.msra.mxu0 %v1653
  %1678 = vmatmul.f32.gmra.mxu0 %v1327
  %v1679 = vpop.f32.mrf.mxu0
  %v1680 = vadd.f32 %v1660, %v1679
  %1681 = vmatmul.f32.gmra.mxu0 %v1330
  %v1682 = vpop.f32.mrf.mxu0
  %v1683 = vadd.f32 %v1660, %v1682
  %1684 = vdwg.mxu0
  %s1685 = scalar_lea.vmem %s8, 224
  %v1686 = vld [vmem:[%s1685] sm:$0xff]
  %v1687 = vld [vmem:[%s1685 + $0x8] sm:$0xff]
  %v1688 = vld [vmem:[%s1685 + $0x10] sm:$0xff]
  %v1689 = vld [vmem:[%s1685 + $0x18] sm:$0xff]
  %s1690 = scalar_lea.vmem %s9, 7
  %v1691 = vld [vmem:[%s1690] sm:$0x1]
  %v1693 = vperm.slane %v1691, 0
  %1695 = vmatpush.msra.mxu0 0.0
  %1696 = vmatpush.msra.mxu0 0.0
  %1697 = vmatpush.msra.mxu0 0.0
  %1698 = vmatpush.msra.mxu0 0.0
  %1699 = vmatpush.msra.mxu0 0.0
  %1700 = vmatpush.msra.mxu0 0.0
  %1701 = vmatpush.msra.mxu0 0.0
  %1702 = vmatpush.msra.mxu0 0.0
  %1703 = vmatpush.msra.mxu0 0.0
  %1704 = vmatpush.msra.mxu0 0.0
  %1705 = vmatpush.msra.mxu0 0.0
  %1706 = vmatpush.msra.mxu0 0.0
  %1707 = vmatpush.msra.mxu0 %v1689
  %1708 = vmatpush.msra.mxu0 %v1688
  %1709 = vmatpush.msra.mxu0 %v1687
  %1710 = vmatpush.msra.mxu0 %v1686
  %1711 = vmatmul.f32.gmra.mxu0 %v1327
  %v1712 = vpop.f32.mrf.mxu0
  %v1713 = vadd.f32 %v1693, %v1712
  %1714 = vmatmul.f32.gmra.mxu0 %v1330
  %v1715 = vpop.f32.mrf.mxu0
  %v1716 = vadd.f32 %v1693, %v1715
  %1717 = vdwg.mxu0
  %v1719 = vsel %vm496, %v1350, 0
  %v1722 = vsel %vm496, %v1482, 0
  %1724 = vmatpush.xpose.msra.mxu0 0.0
  %1725 = vmatpush.xpose.msra.mxu0 0.0
  %1726 = vmatpush.xpose.msra.mxu0 0.0
  %1727 = vmatpush.xpose.msra.mxu0 0.0
  %1728 = vmatpush.xpose.msra.mxu0 0.0
  %1729 = vmatpush.xpose.msra.mxu0 0.0
  %1730 = vmatpush.xpose.msra.mxu0 0.0
  %1731 = vmatpush.xpose.msra.mxu0 0.0
  %1732 = vmatpush.xpose.msra.mxu0 0.0
  %1733 = vmatpush.xpose.msra.mxu0 0.0
  %1734 = vmatpush.xpose.msra.mxu0 0.0
  %1735 = vmatpush.xpose.msra.mxu0 0.0
  %1736 = vmatpush.xpose.msra.mxu0 0.0
  %1737 = vmatpush.xpose.msra.mxu0 0.0
  %1738 = vmatpush.xpose.msra.mxu0 0.0
  %1739 = vmatpush.xpose.msra.mxu0 %v1722
  %1740 = vmatmul.f32.gmra.mxu0 %v1719
  %v1741 = vpop.f32.mrf.mxu0
  %v1742 = vadd.f32 %v83, %v1741
  %1743 = vdwg.mxu0
  %v1745 = vsel %vm496, %v1353, 0
  %v1748 = vsel %vm496, %v1485, 0
  %1750 = vmatpush.xpose.msra.mxu0 0.0
  %1751 = vmatpush.xpose.msra.mxu0 0.0
  %1752 = vmatpush.xpose.msra.mxu0 0.0
  %1753 = vmatpush.xpose.msra.mxu0 0.0
  %1754 = vmatpush.xpose.msra.mxu0 0.0
  %1755 = vmatpush.xpose.msra.mxu0 0.0
  %1756 = vmatpush.xpose.msra.mxu0 0.0
  %1757 = vmatpush.xpose.msra.mxu0 0.0
  %1758 = vmatpush.xpose.msra.mxu0 0.0
  %1759 = vmatpush.xpose.msra.mxu0 0.0
  %1760 = vmatpush.xpose.msra.mxu0 0.0
  %1761 = vmatpush.xpose.msra.mxu0 0.0
  %1762 = vmatpush.xpose.msra.mxu0 0.0
  %1763 = vmatpush.xpose.msra.mxu0 0.0
  %1764 = vmatpush.xpose.msra.mxu0 0.0
  %1765 = vmatpush.xpose.msra.mxu0 %v1748
  %1766 = vmatmul.f32.gmra.mxu0 %v1745
  %v1767 = vpop.f32.mrf.mxu0
  %v1768 = vadd.f32 %v84, %v1767
  %1769 = vdwg.mxu0
  %v1771 = vsel %vm496, %v1383, 0
  %v1774 = vsel %vm496, %v1515, 0
  %1776 = vmatpush.xpose.msra.mxu0 0.0
  %1777 = vmatpush.xpose.msra.mxu0 0.0
  %1778 = vmatpush.xpose.msra.mxu0 0.0
  %1779 = vmatpush.xpose.msra.mxu0 0.0
  %1780 = vmatpush.xpose.msra.mxu0 0.0
  %1781 = vmatpush.xpose.msra.mxu0 0.0
  %1782 = vmatpush.xpose.msra.mxu0 0.0
  %1783 = vmatpush.xpose.msra.mxu0 0.0
  %1784 = vmatpush.xpose.msra.mxu0 0.0
  %1785 = vmatpush.xpose.msra.mxu0 0.0
  %1786 = vmatpush.xpose.msra.mxu0 0.0
  %1787 = vmatpush.xpose.msra.mxu0 0.0
  %1788 = vmatpush.xpose.msra.mxu0 0.0
  %1789 = vmatpush.xpose.msra.mxu0 0.0
  %1790 = vmatpush.xpose.msra.mxu0 0.0
  %1791 = vmatpush.xpose.msra.mxu0 %v1774
  %1792 = vmatmul.f32.gmra.mxu0 %v1771
  %v1793 = vpop.f32.mrf.mxu0
  %v1794 = vadd.f32 %v85, %v1793
  %1795 = vdwg.mxu0
  %v1797 = vsel %vm496, %v1386, 0
  %v1800 = vsel %vm496, %v1518, 0
  %1802 = vmatpush.xpose.msra.mxu0 0.0
  %1803 = vmatpush.xpose.msra.mxu0 0.0
  %1804 = vmatpush.xpose.msra.mxu0 0.0
  %1805 = vmatpush.xpose.msra.mxu0 0.0
  %1806 = vmatpush.xpose.msra.mxu0 0.0
  %1807 = vmatpush.xpose.msra.mxu0 0.0
  %1808 = vmatpush.xpose.msra.mxu0 0.0
  %1809 = vmatpush.xpose.msra.mxu0 0.0
  %1810 = vmatpush.xpose.msra.mxu0 0.0
  %1811 = vmatpush.xpose.msra.mxu0 0.0
  %1812 = vmatpush.xpose.msra.mxu0 0.0
  %1813 = vmatpush.xpose.msra.mxu0 0.0
  %1814 = vmatpush.xpose.msra.mxu0 0.0
  %1815 = vmatpush.xpose.msra.mxu0 0.0
  %1816 = vmatpush.xpose.msra.mxu0 0.0
  %1817 = vmatpush.xpose.msra.mxu0 %v1800
  %1818 = vmatmul.f32.gmra.mxu0 %v1797
  %v1819 = vpop.f32.mrf.mxu0
  %v1820 = vadd.f32 %v86, %v1819
  %1821 = vdwg.mxu0
  %v1823 = vsel %vm496, %v1416, 0
  %v1826 = vsel %vm496, %v1548, 0
  %1828 = vmatpush.xpose.msra.mxu0 0.0
  %1829 = vmatpush.xpose.msra.mxu0 0.0
  %1830 = vmatpush.xpose.msra.mxu0 0.0
  %1831 = vmatpush.xpose.msra.mxu0 0.0
  %1832 = vmatpush.xpose.msra.mxu0 0.0
  %1833 = vmatpush.xpose.msra.mxu0 0.0
  %1834 = vmatpush.xpose.msra.mxu0 0.0
  %1835 = vmatpush.xpose.msra.mxu0 0.0
  %1836 = vmatpush.xpose.msra.mxu0 0.0
  %1837 = vmatpush.xpose.msra.mxu0 0.0
  %1838 = vmatpush.xpose.msra.mxu0 0.0
  %1839 = vmatpush.xpose.msra.mxu0 0.0
  %1840 = vmatpush.xpose.msra.mxu0 0.0
  %1841 = vmatpush.xpose.msra.mxu0 0.0
  %1842 = vmatpush.xpose.msra.mxu0 0.0
  %1843 = vmatpush.xpose.msra.mxu0 %v1826
  %1844 = vmatmul.f32.gmra.mxu0 %v1823
  %v1845 = vpop.f32.mrf.mxu0
  %v1846 = vadd.f32 %v87, %v1845
  %1847 = vdwg.mxu0
  %v1849 = vsel %vm496, %v1419, 0
  %v1852 = vsel %vm496, %v1551, 0
  %1854 = vmatpush.xpose.msra.mxu0 0.0
  %1855 = vmatpush.xpose.msra.mxu0 0.0
  %1856 = vmatpush.xpose.msra.mxu0 0.0
  %1857 = vmatpush.xpose.msra.mxu0 0.0
  %1858 = vmatpush.xpose.msra.mxu0 0.0
  %1859 = vmatpush.xpose.msra.mxu0 0.0
  %1860 = vmatpush.xpose.msra.mxu0 0.0
  %1861 = vmatpush.xpose.msra.mxu0 0.0
  %1862 = vmatpush.xpose.msra.mxu0 0.0
  %1863 = vmatpush.xpose.msra.mxu0 0.0
  %1864 = vmatpush.xpose.msra.mxu0 0.0
  %1865 = vmatpush.xpose.msra.mxu0 0.0
  %1866 = vmatpush.xpose.msra.mxu0 0.0
  %1867 = vmatpush.xpose.msra.mxu0 0.0
  %1868 = vmatpush.xpose.msra.mxu0 0.0
  %1869 = vmatpush.xpose.msra.mxu0 %v1852
  %1870 = vmatmul.f32.gmra.mxu0 %v1849
  %v1871 = vpop.f32.mrf.mxu0
  %v1872 = vadd.f32 %v88, %v1871
  %1873 = vdwg.mxu0
  %v1875 = vsel %vm496, %v1449, 0
  %v1878 = vsel %vm496, %v1581, 0
  %1880 = vmatpush.xpose.msra.mxu0 0.0
  %1881 = vmatpush.xpose.msra.mxu0 0.0
  %1882 = vmatpush.xpose.msra.mxu0 0.0
  %1883 = vmatpush.xpose.msra.mxu0 0.0
  %1884 = vmatpush.xpose.msra.mxu0 0.0
  %1885 = vmatpush.xpose.msra.mxu0 0.0
  %1886 = vmatpush.xpose.msra.mxu0 0.0
  %1887 = vmatpush.xpose.msra.mxu0 0.0
  %1888 = vmatpush.xpose.msra.mxu0 0.0
  %1889 = vmatpush.xpose.msra.mxu0 0.0
  %1890 = vmatpush.xpose.msra.mxu0 0.0
  %1891 = vmatpush.xpose.msra.mxu0 0.0
  %1892 = vmatpush.xpose.msra.mxu0 0.0
  %1893 = vmatpush.xpose.msra.mxu0 0.0
  %1894 = vmatpush.xpose.msra.mxu0 0.0
  %1895 = vmatpush.xpose.msra.mxu0 %v1878
  %1896 = vmatmul.f32.gmra.mxu0 %v1875
  %v1897 = vpop.f32.mrf.mxu0
  %v1898 = vadd.f32 %v89, %v1897
  %1899 = vdwg.mxu0
  %v1901 = vsel %vm496, %v1452, 0
  %v1904 = vsel %vm496, %v1584, 0
  %1906 = vmatpush.xpose.msra.mxu0 0.0
  %1907 = vmatpush.xpose.msra.mxu0 0.0
  %1908 = vmatpush.xpose.msra.mxu0 0.0
  %1909 = vmatpush.xpose.msra.mxu0 0.0
  %1910 = vmatpush.xpose.msra.mxu0 0.0
  %1911 = vmatpush.xpose.msra.mxu0 0.0
  %1912 = vmatpush.xpose.msra.mxu0 0.0
  %1913 = vmatpush.xpose.msra.mxu0 0.0
  %1914 = vmatpush.xpose.msra.mxu0 0.0
  %1915 = vmatpush.xpose.msra.mxu0 0.0
  %1916 = vmatpush.xpose.msra.mxu0 0.0
  %1917 = vmatpush.xpose.msra.mxu0 0.0
  %1918 = vmatpush.xpose.msra.mxu0 0.0
  %1919 = vmatpush.xpose.msra.mxu0 0.0
  %1920 = vmatpush.xpose.msra.mxu0 0.0
  %1921 = vmatpush.xpose.msra.mxu0 %v1904
  %1922 = vmatmul.f32.gmra.mxu0 %v1901
  %v1923 = vpop.f32.mrf.mxu0
  %v1924 = vadd.f32 %v90, %v1923
  %1925 = vdwg.mxu0
  %v1926 = vsel %vm496, %v1742, -inf
  %1927 = vmax.xlane.f32.xlu0 %v1926
  %v1928 = vpop.xlane.xlu0 %1927
  %v1929 = vsel %vm496, %v1768, -inf
  %1930 = vmax.xlane.f32.xlu0 %v1929
  %v1931 = vpop.xlane.xlu0 %1930
  %v1932 = vsel %vm496, %v1794, -inf
  %1933 = vmax.xlane.f32.xlu0 %v1932
  %v1934 = vpop.xlane.xlu0 %1933
  %v1935 = vsel %vm496, %v1820, -inf
  %1936 = vmax.xlane.f32.xlu0 %v1935
  %v1937 = vpop.xlane.xlu0 %1936
  %v1938 = vsel %vm496, %v1846, -inf
  %1939 = vmax.xlane.f32.xlu0 %v1938
  %v1940 = vpop.xlane.xlu0 %1939
  %v1941 = vsel %vm496, %v1872, -inf
  %1942 = vmax.xlane.f32.xlu0 %v1941
  %v1943 = vpop.xlane.xlu0 %1942
  %v1944 = vsel %vm496, %v1898, -inf
  %1945 = vmax.xlane.f32.xlu0 %v1944
  %v1946 = vpop.xlane.xlu0 %1945
  %v1947 = vsel %vm496, %v1924, -inf
  %1948 = vmax.xlane.f32.xlu0 %v1947
  %v1949 = vpop.xlane.xlu0 %1948
  %v1950 = vsub.f32 %v1742, %v1928
  %v1951 = vsub.f32 %v1768, %v1931
  %v1952 = vsub.f32 %v1794, %v1934
  %v1953 = vsub.f32 %v1820, %v1937
  %v1954 = vsub.f32 %v1846, %v1940
  %v1955 = vsub.f32 %v1872, %v1943
  %v1956 = vsub.f32 %v1898, %v1946
  %v1957 = vsub.f32 %v1924, %v1949
  %v1958 = vmul.f32 %v1950, 1.442695
  %v1959 = vpow.pop %v1958
  %v1960 = vmul.f32 %v1951, 1.442695
  %v1961 = vpow.pop %v1960
  %v1962 = vmul.f32 %v1952, 1.442695
  %v1963 = vpow.pop %v1962
  %v1964 = vmul.f32 %v1953, 1.442695
  %v1965 = vpow.pop %v1964
  %v1966 = vmul.f32 %v1954, 1.442695
  %v1967 = vpow.pop %v1966
  %v1968 = vmul.f32 %v1955, 1.442695
  %v1969 = vpow.pop %v1968
  %v1970 = vmul.f32 %v1956, 1.442695
  %v1971 = vpow.pop %v1970
  %v1972 = vmul.f32 %v1957, 1.442695
  %v1973 = vpow.pop %v1972
  %v1974 = vsel %vm496, %v1959, 0.0
  %1975 = vadd.xlane.f32.xlu0 %v1974
  %v1976 = vpop.xlane.xlu0 %1975
  %v1977 = vsel %vm496, %v1961, 0.0
  %1978 = vadd.xlane.f32.xlu0 %v1977
  %v1979 = vpop.xlane.xlu0 %1978
  %v1980 = vsel %vm496, %v1963, 0.0
  %1981 = vadd.xlane.f32.xlu0 %v1980
  %v1982 = vpop.xlane.xlu0 %1981
  %v1983 = vsel %vm496, %v1965, 0.0
  %1984 = vadd.xlane.f32.xlu0 %v1983
  %v1985 = vpop.xlane.xlu0 %1984
  %v1986 = vsel %vm496, %v1967, 0.0
  %1987 = vadd.xlane.f32.xlu0 %v1986
  %v1988 = vpop.xlane.xlu0 %1987
  %v1989 = vsel %vm496, %v1969, 0.0
  %1990 = vadd.xlane.f32.xlu0 %v1989
  %v1991 = vpop.xlane.xlu0 %1990
  %v1992 = vsel %vm496, %v1971, 0.0
  %1993 = vadd.xlane.f32.xlu0 %v1992
  %v1994 = vpop.xlane.xlu0 %1993
  %v1995 = vsel %vm496, %v1973, 0.0
  %1996 = vadd.xlane.f32.xlu0 %v1995
  %v1997 = vpop.xlane.xlu0 %1996
  %v1999 = vsel %vm496, %v1959, 0
  %2001 = vmatpush.msra.mxu0 0.0
  %2002 = vmatpush.msra.mxu0 0.0
  %2003 = vmatpush.msra.mxu0 0.0
  %2004 = vmatpush.msra.mxu0 0.0
  %2005 = vmatpush.msra.mxu0 0.0
  %2006 = vmatpush.msra.mxu0 0.0
  %2007 = vmatpush.msra.mxu0 0.0
  %2008 = vmatpush.msra.mxu0 0.0
  %2009 = vmatpush.msra.mxu0 0.0
  %2010 = vmatpush.msra.mxu0 0.0
  %2011 = vmatpush.msra.mxu0 0.0
  %2012 = vmatpush.msra.mxu0 0.0
  %2013 = vmatpush.msra.mxu0 0.0
  %2014 = vmatpush.msra.mxu0 0.0
  %2015 = vmatpush.msra.mxu0 0.0
  %2016 = vmatpush.msra.mxu0 %v1614
  %2017 = vmatmul.f32.gmra.mxu0 %v1999
  %v2018 = vpop.f32.mrf.mxu0
  %v2019 = vadd.f32 0.0, %v2018
  %2020 = vdwg.mxu0
  %v2022 = vsel %vm496, %v1961, 0
  %2024 = vmatpush.msra.mxu0 0.0
  %2025 = vmatpush.msra.mxu0 0.0
  %2026 = vmatpush.msra.mxu0 0.0
  %2027 = vmatpush.msra.mxu0 0.0
  %2028 = vmatpush.msra.mxu0 0.0
  %2029 = vmatpush.msra.mxu0 0.0
  %2030 = vmatpush.msra.mxu0 0.0
  %2031 = vmatpush.msra.mxu0 0.0
  %2032 = vmatpush.msra.mxu0 0.0
  %2033 = vmatpush.msra.mxu0 0.0
  %2034 = vmatpush.msra.mxu0 0.0
  %2035 = vmatpush.msra.mxu0 0.0
  %2036 = vmatpush.msra.mxu0 0.0
  %2037 = vmatpush.msra.mxu0 0.0
  %2038 = vmatpush.msra.mxu0 0.0
  %2039 = vmatpush.msra.mxu0 %v1617
  %2040 = vmatmul.f32.gmra.mxu0 %v2022
  %v2041 = vpop.f32.mrf.mxu0
  %v2042 = vadd.f32 0.0, %v2041
  %2043 = vdwg.mxu0
  %v2045 = vsel %vm496, %v1963, 0
  %2047 = vmatpush.msra.mxu0 0.0
  %2048 = vmatpush.msra.mxu0 0.0
  %2049 = vmatpush.msra.mxu0 0.0
  %2050 = vmatpush.msra.mxu0 0.0
  %2051 = vmatpush.msra.mxu0 0.0
  %2052 = vmatpush.msra.mxu0 0.0
  %2053 = vmatpush.msra.mxu0 0.0
  %2054 = vmatpush.msra.mxu0 0.0
  %2055 = vmatpush.msra.mxu0 0.0
  %2056 = vmatpush.msra.mxu0 0.0
  %2057 = vmatpush.msra.mxu0 0.0
  %2058 = vmatpush.msra.mxu0 0.0
  %2059 = vmatpush.msra.mxu0 0.0
  %2060 = vmatpush.msra.mxu0 0.0
  %2061 = vmatpush.msra.mxu0 0.0
  %2062 = vmatpush.msra.mxu0 %v1647
  %2063 = vmatmul.f32.gmra.mxu0 %v2045
  %v2064 = vpop.f32.mrf.mxu0
  %v2065 = vadd.f32 0.0, %v2064
  %2066 = vdwg.mxu0
  %v2068 = vsel %vm496, %v1965, 0
  %2070 = vmatpush.msra.mxu0 0.0
  %2071 = vmatpush.msra.mxu0 0.0
  %2072 = vmatpush.msra.mxu0 0.0
  %2073 = vmatpush.msra.mxu0 0.0
  %2074 = vmatpush.msra.mxu0 0.0
  %2075 = vmatpush.msra.mxu0 0.0
  %2076 = vmatpush.msra.mxu0 0.0
  %2077 = vmatpush.msra.mxu0 0.0
  %2078 = vmatpush.msra.mxu0 0.0
  %2079 = vmatpush.msra.mxu0 0.0
  %2080 = vmatpush.msra.mxu0 0.0
  %2081 = vmatpush.msra.mxu0 0.0
  %2082 = vmatpush.msra.mxu0 0.0
  %2083 = vmatpush.msra.mxu0 0.0
  %2084 = vmatpush.msra.mxu0 0.0
  %2085 = vmatpush.msra.mxu0 %v1650
  %2086 = vmatmul.f32.gmra.mxu0 %v2068
  %v2087 = vpop.f32.mrf.mxu0
  %v2088 = vadd.f32 0.0, %v2087
  %2089 = vdwg.mxu0
  %v2091 = vsel %vm496, %v1967, 0
  %2093 = vmatpush.msra.mxu0 0.0
  %2094 = vmatpush.msra.mxu0 0.0
  %2095 = vmatpush.msra.mxu0 0.0
  %2096 = vmatpush.msra.mxu0 0.0
  %2097 = vmatpush.msra.mxu0 0.0
  %2098 = vmatpush.msra.mxu0 0.0
  %2099 = vmatpush.msra.mxu0 0.0
  %2100 = vmatpush.msra.mxu0 0.0
  %2101 = vmatpush.msra.mxu0 0.0
  %2102 = vmatpush.msra.mxu0 0.0
  %2103 = vmatpush.msra.mxu0 0.0
  %2104 = vmatpush.msra.mxu0 0.0
  %2105 = vmatpush.msra.mxu0 0.0
  %2106 = vmatpush.msra.mxu0 0.0
  %2107 = vmatpush.msra.mxu0 0.0
  %2108 = vmatpush.msra.mxu0 %v1680
  %2109 = vmatmul.f32.gmra.mxu0 %v2091
  %v2110 = vpop.f32.mrf.mxu0
  %v2111 = vadd.f32 0.0, %v2110
  %2112 = vdwg.mxu0
  %v2114 = vsel %vm496, %v1969, 0
  %2116 = vmatpush.msra.mxu0 0.0
  %2117 = vmatpush.msra.mxu0 0.0
  %2118 = vmatpush.msra.mxu0 0.0
  %2119 = vmatpush.msra.mxu0 0.0
  %2120 = vmatpush.msra.mxu0 0.0
  %2121 = vmatpush.msra.mxu0 0.0
  %2122 = vmatpush.msra.mxu0 0.0
  %2123 = vmatpush.msra.mxu0 0.0
  %2124 = vmatpush.msra.mxu0 0.0
  %2125 = vmatpush.msra.mxu0 0.0
  %2126 = vmatpush.msra.mxu0 0.0
  %2127 = vmatpush.msra.mxu0 0.0
  %2128 = vmatpush.msra.mxu0 0.0
  %2129 = vmatpush.msra.mxu0 0.0
  %2130 = vmatpush.msra.mxu0 0.0
  %2131 = vmatpush.msra.mxu0 %v1683
  %2132 = vmatmul.f32.gmra.mxu0 %v2114
  %v2133 = vpop.f32.mrf.mxu0
  %v2134 = vadd.f32 0.0, %v2133
  %2135 = vdwg.mxu0
  %v2137 = vsel %vm496, %v1971, 0
  %2139 = vmatpush.msra.mxu0 0.0
  %2140 = vmatpush.msra.mxu0 0.0
  %2141 = vmatpush.msra.mxu0 0.0
  %2142 = vmatpush.msra.mxu0 0.0
  %2143 = vmatpush.msra.mxu0 0.0
  %2144 = vmatpush.msra.mxu0 0.0
  %2145 = vmatpush.msra.mxu0 0.0
  %2146 = vmatpush.msra.mxu0 0.0
  %2147 = vmatpush.msra.mxu0 0.0
  %2148 = vmatpush.msra.mxu0 0.0
  %2149 = vmatpush.msra.mxu0 0.0
  %2150 = vmatpush.msra.mxu0 0.0
  %2151 = vmatpush.msra.mxu0 0.0
  %2152 = vmatpush.msra.mxu0 0.0
  %2153 = vmatpush.msra.mxu0 0.0
  %2154 = vmatpush.msra.mxu0 %v1713
  %2155 = vmatmul.f32.gmra.mxu0 %v2137
  %v2156 = vpop.f32.mrf.mxu0
  %v2157 = vadd.f32 0.0, %v2156
  %2158 = vdwg.mxu0
  %v2160 = vsel %vm496, %v1973, 0
  %2162 = vmatpush.msra.mxu0 0.0
  %2163 = vmatpush.msra.mxu0 0.0
  %2164 = vmatpush.msra.mxu0 0.0
  %2165 = vmatpush.msra.mxu0 0.0
  %2166 = vmatpush.msra.mxu0 0.0
  %2167 = vmatpush.msra.mxu0 0.0
  %2168 = vmatpush.msra.mxu0 0.0
  %2169 = vmatpush.msra.mxu0 0.0
  %2170 = vmatpush.msra.mxu0 0.0
  %2171 = vmatpush.msra.mxu0 0.0
  %2172 = vmatpush.msra.mxu0 0.0
  %2173 = vmatpush.msra.mxu0 0.0
  %2174 = vmatpush.msra.mxu0 0.0
  %2175 = vmatpush.msra.mxu0 0.0
  %2176 = vmatpush.msra.mxu0 0.0
  %2177 = vmatpush.msra.mxu0 %v1716
  %2178 = vmatmul.f32.gmra.mxu0 %v2160
  %v2179 = vpop.f32.mrf.mxu0
  %v2180 = vadd.f32 0.0, %v2179
  %2181 = vdwg.mxu0
  %v2182 = vrcp.pop %v1976
  %v2183 = vrcp.pop %v1979
  %v2184 = vrcp.pop %v1982
  %v2185 = vrcp.pop %v1985
  %v2186 = vrcp.pop %v1988
  %v2187 = vrcp.pop %v1991
  %v2188 = vrcp.pop %v1994
  %v2189 = vrcp.pop %v1997
  %v2190 = vmul.f32 %v2019, %v2182
  %v2191 = vmul.f32 %v2042, %v2183
  %v2192 = vmul.f32 %v2065, %v2184
  %v2193 = vmul.f32 %v2088, %v2185
  %v2194 = vmul.f32 %v2111, %v2186
  %v2195 = vmul.f32 %v2134, %v2187
  %v2196 = vmul.f32 %v2157, %v2188
  %v2197 = vmul.f32 %v2180, %v2189
  %s2198 = scalar_lea.vmem %s11, 1
  %v2199 = vld [vmem:[%s2198] sm:$0x1]
  %s2200 = scalar_lea.vmem %s10, 32
  %v2201 = vld [vmem:[%s2200] sm:$0xff]
  %v2203 = vsel %vm496, %v2190, 0
  %v2206 = vsel %vm496, %v2191, 0
  %2208 = vmatpush.msra.mxu0 0.0
  %2209 = vmatpush.msra.mxu0 0.0
  %2210 = vmatpush.msra.mxu0 0.0
  %2211 = vmatpush.msra.mxu0 0.0
  %2212 = vmatpush.msra.mxu0 0.0
  %2213 = vmatpush.msra.mxu0 0.0
  %2214 = vmatpush.msra.mxu0 0.0
  %2215 = vmatpush.msra.mxu0 0.0
  %2216 = vmatpush.msra.mxu0 0.0
  %2217 = vmatpush.msra.mxu0 0.0
  %2218 = vmatpush.msra.mxu0 0.0
  %2219 = vmatpush.msra.mxu0 0.0
  %2220 = vmatpush.msra.mxu0 0.0
  %2221 = vmatpush.msra.mxu0 0.0
  %2222 = vmatpush.msra.mxu0 0.0
  %2223 = vmatpush.msra.mxu0 %v2201
  %2224 = vmatmul.f32.gmra.mxu0 %v2203
  %v2225 = vpop.f32.mrf.mxu0
  %v2226 = vadd.f32 0.0, %v2225
  %2227 = vmatmul.f32.gmra.mxu0 %v2206
  %v2228 = vpop.f32.mrf.mxu0
  %v2229 = vadd.f32 0.0, %v2228
  %2230 = vdwg.mxu0
  %v2232 = vperm.slane %v2199, 0
  %v2234 = vadd.f32 %v2232, %v2226
  %v2235 = vadd.f32 %v2232, %v2229
  %s2236 = scalar_lea.vmem %s10, 40
  %v2237 = vld [vmem:[%s2236] sm:$0xff]
  %v2239 = vsel %vm496, %v2192, 0
  %v2242 = vsel %vm496, %v2193, 0
  %2244 = vmatpush.msra.mxu0 0.0
  %2245 = vmatpush.msra.mxu0 0.0
  %2246 = vmatpush.msra.mxu0 0.0
  %2247 = vmatpush.msra.mxu0 0.0
  %2248 = vmatpush.msra.mxu0 0.0
  %2249 = vmatpush.msra.mxu0 0.0
  %2250 = vmatpush.msra.mxu0 0.0
  %2251 = vmatpush.msra.mxu0 0.0
  %2252 = vmatpush.msra.mxu0 0.0
  %2253 = vmatpush.msra.mxu0 0.0
  %2254 = vmatpush.msra.mxu0 0.0
  %2255 = vmatpush.msra.mxu0 0.0
  %2256 = vmatpush.msra.mxu0 0.0
  %2257 = vmatpush.msra.mxu0 0.0
  %2258 = vmatpush.msra.mxu0 0.0
  %2259 = vmatpush.msra.mxu0 %v2237
  %2260 = vmatmul.f32.gmra.mxu0 %v2239
  %v2261 = vpop.f32.mrf.mxu0
  %v2262 = vadd.f32 0.0, %v2261
  %2263 = vmatmul.f32.gmra.mxu0 %v2242
  %v2264 = vpop.f32.mrf.mxu0
  %v2265 = vadd.f32 0.0, %v2264
  %2266 = vdwg.mxu0
  %v2267 = vadd.f32 %v2234, %v2262
  %v2268 = vadd.f32 %v2235, %v2265
  %s2269 = scalar_lea.vmem %s10, 48
  %v2270 = vld [vmem:[%s2269] sm:$0xff]
  %v2272 = vsel %vm496, %v2194, 0
  %v2275 = vsel %vm496, %v2195, 0
  %2277 = vmatpush.msra.mxu0 0.0
  %2278 = vmatpush.msra.mxu0 0.0
  %2279 = vmatpush.msra.mxu0 0.0
  %2280 = vmatpush.msra.mxu0 0.0
  %2281 = vmatpush.msra.mxu0 0.0
  %2282 = vmatpush.msra.mxu0 0.0
  %2283 = vmatpush.msra.mxu0 0.0
  %2284 = vmatpush.msra.mxu0 0.0
  %2285 = vmatpush.msra.mxu0 0.0
  %2286 = vmatpush.msra.mxu0 0.0
  %2287 = vmatpush.msra.mxu0 0.0
  %2288 = vmatpush.msra.mxu0 0.0
  %2289 = vmatpush.msra.mxu0 0.0
  %2290 = vmatpush.msra.mxu0 0.0
  %2291 = vmatpush.msra.mxu0 0.0
  %2292 = vmatpush.msra.mxu0 %v2270
  %2293 = vmatmul.f32.gmra.mxu0 %v2272
  %v2294 = vpop.f32.mrf.mxu0
  %v2295 = vadd.f32 0.0, %v2294
  %2296 = vmatmul.f32.gmra.mxu0 %v2275
  %v2297 = vpop.f32.mrf.mxu0
  %v2298 = vadd.f32 0.0, %v2297
  %2299 = vdwg.mxu0
  %v2300 = vadd.f32 %v2267, %v2295
  %v2301 = vadd.f32 %v2268, %v2298
  %s2302 = scalar_lea.vmem %s10, 56
  %v2303 = vld [vmem:[%s2302] sm:$0xff]
  %v2305 = vsel %vm496, %v2196, 0
  %v2308 = vsel %vm496, %v2197, 0
  %2310 = vmatpush.msra.mxu0 0.0
  %2311 = vmatpush.msra.mxu0 0.0
  %2312 = vmatpush.msra.mxu0 0.0
  %2313 = vmatpush.msra.mxu0 0.0
  %2314 = vmatpush.msra.mxu0 0.0
  %2315 = vmatpush.msra.mxu0 0.0
  %2316 = vmatpush.msra.mxu0 0.0
  %2317 = vmatpush.msra.mxu0 0.0
  %2318 = vmatpush.msra.mxu0 0.0
  %2319 = vmatpush.msra.mxu0 0.0
  %2320 = vmatpush.msra.mxu0 0.0
  %2321 = vmatpush.msra.mxu0 0.0
  %2322 = vmatpush.msra.mxu0 0.0
  %2323 = vmatpush.msra.mxu0 0.0
  %2324 = vmatpush.msra.mxu0 0.0
  %2325 = vmatpush.msra.mxu0 %v2303
  %2326 = vmatmul.f32.gmra.mxu0 %v2305
  %v2327 = vpop.f32.mrf.mxu0
  %v2328 = vadd.f32 0.0, %v2327
  %2329 = vmatmul.f32.gmra.mxu0 %v2308
  %v2330 = vpop.f32.mrf.mxu0
  %v2331 = vadd.f32 0.0, %v2330
  %2332 = vdwg.mxu0
  %v2333 = vadd.f32 %v2300, %v2328
  %v2334 = vadd.f32 %v2301, %v2331
  %v2335 = vadd.f32 %v1314, %v2333
  %v2336 = vadd.f32 %v1315, %v2334
  %s2337 = scalar_lea.vmem %s16, 1
  %v2338 = vld [vmem:[%s2337] sm:$0x1]
  %s2339 = scalar_lea.vmem %s17, 1
  %v2340 = vld [vmem:[%s2339] sm:$0x1]
  %v2341 = vsel %vm107, %v2335, 0.0
  %2342 = vadd.xlane.f32.xlu0 %v2341
  %v2343 = vpop.xlane.xlu0 %2342
  %v2344 = vsel %vm107, %v2336, 0.0
  %2345 = vadd.xlane.f32.xlu0 %v2344
  %v2346 = vpop.xlane.xlu0 %2345
  %v2347 = vmul.f32 %v2343, %v1128
  %v2348 = vmul.f32 %v2346, %v1128
  %v2349 = vsub.f32 %v2335, %v2347
  %v2350 = vsub.f32 %v2336, %v2348
  %v2351 = vmul.f32 %v2349, %v2349
  %v2352 = vmul.f32 %v2350, %v2350
  %v2353 = vsel %vm107, %v2351, 0.0
  %2354 = vadd.xlane.f32.xlu0 %v2353
  %v2355 = vpop.xlane.xlu0 %2354
  %v2356 = vsel %vm107, %v2352, 0.0
  %2357 = vadd.xlane.f32.xlu0 %v2356
  %v2358 = vpop.xlane.xlu0 %2357
  %v2359 = vmul.f32 %v2355, %v1128
  %v2360 = vmul.f32 %v2358, %v1128
  %v2361 = vadd.f32 %v2359, 1e-05
  %v2362 = vadd.f32 %v2360, 1e-05
  %v2363 = vrsqrt.pop %v2361
  %v2364 = vmul.f32 %v2363, %v2361
  %v2365 = vmul.f32 %v2364, %v2363
  %v2366 = vmul.f32 0.5, %v2365
  %v2367 = vsub.f32 1.5, %v2366
  %v2368 = vmul.f32 %v2363, %v2367
  %vm2369 = vweird.f32 %v2361
  %vm2370 = vweird.f32 %v2363
  %vm2371 = vmor %vm2369, %vm2370
  %v2372 = vsel %vm2371, %v2363, %v2368
  %v2373 = vrsqrt.pop %v2362
  %v2374 = vmul.f32 %v2373, %v2362
  %v2375 = vmul.f32 %v2374, %v2373
  %v2376 = vmul.f32 0.5, %v2375
  %v2377 = vsub.f32 1.5, %v2376
  %v2378 = vmul.f32 %v2373, %v2377
  %vm2379 = vweird.f32 %v2362
  %vm2380 = vweird.f32 %v2373
  %vm2381 = vmor %vm2379, %vm2380
  %v2382 = vsel %vm2381, %v2373, %v2378
  %v2383 = vmul.f32 %v2349, %v2372
  %v2384 = vmul.f32 %v2350, %v2382
  %v2386 = vperm.slane %v2338, 0
  %v2388 = vmul.f32 %v2383, %v2386
  %v2389 = vmul.f32 %v2384, %v2386
  %v2391 = vperm.slane %v2340, 0
  %v2393 = vadd.f32 %v2388, %v2391
  %v2394 = vadd.f32 %v2389, %v2391
  %s2395 = scalar_lea.vmem %s12, 32
  %v2396 = vld [vmem:[%s2395] sm:$0xff]
  %v2397 = vld [vmem:[%s2395 + $0x8] sm:$0xff]
  %v2398 = vld [vmem:[%s2395 + $0x10] sm:$0xff]
  %v2399 = vld [vmem:[%s2395 + $0x18] sm:$0xff]
  %s2400 = scalar_lea.vmem %s13, 1
  %v2401 = vld [vmem:[%s2400] sm:$0x1]
  %v2403 = vperm.slane %v2401, 0
  %v2406 = vsel %vm107, %v2393, 0
  %v2409 = vsel %vm107, %v2394, 0
  %2411 = vmatpush.msra.mxu0 0.0
  %2412 = vmatpush.msra.mxu0 0.0
  %2413 = vmatpush.msra.mxu0 0.0
  %2414 = vmatpush.msra.mxu0 0.0
  %2415 = vmatpush.msra.mxu0 0.0
  %2416 = vmatpush.msra.mxu0 0.0
  %2417 = vmatpush.msra.mxu0 0.0
  %2418 = vmatpush.msra.mxu0 0.0
  %2419 = vmatpush.msra.mxu0 0.0
  %2420 = vmatpush.msra.mxu0 0.0
  %2421 = vmatpush.msra.mxu0 0.0
  %2422 = vmatpush.msra.mxu0 0.0
  %2423 = vmatpush.msra.mxu0 %v2399
  %2424 = vmatpush.msra.mxu0 %v2398
  %2425 = vmatpush.msra.mxu0 %v2397
  %2426 = vmatpush.msra.mxu0 %v2396
  %2427 = vmatmul.f32.gmra.mxu0 %v2406
  %v2428 = vpop.f32.mrf.mxu0
  %v2429 = vadd.f32 %v2403, %v2428
  %2430 = vmatmul.f32.gmra.mxu0 %v2409
  %v2431 = vpop.f32.mrf.mxu0
  %v2432 = vadd.f32 %v2403, %v2431
  %2433 = vdwg.mxu0
  %v2434 = vmax.f32 %v2429, 0.0
  %v2435 = vmax.f32 %v2432, 0.0
  %s2436 = scalar_lea.vmem %s14, 64
  %v2437 = vld [vmem:[%s2436] sm:$0xff]
  %v2438 = vld [vmem:[%s2436 + $0x8] sm:$0xff]
  %v2439 = vld [vmem:[%s2436 + $0x10] sm:$0xff]
  %v2440 = vld [vmem:[%s2436 + $0x18] sm:$0xff]
  %v2441 = vld [vmem:[%s2436 + $0x20] sm:$0xff]
  %v2442 = vld [vmem:[%s2436 + $0x28] sm:$0xff]
  %v2443 = vld [vmem:[%s2436 + $0x30] sm:$0xff]
  %v2444 = vld [vmem:[%s2436 + $0x38] sm:$0xff]
  %s2445 = scalar_lea.vmem %s15, 1
  %v2446 = vld [vmem:[%s2445] sm:$0x1]
  %v2448 = vperm.slane %v2446, 0
  %v2451 = vsel %vm1228, %v2434, 0
  %v2454 = vsel %vm1228, %v2435, 0
  %2456 = vmatpush.msra.mxu0 0.0
  %2457 = vmatpush.msra.mxu0 0.0
  %2458 = vmatpush.msra.mxu0 0.0
  %2459 = vmatpush.msra.mxu0 0.0
  %2460 = vmatpush.msra.mxu0 0.0
  %2461 = vmatpush.msra.mxu0 0.0
  %2462 = vmatpush.msra.mxu0 0.0
  %2463 = vmatpush.msra.mxu0 0.0
  %2464 = vmatpush.msra.mxu0 %v2444
  %2465 = vmatpush.msra.mxu0 %v2443
  %2466 = vmatpush.msra.mxu0 %v2442
  %2467 = vmatpush.msra.mxu0 %v2441
  %2468 = vmatpush.msra.mxu0 %v2440
  %2469 = vmatpush.msra.mxu0 %v2439
  %2470 = vmatpush.msra.mxu0 %v2438
  %2471 = vmatpush.msra.mxu0 %v2437
  %2472 = vmatmul.f32.gmra.mxu0 %v2451
  %v2473 = vpop.f32.mrf.mxu0
  %v2474 = vadd.f32 %v2448, %v2473
  %2475 = vmatmul.f32.gmra.mxu0 %v2454
  %v2476 = vpop.f32.mrf.mxu0
  %v2477 = vadd.f32 %v2448, %v2476
  %2478 = vdwg.mxu0
  %v2479 = vadd.f32 %v2393, %v2474
  %v2480 = vadd.f32 %v2394, %v2477
  %s2481 = scalar_lea.vmem %s18, 1
  %v2482 = vld [vmem:[%s2481] sm:$0x1]
  %s2483 = scalar_lea.vmem %s19, 1
  %v2484 = vld [vmem:[%s2483] sm:$0x1]
  %v2485 = vsel %vm107, %v2479, 0.0
  %2486 = vadd.xlane.f32.xlu0 %v2485
  %v2487 = vpop.xlane.xlu0 %2486
  %v2488 = vsel %vm107, %v2480, 0.0
  %2489 = vadd.xlane.f32.xlu0 %v2488
  %v2490 = vpop.xlane.xlu0 %2489
  %v2491 = vmul.f32 %v2487, %v1128
  %v2492 = vmul.f32 %v2490, %v1128
  %v2493 = vsub.f32 %v2479, %v2491
  %v2494 = vsub.f32 %v2480, %v2492
  %v2495 = vmul.f32 %v2493, %v2493
  %v2496 = vmul.f32 %v2494, %v2494
  %v2497 = vsel %vm107, %v2495, 0.0
  %2498 = vadd.xlane.f32.xlu0 %v2497
  %v2499 = vpop.xlane.xlu0 %2498
  %v2500 = vsel %vm107, %v2496, 0.0
  %2501 = vadd.xlane.f32.xlu0 %v2500
  %v2502 = vpop.xlane.xlu0 %2501
  %v2503 = vmul.f32 %v2499, %v1128
  %v2504 = vmul.f32 %v2502, %v1128
  %v2505 = vadd.f32 %v2503, 1e-05
  %v2506 = vadd.f32 %v2504, 1e-05
  %v2507 = vrsqrt.pop %v2505
  %v2508 = vmul.f32 %v2507, %v2505
  %v2509 = vmul.f32 %v2508, %v2507
  %v2510 = vmul.f32 0.5, %v2509
  %v2511 = vsub.f32 1.5, %v2510
  %v2512 = vmul.f32 %v2507, %v2511
  %vm2513 = vweird.f32 %v2505
  %vm2514 = vweird.f32 %v2507
  %vm2515 = vmor %vm2513, %vm2514
  %v2516 = vsel %vm2515, %v2507, %v2512
  %v2517 = vrsqrt.pop %v2506
  %v2518 = vmul.f32 %v2517, %v2506
  %v2519 = vmul.f32 %v2518, %v2517
  %v2520 = vmul.f32 0.5, %v2519
  %v2521 = vsub.f32 1.5, %v2520
  %v2522 = vmul.f32 %v2517, %v2521
  %vm2523 = vweird.f32 %v2506
  %vm2524 = vweird.f32 %v2517
  %vm2525 = vmor %vm2523, %vm2524
  %v2526 = vsel %vm2525, %v2517, %v2522
  %v2527 = vmul.f32 %v2493, %v2516
  %v2528 = vmul.f32 %v2494, %v2526
  %v2530 = vperm.slane %v2482, 0
  %v2532 = vmul.f32 %v2527, %v2530
  %v2533 = vmul.f32 %v2528, %v2530
  %v2535 = vperm.slane %v2484, 0
  %v2537 = vadd.f32 %v2532, %v2535
  %v2538 = vadd.f32 %v2533, %v2535
  %v2539 = vld [vmem:[%s2] sm:$0xff]
  %v2540 = vld [vmem:[%s2 + $0x8] sm:$0xff]
  %2542 = vset.pattern.permute.xlu0 0
  %2543 = vperm.xlu0 %2542, %v2539
  %v2544 = vpop.permute.xlu0 %2543
  %2547 = vset.pattern.permute.xlu0 0
  %2548 = vperm.xlu0 %2547, %v2540
  %v2549 = vpop.permute.xlu0 %2548
  %v2551 = vmul.f32 %v2537, %v2544
  %v2552 = vmul.f32 %v2538, %v2549
  %v2553 = vsel %vm107, %v2551, 0.0
  %v2554 = vrot.slane %v2553, 4
  %v2555 = vadd.f32 %v2553, %v2554
  %v2556 = vrot.slane %v2555, 2
  %v2557 = vadd.f32 %v2555, %v2556
  %v2558 = vrot.slane %v2557, 1
  %v2559 = vadd.f32 %v2557, %v2558
  %v2560 = vsel %vm107, %v2552, 0.0
  %v2561 = vrot.slane %v2560, 4
  %v2562 = vadd.f32 %v2560, %v2561
  %v2563 = vrot.slane %v2562, 2
  %v2564 = vadd.f32 %v2562, %v2563
  %v2565 = vrot.slane %v2564, 1
  %v2566 = vadd.f32 %v2564, %v2565
  %vm2567 = vcmask 7168
  %v2568 = vsel %vm2567, %v2539, 0.0
  %v2569 = vrot.slane %v2568, 4
  %v2570 = vadd.f32 %v2568, %v2569
  %v2571 = vrot.slane %v2570, 2
  %v2572 = vadd.f32 %v2570, %v2571
  %v2573 = vrot.slane %v2572, 1
  %v2574 = vadd.f32 %v2572, %v2573
  %v2575 = vsel %vm2567, %v2540, 0.0
  %v2576 = vrot.slane %v2575, 4
  %v2577 = vadd.f32 %v2575, %v2576
  %v2578 = vrot.slane %v2577, 2
  %v2579 = vadd.f32 %v2577, %v2578
  %v2580 = vrot.slane %v2579, 1
  %v2581 = vadd.f32 %v2579, %v2580
  %v2582 = vmax.f32 %v2574, 1e-30
  %v2583 = vmax.f32 %v2581, 1e-30
  %2585 = vset.pattern.permute.xlu0 0
  %2586 = vperm.xlu0 %2585, %v2582
  %v2587 = vpop.permute.xlu0 %2586
  %2590 = vset.pattern.permute.xlu0 0
  %2591 = vperm.xlu0 %2590, %v2583
  %v2592 = vpop.permute.xlu0 %2591
  %v2594 = vrcp.pop %v2587
  %v2595 = vmul.f32 %v2587, %v2594
  %v2596 = vsub.f32 1.0, %v2595
  %v2597 = vmul.f32 %v2594, %v2596
  %v2598 = vadd.f32 %v2594, %v2597
  %vm2599 = vweird.f32 %v2587
  %vm2600 = vweird.f32 %v2594
  %vm2601 = vmor %vm2599, %vm2600
  %v2602 = vsel %vm2601, %v2594, %v2598
  %v2603 = vand.u32 2147483647, %v2587
  %vm2604 = vcmp.eq.f32.partialorder %v2603, 8.507059e+37
  %v2605 = vand.u32 %v2587, 2147483648
  %v2606 = vor.u32 1.1754944e-38, %v2605
  %v2607 = vsel %vm2604, %v2606, %v2602
  %v2608 = vmul.f32 %v2559, %v2607
  %v2609 = vrcp.pop %v2592
  %v2610 = vmul.f32 %v2592, %v2609
  %v2611 = vsub.f32 1.0, %v2610
  %v2612 = vmul.f32 %v2609, %v2611
  %v2613 = vadd.f32 %v2609, %v2612
  %vm2614 = vweird.f32 %v2592
  %vm2615 = vweird.f32 %v2609
  %vm2616 = vmor %vm2614, %vm2615
  %v2617 = vsel %vm2616, %v2609, %v2613
  %v2618 = vand.u32 2147483647, %v2592
  %vm2619 = vcmp.eq.f32.partialorder %v2618, 8.507059e+37
  %v2620 = vand.u32 %v2592, 2147483648
  %v2621 = vor.u32 1.1754944e-38, %v2620
  %v2622 = vsel %vm2619, %v2621, %v2617
  %v2623 = vmul.f32 %v2566, %v2622
  %v2624 = vld [vmem:[%s3] sm:$0xff]
  %v2625 = vld [vmem:[%s3 + $0x8] sm:$0xff]
  %v2627 = vsel %vm107, %v2608, 0
  %v2630 = vsel %vm107, %v2624, 0
  %2632 = vmatpush.xpose.msra.mxu0 0.0
  %2633 = vmatpush.xpose.msra.mxu0 0.0
  %2634 = vmatpush.xpose.msra.mxu0 0.0
  %2635 = vmatpush.xpose.msra.mxu0 0.0
  %2636 = vmatpush.xpose.msra.mxu0 0.0
  %2637 = vmatpush.xpose.msra.mxu0 0.0
  %2638 = vmatpush.xpose.msra.mxu0 0.0
  %2639 = vmatpush.xpose.msra.mxu0 0.0
  %2640 = vmatpush.xpose.msra.mxu0 0.0
  %2641 = vmatpush.xpose.msra.mxu0 0.0
  %2642 = vmatpush.xpose.msra.mxu0 0.0
  %2643 = vmatpush.xpose.msra.mxu0 0.0
  %2644 = vmatpush.xpose.msra.mxu0 0.0
  %2645 = vmatpush.xpose.msra.mxu0 0.0
  %2646 = vmatpush.xpose.msra.mxu0 0.0
  %2647 = vmatpush.xpose.msra.mxu0 %v2630
  %2648 = vmatmul.f32.gmra.mxu0 %v2627
  %v2649 = vpop.f32.mrf.mxu0
  %v2650 = vadd.f32 0.0, %v2649
  %2651 = vdwg.mxu0
  %v2653 = vsel %vm107, %v2623, 0
  %v2656 = vsel %vm107, %v2625, 0
  %2658 = vmatpush.xpose.msra.mxu0 0.0
  %2659 = vmatpush.xpose.msra.mxu0 0.0
  %2660 = vmatpush.xpose.msra.mxu0 0.0
  %2661 = vmatpush.xpose.msra.mxu0 0.0
  %2662 = vmatpush.xpose.msra.mxu0 0.0
  %2663 = vmatpush.xpose.msra.mxu0 0.0
  %2664 = vmatpush.xpose.msra.mxu0 0.0
  %2665 = vmatpush.xpose.msra.mxu0 0.0
  %2666 = vmatpush.xpose.msra.mxu0 0.0
  %2667 = vmatpush.xpose.msra.mxu0 0.0
  %2668 = vmatpush.xpose.msra.mxu0 0.0
  %2669 = vmatpush.xpose.msra.mxu0 0.0
  %2670 = vmatpush.xpose.msra.mxu0 0.0
  %2671 = vmatpush.xpose.msra.mxu0 0.0
  %2672 = vmatpush.xpose.msra.mxu0 0.0
  %2673 = vmatpush.xpose.msra.mxu0 %v2656
  %2674 = vmatmul.f32.gmra.mxu0 %v2653
  %v2675 = vpop.f32.mrf.mxu0
  %v2676 = vadd.f32 0.0, %v2675
  %2677 = vdwg.mxu0
  %vm2678 = vcmask 57344
  %2679 = vst.msk [vmem:[%s20] sm:$0x1] %vm2678, %v2650
  %2680 = vst.msk [vmem:[%s20 + $0x1] sm:$0x1] %vm2678, %v2676
  // Predicated region
  $region82: #{ptum_forward.1} parent=0 // pred_check
    _
  $region83: #{ptum_forward.1} parent=0 // pred_check_branch
    %2682 = sbr.rel (0) target = $region85
  $region84: #{ptum_forward.1} parent=0 // pred_region
    _
  $region85: #{ptum_forward.1} parent=0 // pred_fallthru
    _
  // Predicated region
  $region86: #{ptum_forward.1} parent=0 // pred_check
    _
  $region87: #{ptum_forward.1} parent=0 // pred_check_branch
    %2684 = sbr.rel (0) target = $region89
  $region88: #{ptum_forward.1} parent=0 // pred_region
    _
  $region89: #{ptum_forward.1} parent=0 // pred_fallthru
    _

</llo_original>
